<compile_context>
chip_gen: v5e
topology: v5e:2x2
jax: 0.10.0
libtpu: 0.0.40
codegen_flags: <defaults>
</compile_context>

<pallas_src>
import functools

import jax
import jax.numpy as jnp
from jax import lax
from jax.experimental import pallas as pl
from jax.experimental.pallas import tpu as pltpu


_VMEM_LIMIT = 48 * 1024 * 1024   # explicit scoped-VMEM limit (safe on v5e/v6e/v7x)


def _round_up(a, b):
    return ((a + b - 1) // b) * b


def _vmem_specs(n):
    return [pl.BlockSpec(memory_space=pltpu.MemorySpace.VMEM) for _ in range(n)]


# ----------------------------------------------------------------------------
# Kernel 1a: edge MLP  ew[e] = (relu(edge_attr[e] @ W1 + b1)) @ W2 + b2
# Tiled over edges, "parallel" grid axis.
# ----------------------------------------------------------------------------
def _edge_mlp_kernel(ea_ref, w1_ref, b1_ref, w2_ref, b2_ref, ew_ref):
    t = jnp.maximum(
        jnp.dot(ea_ref[...], w1_ref[...], preferred_element_type=jnp.float32)
        + b1_ref[...], 0.0)
    ew_ref[...] = (jnp.dot(t, w2_ref[...], preferred_element_type=jnp.float32)
                   + b2_ref[...])


def edge_mlp(edge_attr_pad, nn1_w, nn1_b, nn2_w, nn2_b, *, te):
    e_pad, fe = edge_attr_pad.shape
    dl = nn1_w.shape[1]
    dd = nn2_w.shape[1]
    n_et = e_pad // te
    return pl.pallas_call(
        _edge_mlp_kernel,
        out_shape=jax.ShapeDtypeStruct((e_pad, dd), jnp.float32),
        grid=(n_et,),
        in_specs=[
            pl.BlockSpec((te, fe), lambda e: (e, 0)),
            pl.BlockSpec((fe, dl), lambda e: (0, 0)),
            pl.BlockSpec((1, dl), lambda e: (0, 0)),
            pl.BlockSpec((dl, dd), lambda e: (0, 0)),
            pl.BlockSpec((1, dd), lambda e: (0, 0)),
        ],
        out_specs=pl.BlockSpec((te, dd), lambda e: (e, 0)),
        compiler_params=pltpu.CompilerParams(
            dimension_semantics=("parallel",),
            vmem_limit_bytes=_VMEM_LIMIT),
    )(edge_attr_pad, nn1_w, nn1_b.reshape(1, -1), nn2_w, nn2_b.reshape(1, -1))


# ----------------------------------------------------------------------------
# Kernel 1b: lin0 + (gather -> NNConv(mean) -> GRU) x mp_times.
# grid = (mp_times, edge_tiles); edge tiles of `ew`/src/dst are streamed from
# HBM; node state + aggregation accumulate in VMEM scratch (pl.when init/fin).
# ----------------------------------------------------------------------------
def _mp_kernel(x_ref, l0w_ref, l0b_ref,
               src_ref, dstT_ref, ew_ref, invdeg_ref,
               sexp_ref, rsum_ref, root_ref, cbias_ref,
               gruw_ref, grub_ref,
               o_ref, h_acc, aggr_acc, *, dim):
    d = dim
    t = pl.program_id(0)
    et = pl.program_id(1)
    n_et = pl.num_programs(1)
    n = h_acc.shape[0]
    te = src_ref.shape[0]

    @pl.when(jnp.logical_and(t == 0, et == 0))
    def _init_h():
        # lin0 + ReLU -> initial node state (== GRU hidden, seq_len = 1)
        h_acc[...] = jnp.maximum(
            jnp.dot(x_ref[...], l0w_ref[...], preferred_element_type=jnp.float32)
            + l0b_ref[...], 0.0)

    @pl.when(et == 0)
    def _zero_aggr():
        aggr_acc[...] = jnp.zeros_like(aggr_acc)

    # ---- per-edge-tile message computation ----------------------------------
    h = h_acc[...]                                                        # [N, D]
    # one-hot gather built in-registers from streamed indices (padded src == -1
    # gives an all-zero row -> zero message, so padded edges contribute nothing)
    onehot_src = (src_ref[...] ==
                  lax.broadcasted_iota(jnp.int32, (te, n), 1)).astype(jnp.float32)
    xs = jnp.dot(onehot_src, h, preferred_element_type=jnp.float32)       # [TE, D]
    # per-edge x_src[e] @ W_e as 2-D MXU matmuls via block-structured sexp/rsum;
    # the [TE, D*D] temporary only ever exists for one edge tile.
    xs_exp = jnp.dot(xs, sexp_ref[...], preferred_element_type=jnp.float32)
    msgs = jnp.dot(xs_exp * ew_ref[...], rsum_ref[...],
                   preferred_element_type=jnp.float32)                    # [TE, D]
    # scatter-add by destination node (padded dst == -1 -> all-zero column)
    onehot_dst_t = (lax.broadcasted_iota(jnp.int32, (n, te), 0) ==
                    dstT_ref[...]).astype(jnp.float32)                    # [N, TE]
    aggr_acc[...] += jnp.dot(onehot_dst_t, msgs, preferred_element_type=jnp.float32)

    # ---- end of mp step: mean-normalize, root+bias+ReLU, fused GRU cell -----
    @pl.when(et == n_et - 1)
    def _gru_update():
        aggr = aggr_acc[...] * invdeg_ref[...]                            # mean aggr
        m = jnp.maximum(
            aggr + jnp.dot(h, root_ref[...], preferred_element_type=jnp.float32)
            + cbias_ref[...], 0.0)
        # single block-diagonal matmul producing [gi | gh]  (PyTorch order r,z,n)
        mh = jnp.concatenate([m, h], axis=-1)                             # [N, 2D]
        g = (jnp.dot(mh, gruw_ref[...], preferred_element_type=jnp.float32)
             + grub_ref[...])                                             # [N, 6D]
        gi = g[:, :3 * d]
        gh = g[:, 3 * d:]
        r = jax.nn.sigmoid(gi[:, :d] + gh[:, :d])
        z = jax.nn.sigmoid(gi[:, d:2 * d] + gh[:, d:2 * d])
        cand = jnp.tanh(gi[:, 2 * d:] + r * gh[:, 2 * d:])
        h_new = (1.0 - z) * cand + z * h
        h_acc[...] = h_new
        o_ref[...] = h_new


def fused_message_passing(x, lin0_w, lin0_b, src_pad, dst_row, ew, inv_deg,
                          sexp, rsum, conv_root, conv_bias,
                          gru_w_stack, gru_b_stack, *, mp_times, te):
    n, f_node = x.shape
    d = conv_root.shape[0]
    dd = d * d
    e_pad = ew.shape[0]
    n_et = e_pad // te

    def const(shape):
        return pl.BlockSpec(shape, lambda t, e, _s=shape: tuple(0 for _ in _s))

    return pl.pallas_call(
        functools.partial(_mp_kernel, dim=d),
        out_shape=jax.ShapeDtypeStruct((n, d), jnp.float32),
        grid=(mp_times, n_et),
        in_specs=[
            const((n, f_node)),                               # x
            const((f_node, d)),                               # lin0_w
            const((1, d)),                                    # lin0_b
            pl.BlockSpec((te, 1), lambda t, e: (e, 0)),       # src indices
            pl.BlockSpec((1, te), lambda t, e: (0, e)),       # dst indices (lane-major)
            pl.BlockSpec((te, dd), lambda t, e: (e, 0)),      # ew (streamed per tile)
            const((n, 1)),                                    # inv_deg
            const((d, dd)),                                   # sexp
            const((dd, d)),                                   # rsum
            const((d, d)),                                    # conv_root
            const((1, d)),                                    # conv_bias
            const((2 * d, 6 * d)),                            # GRU block-diag weight
            const((1, 6 * d)),                                # GRU bias stack
        ],
        out_specs=pl.BlockSpec((n, d), lambda t, e: (0, 0)),
        scratch_shapes=[
            pltpu.VMEM((n, d), jnp.float32),                  # recurrent node state
            pltpu.VMEM((n, d), jnp.float32),                  # message accumulator
        ],
        compiler_params=pltpu.CompilerParams(
            dimension_semantics=("arbitrary", "arbitrary"),
            vmem_limit_bytes=_VMEM_LIMIT),
    )(x, lin0_w, lin0_b.reshape(1, -1), src_pad, dst_row, ew, inv_deg,
      sexp, rsum, conv_root, conv_bias.reshape(1, -1), gru_w_stack, gru_b_stack)


# ----------------------------------------------------------------------------
# Kernel 2: Set2Set (LSTM + segment-softmax attention) x steps + lin1 + lin2.
# x^T, segment mask, and weight splits/sums are hoisted to the wrapper / loop
# preamble so the unrolled loop does only 2 LSTM matmuls + attention per step.
# ----------------------------------------------------------------------------
def _s2s_readout_kernel(x_ref, xt_ref, s_ref, ga_ref,
                        wq_ref, wr_ref, bqr_ref,
                        w1h_ref, w1r_ref, w1g_ref, b1_ref,
                        w2_ref, b2_ref, o_ref, *, steps, dim):
    d = dim
    x = x_ref[...]                 # [N, D]
    xt = xt_ref[...]               # [D, N] (transpose hoisted out of the loop)
    s = s_ref[...]                 # [B, N] one-hot graph membership
    wq = wq_ref[...]               # [D, 4D] = wih[:D] + whh  (exact pre-sum)
    wr = wr_ref[...]               # [D, 4D] = wih[D:]
    bqr = bqr_ref[...]             # [1, 4D] = bih + bhh
    b = s.shape[0]

    neg_mask = jnp.where(s > 0, jnp.float32(0.0), jnp.float32(-1e30))  # hoisted

    def step(_, carry):
        hh, cc, r = carry          # q_star_{t-1} == [hh, r]  (concat eliminated)
        g = (jnp.dot(hh, wq, preferred_element_type=jnp.float32)
             + jnp.dot(r, wr, preferred_element_type=jnp.float32) + bqr)   # [B, 4D]
        i = jax.nn.sigmoid(g[:, :d])
        f = jax.nn.sigmoid(g[:, d:2 * d])
        gg = jnp.tanh(g[:, 2 * d:3 * d])
        o = jax.nn.sigmoid(g[:, 3 * d:])
        cc = f * cc + i * gg
        hh = o * jnp.tanh(cc)
        # segment softmax attention over each graph's nodes (dense, masked)
        scores = jnp.dot(hh, xt, preferred_element_type=jnp.float32) + neg_mask
        m_b = jnp.max(scores, axis=-1, keepdims=True)
        expv = s * jnp.exp(scores - m_b)
        denom = jnp.sum(expv, axis=-1, keepdims=True)
        a = expv * pl.reciprocal(jnp.maximum(denom, jnp.float32(1e-12)),
                                 approx=True)                              # [B, N]
        r = jnp.dot(a, x, preferred_element_type=jnp.float32)              # [B, D]
        return hh, cc, r

    zeros = jnp.zeros((b, d), jnp.float32)
    hh, cc, r = lax.fori_loop(0, steps, step, (zeros, zeros, zeros), unroll=True)

    # readout: lin1 on [hh, r, graph_attr] (concat folded into split matmuls), lin2
    y1 = jnp.maximum(
        jnp.dot(hh, w1h_ref[...], preferred_element_type=jnp.float32)
        + jnp.dot(r, w1r_ref[...], preferred_element_type=jnp.float32)
        + jnp.dot(ga_ref[...], w1g_ref[...], preferred_element_type=jnp.float32)
        + b1_ref[...], 0.0)
    o_ref[...] = (jnp.dot(y1, w2_ref[...], preferred_element_type=jnp.float32)
                  + b2_ref[...])


def fused_set2set_readout(x, x_t, s, graph_attr,
                          s2s_wih, s2s_whh, s2s_bih, s2s_bhh,
                          lin1_w, lin1_b, lin2_w, lin2_b, *, steps):
    b = s.shape[0]
    d = x.shape[1]
    out_dim = lin2_w.shape[1]
    # LSTM input is [q | r] with q == hidden state, so fold wih[:D] into whh (exact)
    wq = s2s_wih[:d, :] + s2s_whh
    wr = s2s_wih[d:, :]
    bqr = (s2s_bih + s2s_bhh).reshape(1, -1)
    w1h = lin1_w[:d, :]
    w1r = lin1_w[d:2 * d, :]
    w1g = lin1_w[2 * d:, :]
    return pl.pallas_call(
        functools.partial(_s2s_readout_kernel, steps=steps, dim=d),
        out_shape=jax.ShapeDtypeStruct((b, out_dim), jnp.float32),
        in_specs=_vmem_specs(13),
        out_specs=pl.BlockSpec(memory_space=pltpu.MemorySpace.VMEM),
        compiler_params=pltpu.CompilerParams(vmem_limit_bytes=_VMEM_LIMIT),
    )(x, x_t, s, graph_attr,
      wq, wr, bqr, w1h, w1r, w1g,
      lin1_b.reshape(1, -1), lin2_w, lin2_b.reshape(1, -1))


# ----------------------------------------------------------------------------
# Full forward pass.  Setup (padding, indices, degree, block-structured weights)
# in plain JAX; all heavy work in the fused kernels above.
# ----------------------------------------------------------------------------
def graph_prediction_forward(params, x, edge_index, edge_attr, batch, graph_attr,
                             *, mp_times, processing_steps, num_graphs,
                             vector_dim, num_tasks):
    d = params["conv_root"].shape[0]
    n = x.shape[0]
    e = edge_attr.shape[0]
    b = num_graphs

    src = edge_index[0].astype(jnp.int32)
    dst = edge_index[1].astype(jnp.int32)

    # --- edge padding / tiling plan (TE multiple of 8, or 128 for large E) ----
    if e <= 128:
        e_pad = max(_round_up(e, 8), 8)
        te = e_pad
    else:
        e_pad = _round_up(e, 128)
        te = 128
    pad_e = e_pad - e
    edge_attr_pad = jnp.pad(edge_attr, ((0, pad_e), (0, 0)))
    src_pad = jnp.pad(src, (0, pad_e), constant_values=-1).reshape(e_pad, 1)
    dst_row = jnp.pad(dst, (0, pad_e), constant_values=-1).reshape(1, e_pad)

    # mean-aggregation normalization (per-node in-degree), O(E) once
    deg = jnp.zeros((n,), jnp.float32).at[dst].add(1.0)
    inv_deg = (1.0 / jnp.maximum(deg, 1.0)).reshape(n, 1)

    # block-structured 0/1 matrices that turn per-edge x_src[e] @ W_e into
    # two plain 2-D MXU matmuls:  msgs = ((xs @ sexp) * ew) @ rsum
    eye_d = jnp.eye(d, dtype=jnp.float32)
    sexp = jnp.kron(eye_d, jnp.ones((1, d), jnp.float32))                 # [D, D*D]
    rsum = jnp.kron(jnp.ones((d, 1), jnp.float32), eye_d)                 # [D*D, D]

    # GRU: one block-diagonal [2D, 6D] weight so [gi | gh] come from one matmul
    zblk = jnp.zeros((d, 3 * d), jnp.float32)
    gru_w_stack = jnp.concatenate(
        [jnp.concatenate([params["gru_wih"], zblk], axis=1),
         jnp.concatenate([zblk, params["gru_whh"]], axis=1)], axis=0)
    gru_b_stack = jnp.concatenate([params["gru_bih"], params["gru_bhh"]]).reshape(1, -1)

    # kernel 1a: edge-conditioned weights (tiled over edges, "parallel")
    ew = edge_mlp(edge_attr_pad, params["nn1_w"], params["nn1_b"],
                  params["nn2_w"], params["nn2_b"], te=te)                # [E_pad, D*D]

    # kernel 1b: (gather -> NNConv(mean) -> GRU) x mp_times, ew streamed per tile
    out = fused_message_passing(
        x, params["lin0_w"], params["lin0_b"],
        src_pad, dst_row, ew, inv_deg, sexp, rsum,
        params["conv_root"], params["conv_bias"],
        gru_w_stack, gru_b_stack, mp_times=mp_times, te=te)               # [N, D]

    # kernel 2: Set2Set + lin1 + lin2  (x^T computed once, outside the loop)
    s = (batch[None, :] == jnp.arange(b, dtype=batch.dtype)[:, None]).astype(jnp.float32)
    y = fused_set2set_readout(
        out, out.T, s, graph_attr.reshape(b, -1),
        params["s2s_wih"], params["s2s_whh"], params["s2s_bih"], params["s2s_bhh"],
        params["lin1_w"], params["lin1_b"], params["lin2_w"], params["lin2_b"],
        steps=processing_steps)                                           # [B, vd*nt]

    return y.reshape(-1, vector_dim, num_tasks)


# ----------------------------------------------------------------------------
# Deterministic parameter init + example data
# ----------------------------------------------------------------------------
def init_params(key, f_node, f_edge, f_graph, dim_linear, d, vector_dim, num_tasks):
    ks = jax.random.split(key, 24)
    rnd = lambda k, shape: 0.1 * jax.random.normal(k, shape, dtype=jnp.float32)
    return {
        "lin0_w": rnd(ks[0], (f_node, d)),          "lin0_b": rnd(ks[1], (d,)),
        "nn1_w": rnd(ks[2], (f_edge, dim_linear)),  "nn1_b": rnd(ks[3], (dim_linear,)),
        "nn2_w": rnd(ks[4], (dim_linear, d * d)),   "nn2_b": rnd(ks[5], (d * d,)),
        "conv_root": rnd(ks[6], (d, d)),            "conv_bias": rnd(ks[7], (d,)),
        "gru_wih": rnd(ks[8], (d, 3 * d)),          "gru_whh": rnd(ks[9], (d, 3 * d)),
        "gru_bih": rnd(ks[10], (3 * d,)),           "gru_bhh": rnd(ks[11], (3 * d,)),
        "s2s_wih": rnd(ks[12], (2 * d, 4 * d)),     "s2s_whh": rnd(ks[13], (d, 4 * d)),
        "s2s_bih": rnd(ks[14], (4 * d,)),           "s2s_bhh": rnd(ks[15], (4 * d,)),
        "lin1_w": rnd(ks[16], (2 * d + f_graph, d)), "lin1_b": rnd(ks[17], (d,)),
        "lin2_w": rnd(ks[18], (d, vector_dim * num_tasks)),
        "lin2_b": rnd(ks[19], (vector_dim * num_tasks,)),
    }


if __name__ == "__main__":
    # Small shapes consistent with the module's forward pass.
    N, E, B = 8, 16, 2                  # nodes, edges, graphs
    F_NODE, F_EDGE, F_GRAPH = 16, 8, 4  # num_features, num_edge_features, num_graph_features
    DIM_LINEAR, DIM_CONV = 32, 32
    NUM_TASKS, VECTOR_DIM = 3, 2
    PROCESSING_STEPS, MP_TIMES = 3, 2

    key = jax.random.PRNGKey(0)
    k_data, k_params = jax.random.split(key)
    kd = jax.random.split(k_data, 8)

    x = jax.random.normal(kd[0], (N, F_NODE), dtype=jnp.float32)
    edge_attr = jax.random.normal(kd[1], (E, F_EDGE), dtype=jnp.float32)
    graph_attr = jax.random.normal(kd[2], (B, F_GRAPH), dtype=jnp.float32)
    # Edges: first half within graph 0 (nodes 0..3), second half within graph 1 (nodes 4..7).
    src0 = jax.random.randint(kd[3], (E // 2,), 0, N // 2)
    dst0 = jax.random.randint(kd[4], (E // 2,), 0, N // 2)
    src1 = jax.random.randint(kd[5], (E // 2,), N // 2, N)
    dst1 = jax.random.randint(kd[6], (E // 2,), N // 2, N)
    edge_index = jnp.stack([jnp.concatenate([src0, src1]),
                            jnp.concatenate([dst0, dst1])]).astype(jnp.int32)
    batch = jnp.array([0, 0, 0, 0, 1, 1, 1, 1], dtype=jnp.int32)

    params = init_params(k_params, F_NODE, F_EDGE, F_GRAPH,
                         DIM_LINEAR, DIM_CONV, VECTOR_DIM, NUM_TASKS)

    fwd = jax.jit(graph_prediction_forward,
                  static_argnames=("mp_times", "processing_steps", "num_graphs",
                                   "vector_dim", "num_tasks"))
    out = fwd(params, x, edge_index, edge_attr, batch, graph_attr,
              mp_times=MP_TIMES, processing_steps=PROCESSING_STEPS,
              num_graphs=B, vector_dim=VECTOR_DIM, num_tasks=NUM_TASKS)
    out = jax.block_until_ready(out)

    assert out.shape == (B, VECTOR_DIM, NUM_TASKS)
    assert bool(jnp.all(jnp.isfinite(out)))
    print("KERNEL_OK")
</pallas_src>

<mosaic_0001>
module attributes {stable_mosaic.version = 11 : i64} {
  func.func @_edge_mlp_kernel(%arg0: i32, %arg1: memref<16x8xf32, #tpu.memory_space<vmem>>, %arg2: memref<8x32xf32, #tpu.memory_space<vmem>>, %arg3: memref<1x32xf32, #tpu.memory_space<vmem>>, %arg4: memref<32x1024xf32, #tpu.memory_space<vmem>>, %arg5: memref<1x1024xf32, #tpu.memory_space<vmem>>, %arg6: memref<16x1024xf32, #tpu.memory_space<vmem>>) attributes {dimension_semantics = [#tpu.dimension_semantics<parallel>], iteration_bounds = array<i64: 1>, scalar_prefetch = 0 : i64, scratch_operands = 0 : i64, tpu.core_type = #tpu.core_type<tc>, window_params = [{transform_indices = @transform_0, window_bounds = array<i64: 16, 8>}, {pipeline_mode = #tpu.pipeline_mode<synchronous>, transform_indices = @transform_1, window_bounds = array<i64: 8, 32>}, {pipeline_mode = #tpu.pipeline_mode<synchronous>, transform_indices = @transform_2, window_bounds = array<i64: 1, 32>}, {pipeline_mode = #tpu.pipeline_mode<synchronous>, transform_indices = @transform_3, window_bounds = array<i64: 32, 1024>}, {pipeline_mode = #tpu.pipeline_mode<synchronous>, transform_indices = @transform_4, window_bounds = array<i64: 1, 1024>}, {transform_indices = @transform_5, window_bounds = array<i64: 16, 1024>}]} {
    %c0 = arith.constant 0 : index
    %c0_0 = arith.constant 0 : index
    %0 = vector.load %arg1[%c0, %c0_0] : memref<16x8xf32, #tpu.memory_space<vmem>>, vector<16x8xf32>
    %c0_1 = arith.constant 0 : index
    %c0_2 = arith.constant 0 : index
    %1 = vector.load %arg2[%c0_1, %c0_2] : memref<8x32xf32, #tpu.memory_space<vmem>>, vector<8x32xf32>
    %cst = arith.constant dense<0.000000e+00> : vector<16x32xf32>
    %2 = tpu.matmul %0, %1, %cst {dimension_numbers = #tpu.dot_dimension_numbers<[1], [0], [0], [1], [0, 0, 1, 1], [], []>} : vector<16x8xf32>, vector<8x32xf32>, vector<16x32xf32> -> vector<16x32xf32>
    %c0_3 = arith.constant 0 : index
    %c0_4 = arith.constant 0 : index
    %3 = vector.load %arg3[%c0_3, %c0_4] : memref<1x32xf32, #tpu.memory_space<vmem>>, vector<1x32xf32>
    %4 = vector.broadcast %3 : vector<1x32xf32> to vector<16x32xf32>
    %5 = arith.addf %2, %4 : vector<16x32xf32>
    %cst_5 = arith.constant 0.000000e+00 : f32
    %6 = vector.broadcast %cst_5 : f32 to vector<16x32xf32>
    %7 = arith.maximumf %5, %6 : vector<16x32xf32>
    %c0_6 = arith.constant 0 : index
    %c0_7 = arith.constant 0 : index
    %8 = vector.load %arg4[%c0_6, %c0_7] : memref<32x1024xf32, #tpu.memory_space<vmem>>, vector<32x1024xf32>
    %cst_8 = arith.constant dense<0.000000e+00> : vector<16x1024xf32>
    %9 = tpu.matmul %7, %8, %cst_8 {dimension_numbers = #tpu.dot_dimension_numbers<[1], [0], [0], [1], [0, 0, 1, 1], [], []>} : vector<16x32xf32>, vector<32x1024xf32>, vector<16x1024xf32> -> vector<16x1024xf32>
    %c0_9 = arith.constant 0 : index
    %c0_10 = arith.constant 0 : index
    %10 = vector.load %arg5[%c0_9, %c0_10] : memref<1x1024xf32, #tpu.memory_space<vmem>>, vector<1x1024xf32>
    %11 = vector.broadcast %10 : vector<1x1024xf32> to vector<16x1024xf32>
    %12 = arith.addf %9, %11 : vector<16x1024xf32>
    %c0_11 = arith.constant 0 : index
    %c0_12 = arith.constant 0 : index
    %13 = vector.load %arg6[%c0_11, %c0_12] : memref<16x1024xf32, #tpu.memory_space<vmem>>, vector<16x1024xf32>
    tpu.vector_store %arg6[%c0_11, %c0_12], %12 {strides = array<i32>} : memref<16x1024xf32, #tpu.memory_space<vmem>>, vector<16x1024xf32>,
    return
  }
  func.func @transform_0(%arg0: i32) -> (i32, i32) {
    %c0_i32 = arith.constant 0 : i32
    %c0_i32_0 = arith.constant 0 : i32
    return %arg0, %c0_i32 : i32, i32
  }
  func.func @transform_1(%arg0: i32) -> (i32, i32) {
    %c0_i32 = arith.constant 0 : i32
    %c0_i32_0 = arith.constant 0 : i32
    %c0_i32_1 = arith.constant 0 : i32
    return %c0_i32, %c0_i32_0 : i32, i32
  }
  func.func @transform_2(%arg0: i32) -> (i32, i32) {
    %c0_i32 = arith.constant 0 : i32
    %c0_i32_0 = arith.constant 0 : i32
    %c0_i32_1 = arith.constant 0 : i32
    return %c0_i32, %c0_i32_0 : i32, i32
  }
  func.func @transform_3(%arg0: i32) -> (i32, i32) {
    %c0_i32 = arith.constant 0 : i32
    %c0_i32_0 = arith.constant 0 : i32
    %c0_i32_1 = arith.constant 0 : i32
    return %c0_i32, %c0_i32_0 : i32, i32
  }
  func.func @transform_4(%arg0: i32) -> (i32, i32) {
    %c0_i32 = arith.constant 0 : i32
    %c0_i32_0 = arith.constant 0 : i32
    %c0_i32_1 = arith.constant 0 : i32
    return %c0_i32, %c0_i32_0 : i32, i32
  }
  func.func @transform_5(%arg0: i32) -> (i32, i32) {
    %c0_i32 = arith.constant 0 : i32
    %c0_i32_0 = arith.constant 0 : i32
    return %arg0, %c0_i32 : i32, i32
  }
}

module attributes {stable_mosaic.version = 11 : i64} {
  func.func @_mp_kernel(%arg0: i32, %arg1: i32, %arg2: memref<8x16xf32, #tpu.memory_space<vmem>>, %arg3: memref<16x32xf32, #tpu.memory_space<vmem>>, %arg4: memref<1x32xf32, #tpu.memory_space<vmem>>, %arg5: memref<16x1xi32, #tpu.memory_space<vmem>>, %arg6: memref<1x16xi32, #tpu.memory_space<vmem>>, %arg7: memref<16x1024xf32, #tpu.memory_space<vmem>>, %arg8: memref<8x1xf32, #tpu.memory_space<vmem>>, %arg9: memref<32x1024xf32, #tpu.memory_space<vmem>>, %arg10: memref<1024x32xf32, #tpu.memory_space<vmem>>, %arg11: memref<32x32xf32, #tpu.memory_space<vmem>>, %arg12: memref<1x32xf32, #tpu.memory_space<vmem>>, %arg13: memref<64x192xf32, #tpu.memory_space<vmem>>, %arg14: memref<1x192xf32, #tpu.memory_space<vmem>>, %arg15: memref<8x32xf32, #tpu.memory_space<vmem>>, %arg16: memref<8x32xf32, #tpu.memory_space<vmem>>, %arg17: memref<8x32xf32, #tpu.memory_space<vmem>>) attributes {dimension_semantics = [#tpu.dimension_semantics<arbitrary>, #tpu.dimension_semantics<arbitrary>], iteration_bounds = array<i64: 2, 1>, scalar_prefetch = 0 : i64, scratch_operands = 2 : i64, tpu.core_type = #tpu.core_type<tc>, window_params = [{pipeline_mode = #tpu.pipeline_mode<synchronous>, transform_indices = @transform_0, window_bounds = array<i64: 8, 16>}, {pipeline_mode = #tpu.pipeline_mode<synchronous>, transform_indices = @transform_1, window_bounds = array<i64: 16, 32>}, {pipeline_mode = #tpu.pipeline_mode<synchronous>, transform_indices = @transform_2, window_bounds = array<i64: 1, 32>}, {transform_indices = @transform_3, window_bounds = array<i64: 16, 1>}, {transform_indices = @transform_4, window_bounds = array<i64: 1, 16>}, {transform_indices = @transform_5, window_bounds = array<i64: 16, 1024>}, {pipeline_mode = #tpu.pipeline_mode<synchronous>, transform_indices = @transform_6, window_bounds = array<i64: 8, 1>}, {pipeline_mode = #tpu.pipeline_mode<synchronous>, transform_indices = @transform_7, window_bounds = array<i64: 32, 1024>}, {pipeline_mode = #tpu.pipeline_mode<synchronous>, transform_indices = @transform_8, window_bounds = array<i64: 1024, 32>}, {pipeline_mode = #tpu.pipeline_mode<synchronous>, transform_indices = @transform_9, window_bounds = array<i64: 32, 32>}, {pipeline_mode = #tpu.pipeline_mode<synchronous>, transform_indices = @transform_10, window_bounds = array<i64: 1, 32>}, {pipeline_mode = #tpu.pipeline_mode<synchronous>, transform_indices = @transform_11, window_bounds = array<i64: 64, 192>}, {pipeline_mode = #tpu.pipeline_mode<synchronous>, transform_indices = @transform_12, window_bounds = array<i64: 1, 192>}, {pipeline_mode = #tpu.pipeline_mode<synchronous>, transform_indices = @transform_13, window_bounds = array<i64: 8, 32>}]} {
    %c0_i32 = arith.constant 0 : i32
    %0 = arith.cmpi eq, %arg0, %c0_i32 : i32
    %c0_i32_0 = arith.constant 0 : i32
    %1 = arith.cmpi eq, %arg1, %c0_i32_0 : i32
    %2 = arith.andi %0, %1 : i1
    %3 = arith.extui %2 : i1 to i32
    %c0_i32_1 = arith.constant 0 : i32
    %4 = arith.cmpi ne, %3, %c0_i32_1 : i32
    scf.if %4 {
      %c0_24 = arith.constant 0 : index
      %c0_25 = arith.constant 0 : index
      %35 = vector.load %arg2[%c0_24, %c0_25] : memref<8x16xf32, #tpu.memory_space<vmem>>, vector<8x16xf32>
      %c0_26 = arith.constant 0 : index
      %c0_27 = arith.constant 0 : index
      %36 = vector.load %arg3[%c0_26, %c0_27] : memref<16x32xf32, #tpu.memory_space<vmem>>, vector<16x32xf32>
      %cst_28 = arith.constant dense<0.000000e+00> : vector<8x32xf32>
      %37 = tpu.matmul %35, %36, %cst_28 {dimension_numbers = #tpu.dot_dimension_numbers<[1], [0], [0], [1], [0, 0, 1, 1], [], []>} : vector<8x16xf32>, vector<16x32xf32>, vector<8x32xf32> -> vector<8x32xf32>
      %c0_29 = arith.constant 0 : index
      %c0_30 = arith.constant 0 : index
      %38 = vector.load %arg4[%c0_29, %c0_30] : memref<1x32xf32, #tpu.memory_space<vmem>>, vector<1x32xf32>
      %39 = vector.broadcast %38 : vector<1x32xf32> to vector<8x32xf32>
      %40 = arith.addf %37, %39 : vector<8x32xf32>
      %cst_31 = arith.constant 0.000000e+00 : f32
      %41 = vector.broadcast %cst_31 : f32 to vector<8x32xf32>
      %42 = arith.maximumf %40, %41 : vector<8x32xf32>
      %c0_32 = arith.constant 0 : index
      %c0_33 = arith.constant 0 : index
      %43 = vector.load %arg16[%c0_32, %c0_33] : memref<8x32xf32, #tpu.memory_space<vmem>>, vector<8x32xf32>
      tpu.vector_store %arg16[%c0_32, %c0_33], %42 {strides = array<i32>} : memref<8x32xf32, #tpu.memory_space<vmem>>, vector<8x32xf32>,
    } else {
    }
    %c0_i32_2 = arith.constant 0 : i32
    %5 = arith.cmpi eq, %arg1, %c0_i32_2 : i32
    %6 = arith.extui %5 : i1 to i32
    %c0_i32_3 = arith.constant 0 : i32
    %7 = arith.cmpi ne, %6, %c0_i32_3 : i32
    scf.if %7 {
      %cst_24 = arith.constant 0.000000e+00 : f32
      %35 = vector.broadcast %cst_24 : f32 to vector<8x32xf32>
      %c0_25 = arith.constant 0 : index
      %c0_26 = arith.constant 0 : index
      %36 = vector.load %arg17[%c0_25, %c0_26] : memref<8x32xf32, #tpu.memory_space<vmem>>, vector<8x32xf32>
      tpu.vector_store %arg17[%c0_25, %c0_26], %35 {strides = array<i32>} : memref<8x32xf32, #tpu.memory_space<vmem>>, vector<8x32xf32>,
    } else {
    }
    %c0 = arith.constant 0 : index
    %c0_4 = arith.constant 0 : index
    %8 = vector.load %arg16[%c0, %c0_4] : memref<8x32xf32, #tpu.memory_space<vmem>>, vector<8x32xf32>
    %c0_5 = arith.constant 0 : index
    %c0_6 = arith.constant 0 : index
    %9 = vector.load %arg5[%c0_5, %c0_6] : memref<16x1xi32, #tpu.memory_space<vmem>>, vector<16x1xi32>
    %10 = tpu.iota {dimensions = array<i32: 1>} : vector<16x8xi32>
    %11 = vector.broadcast %9 : vector<16x1xi32> to vector<16x8xi32>
    %12 = arith.cmpi eq, %11, %10 : vector<16x8xi32>
    %13 = arith.extui %12 : vector<16x8xi1> to vector<16x8xi32>
    %14 = arith.sitofp %13 : vector<16x8xi32> to vector<16x8xf32>
    %cst = arith.constant dense<0.000000e+00> : vector<16x32xf32>
    %15 = tpu.matmul %14, %8, %cst {dimension_numbers = #tpu.dot_dimension_numbers<[1], [0], [0], [1], [0, 0, 1, 1], [], []>} : vector<16x8xf32>, vector<8x32xf32>, vector<16x32xf32> -> vector<16x32xf32>
    %c0_7 = arith.constant 0 : index
    %c0_8 = arith.constant 0 : index
    %16 = vector.load %arg9[%c0_7, %c0_8] : memref<32x1024xf32, #tpu.memory_space<vmem>>, vector<32x1024xf32>
    %cst_9 = arith.constant dense<0.000000e+00> : vector<16x1024xf32>
    %17 = tpu.matmul %15, %16, %cst_9 {dimension_numbers = #tpu.dot_dimension_numbers<[1], [0], [0], [1], [0, 0, 1, 1], [], []>} : vector<16x32xf32>, vector<32x1024xf32>, vector<16x1024xf32> -> vector<16x1024xf32>
    %c0_10 = arith.constant 0 : index
    %c0_11 = arith.constant 0 : index
    %18 = vector.load %arg7[%c0_10, %c0_11] : memref<16x1024xf32, #tpu.memory_space<vmem>>, vector<16x1024xf32>
    %19 = arith.mulf %17, %18 : vector<16x1024xf32>
    %c0_12 = arith.constant 0 : index
    %c0_13 = arith.constant 0 : index
    %20 = vector.load %arg10[%c0_12, %c0_13] : memref<1024x32xf32, #tpu.memory_space<vmem>>, vector<1024x32xf32>
    %cst_14 = arith.constant dense<0.000000e+00> : vector<16x32xf32>
    %21 = tpu.matmul %19, %20, %cst_14 {dimension_numbers = #tpu.dot_dimension_numbers<[1], [0], [0], [1], [0, 0, 1, 1], [], []>} : vector<16x1024xf32>, vector<1024x32xf32>, vector<16x32xf32> -> vector<16x32xf32>
    %22 = tpu.iota {dimensions = array<i32: 0>} : vector<8x16xi32>
    %c0_15 = arith.constant 0 : index
    %c0_16 = arith.constant 0 : index
    %23 = vector.load %arg6[%c0_15, %c0_16] : memref<1x16xi32, #tpu.memory_space<vmem>>, vector<1x16xi32>
    %24 = vector.broadcast %23 : vector<1x16xi32> to vector<8x16xi32>
    %25 = arith.cmpi eq, %22, %24 : vector<8x16xi32>
    %26 = arith.extui %25 : vector<8x16xi1> to vector<8x16xi32>
    %27 = arith.sitofp %26 : vector<8x16xi32> to vector<8x16xf32>
    %c0_17 = arith.constant 0 : index
    %c0_18 = arith.constant 0 : index
    %28 = vector.load %arg17[%c0_17, %c0_18] : memref<8x32xf32, #tpu.memory_space<vmem>>, vector<8x32xf32>
    %cst_19 = arith.constant dense<0.000000e+00> : vector<8x32xf32>
    %29 = tpu.matmul %27, %21, %cst_19 {dimension_numbers = #tpu.dot_dimension_numbers<[1], [0], [0], [1], [0, 0, 1, 1], [], []>} : vector<8x16xf32>, vector<16x32xf32>, vector<8x32xf32> -> vector<8x32xf32>
    %30 = arith.addf %28, %29 : vector<8x32xf32>
    %c0_20 = arith.constant 0 : index
    %c0_21 = arith.constant 0 : index
    %31 = vector.load %arg17[%c0_20, %c0_21] : memref<8x32xf32, #tpu.memory_space<vmem>>, vector<8x32xf32>
    tpu.vector_store %arg17[%c0_20, %c0_21], %30 {strides = array<i32>} : memref<8x32xf32, #tpu.memory_space<vmem>>, vector<8x32xf32>,
    %c0_i32_22 = arith.constant 0 : i32
    %32 = arith.cmpi eq, %arg1, %c0_i32_22 : i32
    %33 = arith.extui %32 : i1 to i32
    %c0_i32_23 = arith.constant 0 : i32
    %34 = arith.cmpi ne, %33, %c0_i32_23 : i32
    scf.if %34 {
      %c0_24 = arith.constant 0 : index
      %c0_25 = arith.constant 0 : index
      %35 = vector.load %arg17[%c0_24, %c0_25] : memref<8x32xf32, #tpu.memory_space<vmem>>, vector<8x32xf32>
      %c0_26 = arith.constant 0 : index
      %c0_27 = arith.constant 0 : index
      %36 = vector.load %arg8[%c0_26, %c0_27] : memref<8x1xf32, #tpu.memory_space<vmem>>, vector<8x1xf32>
      %37 = vector.broadcast %36 : vector<8x1xf32> to vector<8x32xf32>
      %38 = arith.mulf %35, %37 : vector<8x32xf32>
      %c0_28 = arith.constant 0 : index
      %c0_29 = arith.constant 0 : index
      %39 = vector.load %arg11[%c0_28, %c0_29] : memref<32x32xf32, #tpu.memory_space<vmem>>, vector<32x32xf32>
      %cst_30 = arith.constant dense<0.000000e+00> : vector<8x32xf32>
      %40 = tpu.matmul %8, %39, %cst_30 {dimension_numbers = #tpu.dot_dimension_numbers<[1], [0], [0], [1], [0, 0, 1, 1], [], []>} : vector<8x32xf32>, vector<32x32xf32>, vector<8x32xf32> -> vector<8x32xf32>
      %41 = arith.addf %38, %40 : vector<8x32xf32>
      %c0_31 = arith.constant 0 : index
      %c0_32 = arith.constant 0 : index
      %42 = vector.load %arg12[%c0_31, %c0_32] : memref<1x32xf32, #tpu.memory_space<vmem>>, vector<1x32xf32>
      %43 = vector.broadcast %42 : vector<1x32xf32> to vector<8x32xf32>
      %44 = arith.addf %41, %43 : vector<8x32xf32>
      %cst_33 = arith.constant 0.000000e+00 : f32
      %45 = vector.broadcast %cst_33 : f32 to vector<8x32xf32>
      %46 = arith.maximumf %44, %45 : vector<8x32xf32>
      %47 = tpu.concatenate %46, %8 in 1 : vector<8x32xf32>, vector<8x32xf32> -> vector<8x64xf32>
      %c0_34 = arith.constant 0 : index
      %c0_35 = arith.constant 0 : index
      %48 = vector.load %arg13[%c0_34, %c0_35] : memref<64x192xf32, #tpu.memory_space<vmem>>, vector<64x192xf32>
      %cst_36 = arith.constant dense<0.000000e+00> : vector<8x192xf32>
      %49 = tpu.matmul %47, %48, %cst_36 {dimension_numbers = #tpu.dot_dimension_numbers<[1], [0], [0], [1], [0, 0, 1, 1], [], []>} : vector<8x64xf32>, vector<64x192xf32>, vector<8x192xf32> -> vector<8x192xf32>
      %c0_37 = arith.constant 0 : index
      %c0_38 = arith.constant 0 : index
      %50 = vector.load %arg14[%c0_37, %c0_38] : memref<1x192xf32, #tpu.memory_space<vmem>>, vector<1x192xf32>
      %51 = vector.broadcast %50 : vector<1x192xf32> to vector<8x192xf32>
      %52 = arith.addf %49, %51 : vector<8x192xf32>
      %53 = vector.extract_strided_slice %52 {offsets = [0, 0], sizes = [8, 96], strides = [1, 1]} : vector<8x192xf32> to vector<8x96xf32>
      %54 = vector.extract_strided_slice %52 {offsets = [0, 96], sizes = [8, 96], strides = [1, 1]} : vector<8x192xf32> to vector<8x96xf32>
      %55 = vector.extract_strided_slice %53 {offsets = [0, 0], sizes = [8, 32], strides = [1, 1]} : vector<8x96xf32> to vector<8x32xf32>
      %56 = vector.extract_strided_slice %54 {offsets = [0, 0], sizes = [8, 32], strides = [1, 1]} : vector<8x96xf32> to vector<8x32xf32>
      %57 = arith.addf %55, %56 : vector<8x32xf32>
      %58 = arith.negf %57 : vector<8x32xf32>
      %59 = math.exp %58 : vector<8x32xf32>
      %cst_39 = arith.constant 1.000000e+00 : f32
      %60 = vector.broadcast %cst_39 : f32 to vector<8x32xf32>
      %61 = arith.addf %60, %59 : vector<8x32xf32>
      %62 = arith.divf %60, %61 : vector<8x32xf32>
      %63 = vector.extract_strided_slice %53 {offsets = [0, 32], sizes = [8, 32], strides = [1, 1]} : vector<8x96xf32> to vector<8x32xf32>
      %64 = vector.extract_strided_slice %54 {offsets = [0, 32], sizes = [8, 32], strides = [1, 1]} : vector<8x96xf32> to vector<8x32xf32>
      %65 = arith.addf %63, %64 : vector<8x32xf32>
      %66 = arith.negf %65 : vector<8x32xf32>
      %67 = math.exp %66 : vector<8x32xf32>
      %cst_40 = arith.constant 1.000000e+00 : f32
      %68 = vector.broadcast %cst_40 : f32 to vector<8x32xf32>
      %69 = arith.addf %68, %67 : vector<8x32xf32>
      %70 = arith.divf %68, %69 : vector<8x32xf32>
      %71 = vector.extract_strided_slice %53 {offsets = [0, 64], sizes = [8, 32], strides = [1, 1]} : vector<8x96xf32> to vector<8x32xf32>
      %72 = vector.extract_strided_slice %54 {offsets = [0, 64], sizes = [8, 32], strides = [1, 1]} : vector<8x96xf32> to vector<8x32xf32>
      %73 = arith.mulf %62, %72 : vector<8x32xf32>
      %74 = arith.addf %71, %73 : vector<8x32xf32>
      %75 = math.tanh %74 : vector<8x32xf32>
      %cst_41 = arith.constant 1.000000e+00 : f32
      %76 = vector.broadcast %cst_41 : f32 to vector<8x32xf32>
      %77 = arith.subf %76, %70 : vector<8x32xf32>
      %78 = arith.mulf %77, %75 : vector<8x32xf32>
      %79 = arith.mulf %70, %8 : vector<8x32xf32>
      %80 = arith.addf %78, %79 : vector<8x32xf32>
      %c0_42 = arith.constant 0 : index
      %c0_43 = arith.constant 0 : index
      %81 = vector.load %arg16[%c0_42, %c0_43] : memref<8x32xf32, #tpu.memory_space<vmem>>, vector<8x32xf32>
      tpu.vector_store %arg16[%c0_42, %c0_43], %80 {strides = array<i32>} : memref<8x32xf32, #tpu.memory_space<vmem>>, vector<8x32xf32>,
      %c0_44 = arith.constant 0 : index
      %c0_45 = arith.constant 0 : index
      %82 = vector.load %arg15[%c0_44, %c0_45] : memref<8x32xf32, #tpu.memory_space<vmem>>, vector<8x32xf32>
      tpu.vector_store %arg15[%c0_44, %c0_45], %80 {strides = array<i32>} : memref<8x32xf32, #tpu.memory_space<vmem>>, vector<8x32xf32>,
    } else {
    }
    return
  }
  func.func @transform_0(%arg0: i32, %arg1: i32) -> (i32, i32) {
    %c0_i32 = arith.constant 0 : i32
    %c0_i32_0 = arith.constant 0 : i32
    %c0_i32_1 = arith.constant 0 : i32
    return %c0_i32, %c0_i32_0 : i32, i32
  }
  func.func @transform_1(%arg0: i32, %arg1: i32) -> (i32, i32) {
    %c0_i32 = arith.constant 0 : i32
    %c0_i32_0 = arith.constant 0 : i32
    %c0_i32_1 = arith.constant 0 : i32
    return %c0_i32, %c0_i32_0 : i32, i32
  }
  func.func @transform_2(%arg0: i32, %arg1: i32) -> (i32, i32) {
    %c0_i32 = arith.constant 0 : i32
    %c0_i32_0 = arith.constant 0 : i32
    %c0_i32_1 = arith.constant 0 : i32
    return %c0_i32, %c0_i32_0 : i32, i32
  }
  func.func @transform_3(%arg0: i32, %arg1: i32) -> (i32, i32) {
    %c0_i32 = arith.constant 0 : i32
    %c0_i32_0 = arith.constant 0 : i32
    return %arg1, %c0_i32 : i32, i32
  }
  func.func @transform_4(%arg0: i32, %arg1: i32) -> (i32, i32) {
    %c0_i32 = arith.constant 0 : i32
    %c0_i32_0 = arith.constant 0 : i32
    return %c0_i32, %arg1 : i32, i32
  }
  func.func @transform_5(%arg0: i32, %arg1: i32) -> (i32, i32) {
    %c0_i32 = arith.constant 0 : i32
    %c0_i32_0 = arith.constant 0 : i32
    return %arg1, %c0_i32 : i32, i32
  }
  func.func @transform_6(%arg0: i32, %arg1: i32) -> (i32, i32) {
    %c0_i32 = arith.constant 0 : i32
    %c0_i32_0 = arith.constant 0 : i32
    %c0_i32_1 = arith.constant 0 : i32
    return %c0_i32, %c0_i32_0 : i32, i32
  }
  func.func @transform_7(%arg0: i32, %arg1: i32) -> (i32, i32) {
    %c0_i32 = arith.constant 0 : i32
    %c0_i32_0 = arith.constant 0 : i32
    %c0_i32_1 = arith.constant 0 : i32
    return %c0_i32, %c0_i32_0 : i32, i32
  }
  func.func @transform_8(%arg0: i32, %arg1: i32) -> (i32, i32) {
    %c0_i32 = arith.constant 0 : i32
    %c0_i32_0 = arith.constant 0 : i32
    %c0_i32_1 = arith.constant 0 : i32
    return %c0_i32, %c0_i32_0 : i32, i32
  }
  func.func @transform_9(%arg0: i32, %arg1: i32) -> (i32, i32) {
    %c0_i32 = arith.constant 0 : i32
    %c0_i32_0 = arith.constant 0 : i32
    %c0_i32_1 = arith.constant 0 : i32
    return %c0_i32, %c0_i32_0 : i32, i32
  }
  func.func @transform_10(%arg0: i32, %arg1: i32) -> (i32, i32) {
    %c0_i32 = arith.constant 0 : i32
    %c0_i32_0 = arith.constant 0 : i32
    %c0_i32_1 = arith.constant 0 : i32
    return %c0_i32, %c0_i32_0 : i32, i32
  }
  func.func @transform_11(%arg0: i32, %arg1: i32) -> (i32, i32) {
    %c0_i32 = arith.constant 0 : i32
    %c0_i32_0 = arith.constant 0 : i32
    %c0_i32_1 = arith.constant 0 : i32
    return %c0_i32, %c0_i32_0 : i32, i32
  }
  func.func @transform_12(%arg0: i32, %arg1: i32) -> (i32, i32) {
    %c0_i32 = arith.constant 0 : i32
    %c0_i32_0 = arith.constant 0 : i32
    %c0_i32_1 = arith.constant 0 : i32
    return %c0_i32, %c0_i32_0 : i32, i32
  }
  func.func @transform_13(%arg0: i32, %arg1: i32) -> (i32, i32) {
    %c0_i32 = arith.constant 0 : i32
    %c0_i32_0 = arith.constant 0 : i32
    %c0_i32_1 = arith.constant 0 : i32
    return %c0_i32, %c0_i32_0 : i32, i32
  }
}

module attributes {stable_mosaic.version = 11 : i64} {
  func.func @_s2s_readout_kernel(%arg0: memref<8x32xf32, #tpu.memory_space<vmem>>, %arg1: memref<32x8xf32, #tpu.memory_space<vmem>>, %arg2: memref<2x8xf32, #tpu.memory_space<vmem>>, %arg3: memref<2x4xf32, #tpu.memory_space<vmem>>, %arg4: memref<32x128xf32, #tpu.memory_space<vmem>>, %arg5: memref<32x128xf32, #tpu.memory_space<vmem>>, %arg6: memref<1x128xf32, #tpu.memory_space<vmem>>, %arg7: memref<32x32xf32, #tpu.memory_space<vmem>>, %arg8: memref<32x32xf32, #tpu.memory_space<vmem>>, %arg9: memref<4x32xf32, #tpu.memory_space<vmem>>, %arg10: memref<1x32xf32, #tpu.memory_space<vmem>>, %arg11: memref<32x6xf32, #tpu.memory_space<vmem>>, %arg12: memref<1x6xf32, #tpu.memory_space<vmem>>, %arg13: memref<2x6xf32, #tpu.memory_space<vmem>>) attributes {dimension_semantics = [], scalar_prefetch = 0 : i64, scratch_operands = 0 : i64, tpu.core_type = #tpu.core_type<tc>} {
    %c0 = arith.constant 0 : index
    %c0_0 = arith.constant 0 : index
    %0 = vector.load %arg0[%c0, %c0_0] : memref<8x32xf32, #tpu.memory_space<vmem>>, vector<8x32xf32>
    %c0_1 = arith.constant 0 : index
    %c0_2 = arith.constant 0 : index
    %1 = vector.load %arg1[%c0_1, %c0_2] : memref<32x8xf32, #tpu.memory_space<vmem>>, vector<32x8xf32>
    %c0_3 = arith.constant 0 : index
    %c0_4 = arith.constant 0 : index
    %2 = vector.load %arg2[%c0_3, %c0_4] : memref<2x8xf32, #tpu.memory_space<vmem>>, vector<2x8xf32>
    %c0_5 = arith.constant 0 : index
    %c0_6 = arith.constant 0 : index
    %3 = vector.load %arg4[%c0_5, %c0_6] : memref<32x128xf32, #tpu.memory_space<vmem>>, vector<32x128xf32>
    %c0_7 = arith.constant 0 : index
    %c0_8 = arith.constant 0 : index
    %4 = vector.load %arg5[%c0_7, %c0_8] : memref<32x128xf32, #tpu.memory_space<vmem>>, vector<32x128xf32>
    %c0_9 = arith.constant 0 : index
    %c0_10 = arith.constant 0 : index
    %5 = vector.load %arg6[%c0_9, %c0_10] : memref<1x128xf32, #tpu.memory_space<vmem>>, vector<1x128xf32>
    %cst = arith.constant 0.000000e+00 : f32
    %6 = vector.broadcast %cst : f32 to vector<2x8xf32>
    %7 = arith.cmpf ogt, %2, %6 : vector<2x8xf32>
    %cst_11 = arith.constant 0.000000e+00 : f32
    %cst_12 = arith.constant -1.000000e+30 : f32
    %8 = vector.broadcast %cst_11 : f32 to vector<2x8xf32>
    %9 = vector.broadcast %cst_12 : f32 to vector<2x8xf32>
    %10 = arith.select %7, %8, %9 : vector<2x8xi1>, vector<2x8xf32>
    %cst_13 = arith.constant 0.000000e+00 : f32
    %11 = vector.broadcast %cst_13 : f32 to vector<2x32xf32>
    %c0_i32 = arith.constant 0 : i32
    %cst_14 = arith.constant dense<0.000000e+00> : vector<2x128xf32>
    %12 = tpu.matmul %11, %3, %cst_14 {dimension_numbers = #tpu.dot_dimension_numbers<[1], [0], [0], [1], [0, 0, 1, 1], [], []>} : vector<2x32xf32>, vector<32x128xf32>, vector<2x128xf32> -> vector<2x128xf32>
    %cst_15 = arith.constant dense<0.000000e+00> : vector<2x128xf32>
    %13 = tpu.matmul %11, %4, %cst_15 {dimension_numbers = #tpu.dot_dimension_numbers<[1], [0], [0], [1], [0, 0, 1, 1], [], []>} : vector<2x32xf32>, vector<32x128xf32>, vector<2x128xf32> -> vector<2x128xf32>
    %14 = arith.addf %12, %13 : vector<2x128xf32>
    %15 = vector.broadcast %5 : vector<1x128xf32> to vector<2x128xf32>
    %16 = arith.addf %14, %15 : vector<2x128xf32>
    %17 = vector.extract_strided_slice %16 {offsets = [0, 0], sizes = [2, 32], strides = [1, 1]} : vector<2x128xf32> to vector<2x32xf32>
    %18 = arith.negf %17 : vector<2x32xf32>
    %19 = math.exp %18 : vector<2x32xf32>
    %cst_16 = arith.constant 1.000000e+00 : f32
    %20 = vector.broadcast %cst_16 : f32 to vector<2x32xf32>
    %21 = arith.addf %20, %19 : vector<2x32xf32>
    %22 = arith.divf %20, %21 : vector<2x32xf32>
    %23 = vector.extract_strided_slice %16 {offsets = [0, 32], sizes = [2, 32], strides = [1, 1]} : vector<2x128xf32> to vector<2x32xf32>
    %24 = arith.negf %23 : vector<2x32xf32>
    %25 = math.exp %24 : vector<2x32xf32>
    %cst_17 = arith.constant 1.000000e+00 : f32
    %26 = vector.broadcast %cst_17 : f32 to vector<2x32xf32>
    %27 = arith.addf %26, %25 : vector<2x32xf32>
    %28 = arith.divf %26, %27 : vector<2x32xf32>
    %29 = vector.extract_strided_slice %16 {offsets = [0, 64], sizes = [2, 32], strides = [1, 1]} : vector<2x128xf32> to vector<2x32xf32>
    %30 = math.tanh %29 : vector<2x32xf32>
    %31 = vector.extract_strided_slice %16 {offsets = [0, 96], sizes = [2, 32], strides = [1, 1]} : vector<2x128xf32> to vector<2x32xf32>
    %32 = arith.negf %31 : vector<2x32xf32>
    %33 = math.exp %32 : vector<2x32xf32>
    %cst_18 = arith.constant 1.000000e+00 : f32
    %34 = vector.broadcast %cst_18 : f32 to vector<2x32xf32>
    %35 = arith.addf %34, %33 : vector<2x32xf32>
    %36 = arith.divf %34, %35 : vector<2x32xf32>
    %37 = arith.mulf %28, %11 : vector<2x32xf32>
    %38 = arith.mulf %22, %30 : vector<2x32xf32>
    %39 = arith.addf %37, %38 : vector<2x32xf32>
    %40 = math.tanh %39 : vector<2x32xf32>
    %41 = arith.mulf %36, %40 : vector<2x32xf32>
    %cst_19 = arith.constant dense<0.000000e+00> : vector<2x8xf32>
    %42 = tpu.matmul %41, %1, %cst_19 {dimension_numbers = #tpu.dot_dimension_numbers<[1], [0], [0], [1], [0, 0, 1, 1], [], []>} : vector<2x32xf32>, vector<32x8xf32>, vector<2x8xf32> -> vector<2x8xf32>
    %43 = arith.addf %42, %10 : vector<2x8xf32>
    %cst_20 = arith.constant dense<0xFF800000> : vector<2xf32>
    %44 = vector.multi_reduction <maximumf>, %43, %cst_20 [1] : vector<2x8xf32> to vector<2xf32>
    %45 = vector.shape_cast %44 : vector<2xf32> to vector<2x1xf32>
    %46 = vector.broadcast %45 : vector<2x1xf32> to vector<2x8xf32>
    %47 = arith.subf %43, %46 : vector<2x8xf32>
    %48 = math.exp %47 : vector<2x8xf32>
    %49 = arith.mulf %2, %48 : vector<2x8xf32>
    %cst_21 = arith.constant dense<0.000000e+00> : vector<2xf32>
    %50 = vector.multi_reduction <add>, %49, %cst_21 [1] : vector<2x8xf32> to vector<2xf32>
    %51 = vector.shape_cast %50 : vector<2xf32> to vector<2x1xf32>
    %cst_22 = arith.constant 9.99999996E-13 : f32
    %52 = vector.broadcast %cst_22 : f32 to vector<2x1xf32>
    %53 = arith.maximumf %51, %52 : vector<2x1xf32>
    %54 = tpu.reciprocal %53 {approx = true} : vector<2x1xf32> -> vector<2x1xf32>
    %55 = vector.broadcast %54 : vector<2x1xf32> to vector<2x8xf32>
    %56 = arith.mulf %49, %55 : vector<2x8xf32>
    %cst_23 = arith.constant dense<0.000000e+00> : vector<2x32xf32>
    %57 = tpu.matmul %56, %0, %cst_23 {dimension_numbers = #tpu.dot_dimension_numbers<[1], [0], [0], [1], [0, 0, 1, 1], [], []>} : vector<2x8xf32>, vector<8x32xf32>, vector<2x32xf32> -> vector<2x32xf32>
    %c1_i32 = arith.constant 1 : i32
    %cst_24 = arith.constant dense<0.000000e+00> : vector<2x128xf32>
    %58 = tpu.matmul %41, %3, %cst_24 {dimension_numbers = #tpu.dot_dimension_numbers<[1], [0], [0], [1], [0, 0, 1, 1], [], []>} : vector<2x32xf32>, vector<32x128xf32>, vector<2x128xf32> -> vector<2x128xf32>
    %cst_25 = arith.constant dense<0.000000e+00> : vector<2x128xf32>
    %59 = tpu.matmul %57, %4, %cst_25 {dimension_numbers = #tpu.dot_dimension_numbers<[1], [0], [0], [1], [0, 0, 1, 1], [], []>} : vector<2x32xf32>, vector<32x128xf32>, vector<2x128xf32> -> vector<2x128xf32>
    %60 = arith.addf %58, %59 : vector<2x128xf32>
    %61 = vector.broadcast %5 : vector<1x128xf32> to vector<2x128xf32>
    %62 = arith.addf %60, %61 : vector<2x128xf32>
    %63 = vector.extract_strided_slice %62 {offsets = [0, 0], sizes = [2, 32], strides = [1, 1]} : vector<2x128xf32> to vector<2x32xf32>
    %64 = arith.negf %63 : vector<2x32xf32>
    %65 = math.exp %64 : vector<2x32xf32>
    %cst_26 = arith.constant 1.000000e+00 : f32
    %66 = vector.broadcast %cst_26 : f32 to vector<2x32xf32>
    %67 = arith.addf %66, %65 : vector<2x32xf32>
    %68 = arith.divf %66, %67 : vector<2x32xf32>
    %69 = vector.extract_strided_slice %62 {offsets = [0, 32], sizes = [2, 32], strides = [1, 1]} : vector<2x128xf32> to vector<2x32xf32>
    %70 = arith.negf %69 : vector<2x32xf32>
    %71 = math.exp %70 : vector<2x32xf32>
    %cst_27 = arith.constant 1.000000e+00 : f32
    %72 = vector.broadcast %cst_27 : f32 to vector<2x32xf32>
    %73 = arith.addf %72, %71 : vector<2x32xf32>
    %74 = arith.divf %72, %73 : vector<2x32xf32>
    %75 = vector.extract_strided_slice %62 {offsets = [0, 64], sizes = [2, 32], strides = [1, 1]} : vector<2x128xf32> to vector<2x32xf32>
    %76 = math.tanh %75 : vector<2x32xf32>
    %77 = vector.extract_strided_slice %62 {offsets = [0, 96], sizes = [2, 32], strides = [1, 1]} : vector<2x128xf32> to vector<2x32xf32>
    %78 = arith.negf %77 : vector<2x32xf32>
    %79 = math.exp %78 : vector<2x32xf32>
    %cst_28 = arith.constant 1.000000e+00 : f32
    %80 = vector.broadcast %cst_28 : f32 to vector<2x32xf32>
    %81 = arith.addf %80, %79 : vector<2x32xf32>
    %82 = arith.divf %80, %81 : vector<2x32xf32>
    %83 = arith.mulf %74, %39 : vector<2x32xf32>
    %84 = arith.mulf %68, %76 : vector<2x32xf32>
    %85 = arith.addf %83, %84 : vector<2x32xf32>
    %86 = math.tanh %85 : vector<2x32xf32>
    %87 = arith.mulf %82, %86 : vector<2x32xf32>
    %cst_29 = arith.constant dense<0.000000e+00> : vector<2x8xf32>
    %88 = tpu.matmul %87, %1, %cst_29 {dimension_numbers = #tpu.dot_dimension_numbers<[1], [0], [0], [1], [0, 0, 1, 1], [], []>} : vector<2x32xf32>, vector<32x8xf32>, vector<2x8xf32> -> vector<2x8xf32>
    %89 = arith.addf %88, %10 : vector<2x8xf32>
    %cst_30 = arith.constant dense<0xFF800000> : vector<2xf32>
    %90 = vector.multi_reduction <maximumf>, %89, %cst_30 [1] : vector<2x8xf32> to vector<2xf32>
    %91 = vector.shape_cast %90 : vector<2xf32> to vector<2x1xf32>
    %92 = vector.broadcast %91 : vector<2x1xf32> to vector<2x8xf32>
    %93 = arith.subf %89, %92 : vector<2x8xf32>
    %94 = math.exp %93 : vector<2x8xf32>
    %95 = arith.mulf %2, %94 : vector<2x8xf32>
    %cst_31 = arith.constant dense<0.000000e+00> : vector<2xf32>
    %96 = vector.multi_reduction <add>, %95, %cst_31 [1] : vector<2x8xf32> to vector<2xf32>
    %97 = vector.shape_cast %96 : vector<2xf32> to vector<2x1xf32>
    %cst_32 = arith.constant 9.99999996E-13 : f32
    %98 = vector.broadcast %cst_32 : f32 to vector<2x1xf32>
    %99 = arith.maximumf %97, %98 : vector<2x1xf32>
    %100 = tpu.reciprocal %99 {approx = true} : vector<2x1xf32> -> vector<2x1xf32>
    %101 = vector.broadcast %100 : vector<2x1xf32> to vector<2x8xf32>
    %102 = arith.mulf %95, %101 : vector<2x8xf32>
    %cst_33 = arith.constant dense<0.000000e+00> : vector<2x32xf32>
    %103 = tpu.matmul %102, %0, %cst_33 {dimension_numbers = #tpu.dot_dimension_numbers<[1], [0], [0], [1], [0, 0, 1, 1], [], []>} : vector<2x8xf32>, vector<8x32xf32>, vector<2x32xf32> -> vector<2x32xf32>
    %c2_i32 = arith.constant 2 : i32
    %cst_34 = arith.constant dense<0.000000e+00> : vector<2x128xf32>
    %104 = tpu.matmul %87, %3, %cst_34 {dimension_numbers = #tpu.dot_dimension_numbers<[1], [0], [0], [1], [0, 0, 1, 1], [], []>} : vector<2x32xf32>, vector<32x128xf32>, vector<2x128xf32> -> vector<2x128xf32>
    %cst_35 = arith.constant dense<0.000000e+00> : vector<2x128xf32>
    %105 = tpu.matmul %103, %4, %cst_35 {dimension_numbers = #tpu.dot_dimension_numbers<[1], [0], [0], [1], [0, 0, 1, 1], [], []>} : vector<2x32xf32>, vector<32x128xf32>, vector<2x128xf32> -> vector<2x128xf32>
    %106 = arith.addf %104, %105 : vector<2x128xf32>
    %107 = vector.broadcast %5 : vector<1x128xf32> to vector<2x128xf32>
    %108 = arith.addf %106, %107 : vector<2x128xf32>
    %109 = vector.extract_strided_slice %108 {offsets = [0, 0], sizes = [2, 32], strides = [1, 1]} : vector<2x128xf32> to vector<2x32xf32>
    %110 = arith.negf %109 : vector<2x32xf32>
    %111 = math.exp %110 : vector<2x32xf32>
    %cst_36 = arith.constant 1.000000e+00 : f32
    %112 = vector.broadcast %cst_36 : f32 to vector<2x32xf32>
    %113 = arith.addf %112, %111 : vector<2x32xf32>
    %114 = arith.divf %112, %113 : vector<2x32xf32>
    %115 = vector.extract_strided_slice %108 {offsets = [0, 32], sizes = [2, 32], strides = [1, 1]} : vector<2x128xf32> to vector<2x32xf32>
    %116 = arith.negf %115 : vector<2x32xf32>
    %117 = math.exp %116 : vector<2x32xf32>
    %cst_37 = arith.constant 1.000000e+00 : f32
    %118 = vector.broadcast %cst_37 : f32 to vector<2x32xf32>
    %119 = arith.addf %118, %117 : vector<2x32xf32>
    %120 = arith.divf %118, %119 : vector<2x32xf32>
    %121 = vector.extract_strided_slice %108 {offsets = [0, 64], sizes = [2, 32], strides = [1, 1]} : vector<2x128xf32> to vector<2x32xf32>
    %122 = math.tanh %121 : vector<2x32xf32>
    %123 = vector.extract_strided_slice %108 {offsets = [0, 96], sizes = [2, 32], strides = [1, 1]} : vector<2x128xf32> to vector<2x32xf32>
    %124 = arith.negf %123 : vector<2x32xf32>
    %125 = math.exp %124 : vector<2x32xf32>
    %cst_38 = arith.constant 1.000000e+00 : f32
    %126 = vector.broadcast %cst_38 : f32 to vector<2x32xf32>
    %127 = arith.addf %126, %125 : vector<2x32xf32>
    %128 = arith.divf %126, %127 : vector<2x32xf32>
    %129 = arith.mulf %120, %85 : vector<2x32xf32>
    %130 = arith.mulf %114, %122 : vector<2x32xf32>
    %131 = arith.addf %129, %130 : vector<2x32xf32>
    %132 = math.tanh %131 : vector<2x32xf32>
    %133 = arith.mulf %128, %132 : vector<2x32xf32>
    %cst_39 = arith.constant dense<0.000000e+00> : vector<2x8xf32>
    %134 = tpu.matmul %133, %1, %cst_39 {dimension_numbers = #tpu.dot_dimension_numbers<[1], [0], [0], [1], [0, 0, 1, 1], [], []>} : vector<2x32xf32>, vector<32x8xf32>, vector<2x8xf32> -> vector<2x8xf32>
    %135 = arith.addf %134, %10 : vector<2x8xf32>
    %cst_40 = arith.constant dense<0xFF800000> : vector<2xf32>
    %136 = vector.multi_reduction <maximumf>, %135, %cst_40 [1] : vector<2x8xf32> to vector<2xf32>
    %137 = vector.shape_cast %136 : vector<2xf32> to vector<2x1xf32>
    %138 = vector.broadcast %137 : vector<2x1xf32> to vector<2x8xf32>
    %139 = arith.subf %135, %138 : vector<2x8xf32>
    %140 = math.exp %139 : vector<2x8xf32>
    %141 = arith.mulf %2, %140 : vector<2x8xf32>
    %cst_41 = arith.constant dense<0.000000e+00> : vector<2xf32>
    %142 = vector.multi_reduction <add>, %141, %cst_41 [1] : vector<2x8xf32> to vector<2xf32>
    %143 = vector.shape_cast %142 : vector<2xf32> to vector<2x1xf32>
    %cst_42 = arith.constant 9.99999996E-13 : f32
    %144 = vector.broadcast %cst_42 : f32 to vector<2x1xf32>
    %145 = arith.maximumf %143, %144 : vector<2x1xf32>
    %146 = tpu.reciprocal %145 {approx = true} : vector<2x1xf32> -> vector<2x1xf32>
    %147 = vector.broadcast %146 : vector<2x1xf32> to vector<2x8xf32>
    %148 = arith.mulf %141, %147 : vector<2x8xf32>
    %cst_43 = arith.constant dense<0.000000e+00> : vector<2x32xf32>
    %149 = tpu.matmul %148, %0, %cst_43 {dimension_numbers = #tpu.dot_dimension_numbers<[1], [0], [0], [1], [0, 0, 1, 1], [], []>} : vector<2x8xf32>, vector<8x32xf32>, vector<2x32xf32> -> vector<2x32xf32>
    %c0_44 = arith.constant 0 : index
    %c0_45 = arith.constant 0 : index
    %150 = vector.load %arg7[%c0_44, %c0_45] : memref<32x32xf32, #tpu.memory_space<vmem>>, vector<32x32xf32>
    %cst_46 = arith.constant dense<0.000000e+00> : vector<2x32xf32>
    %151 = tpu.matmul %133, %150, %cst_46 {dimension_numbers = #tpu.dot_dimension_numbers<[1], [0], [0], [1], [0, 0, 1, 1], [], []>} : vector<2x32xf32>, vector<32x32xf32>, vector<2x32xf32> -> vector<2x32xf32>
    %c0_47 = arith.constant 0 : index
    %c0_48 = arith.constant 0 : index
    %152 = vector.load %arg8[%c0_47, %c0_48] : memref<32x32xf32, #tpu.memory_space<vmem>>, vector<32x32xf32>
    %cst_49 = arith.constant dense<0.000000e+00> : vector<2x32xf32>
    %153 = tpu.matmul %149, %152, %cst_49 {dimension_numbers = #tpu.dot_dimension_numbers<[1], [0], [0], [1], [0, 0, 1, 1], [], []>} : vector<2x32xf32>, vector<32x32xf32>, vector<2x32xf32> -> vector<2x32xf32>
    %154 = arith.addf %151, %153 : vector<2x32xf32>
    %c0_50 = arith.constant 0 : index
    %c0_51 = arith.constant 0 : index
    %155 = vector.load %arg3[%c0_50, %c0_51] : memref<2x4xf32, #tpu.memory_space<vmem>>, vector<2x4xf32>
    %c0_52 = arith.constant 0 : index
    %c0_53 = arith.constant 0 : index
    %156 = vector.load %arg9[%c0_52, %c0_53] : memref<4x32xf32, #tpu.memory_space<vmem>>, vector<4x32xf32>
    %cst_54 = arith.constant dense<0.000000e+00> : vector<2x32xf32>
    %157 = tpu.matmul %155, %156, %cst_54 {dimension_numbers = #tpu.dot_dimension_numbers<[1], [0], [0], [1], [0, 0, 1, 1], [], []>} : vector<2x4xf32>, vector<4x32xf32>, vector<2x32xf32> -> vector<2x32xf32>
    %158 = arith.addf %154, %157 : vector<2x32xf32>
    %c0_55 = arith.constant 0 : index
    %c0_56 = arith.constant 0 : index
    %159 = vector.load %arg10[%c0_55, %c0_56] : memref<1x32xf32, #tpu.memory_space<vmem>>, vector<1x32xf32>
    %160 = vector.broadcast %159 : vector<1x32xf32> to vector<2x32xf32>
    %161 = arith.addf %158, %160 : vector<2x32xf32>
    %cst_57 = arith.constant 0.000000e+00 : f32
    %162 = vector.broadcast %cst_57 : f32 to vector<2x32xf32>
    %163 = arith.maximumf %161, %162 : vector<2x32xf32>
    %c0_58 = arith.constant 0 : index
    %c0_59 = arith.constant 0 : index
    %164 = vector.load %arg11[%c0_58, %c0_59] : memref<32x6xf32, #tpu.memory_space<vmem>>, vector<32x6xf32>
    %cst_60 = arith.constant dense<0.000000e+00> : vector<2x6xf32>
    %165 = tpu.matmul %163, %164, %cst_60 {dimension_numbers = #tpu.dot_dimension_numbers<[1], [0], [0], [1], [0, 0, 1, 1], [], []>} : vector<2x32xf32>, vector<32x6xf32>, vector<2x6xf32> -> vector<2x6xf32>
    %c0_61 = arith.constant 0 : index
    %c0_62 = arith.constant 0 : index
    %166 = vector.load %arg12[%c0_61, %c0_62] : memref<1x6xf32, #tpu.memory_space<vmem>>, vector<1x6xf32>
    %167 = vector.broadcast %166 : vector<1x6xf32> to vector<2x6xf32>
    %168 = arith.addf %165, %167 : vector<2x6xf32>
    %c0_63 = arith.constant 0 : index
    %c0_64 = arith.constant 0 : index
    %169 = vector.load %arg13[%c0_63, %c0_64] : memref<2x6xf32, #tpu.memory_space<vmem>>, vector<2x6xf32>
    tpu.vector_store %arg13[%c0_63, %c0_64], %168 {strides = array<i32>} : memref<2x6xf32, #tpu.memory_space<vmem>>, vector<2x6xf32>,
    return
  }
}

</mosaic_0001>

<llo_original>
// kernel: graph_prediction_forward.3
$region0: #{graph_prediction_forward.3}
  #allocation0 [shape = 'u32[]', space=smem, size = 0x4, offset = 0x4, fixed_abs, tag = 'smem constant byte address 0x4 - core index']
  #allocation1 [shape = 'u32[72,128]{1,0:T(1,128)}', space=vmem, size = 0x9000, scoped, tag = 'internal scratch']
  %s0 = inlined_call_operand.vmem [shape: f32[16,8], index: 0, kind: input, shape index: {}]
  %s1 = inlined_call_operand.vmem [shape: f32[8,32], index: 1, kind: input, shape index: {}]
  %s2 = inlined_call_operand.vmem [shape: f32[1,32], index: 2, kind: input, shape index: {}]
  %s3 = inlined_call_operand.vmem [shape: f32[32,1024], index: 3, kind: input, shape index: {}]
  %s4 = inlined_call_operand.vmem [shape: f32[1,1024], index: 4, kind: input, shape index: {}]
  %s5 = inlined_call_operand.vmem [shape: f32[16,1024], index: 5, kind: output, shape index: {}]
  %s6 = sld [smem:[#allocation0]]
  $region30: #{graph_prediction_forward.3} parent=0
    _
  %s8 = ssub.s32 1, %s6
  %s9 = scalar_select 0, %s8, %s6
  // Predicated region
  $region2: #{graph_prediction_forward.3} parent=0 // pred_check
    _
  $region3: #{graph_prediction_forward.3} parent=0 // pred_check_branch
    %11 = sbr.rel (0) target = $region5
  $region4: #{graph_prediction_forward.3} parent=0 // pred_region
    _
  $region5: #{graph_prediction_forward.3} parent=0 // pred_fallthru
    _
  // Predicated region
  $region6: #{graph_prediction_forward.3} parent=0 // pred_check
    _
  $region7: #{graph_prediction_forward.3} parent=0 // pred_check_branch
    %13 = sbr.rel (0) target = $region9
  $region8: #{graph_prediction_forward.3} parent=0 // pred_region
    _
  $region9: #{graph_prediction_forward.3} parent=0 // pred_fallthru
    _
  // Predicated region
  $region10: #{graph_prediction_forward.3} parent=0 // pred_check
    _
  $region11: #{graph_prediction_forward.3} parent=0 // pred_check_branch
    %15 = sbr.rel (0) target = $region13
  $region12: #{graph_prediction_forward.3} parent=0 // pred_region
    _
  $region13: #{graph_prediction_forward.3} parent=0 // pred_fallthru
    _
  // Predicated region
  $region14: #{graph_prediction_forward.3} parent=0 // pred_check
    _
  $region15: #{graph_prediction_forward.3} parent=0 // pred_check_branch
    %17 = sbr.rel (0) target = $region17
  $region16: #{graph_prediction_forward.3} parent=0 // pred_region
    _
  $region17: #{graph_prediction_forward.3} parent=0 // pred_fallthru
    _
  // Predicated region
  $region18: #{graph_prediction_forward.3} parent=0 // pred_check
    _
  $region19: #{graph_prediction_forward.3} parent=0 // pred_check_branch
    %19 = sbr.rel (0) target = $region21
  $region20: #{graph_prediction_forward.3} parent=0 // pred_region
    _
  $region21: #{graph_prediction_forward.3} parent=0 // pred_fallthru
    _
  %v20 = vld [vmem:[%s0] sm:$0xff]
  %v21 = vld [vmem:[%s0 + $0x8] sm:$0xff]
  %v22 = vld [vmem:[%s1] sm:$0xff]
  %v23 = vld [vmem:[%s2] sm:$0x1]
  %v25 = vperm.slane %v23, 0
  %vm27 = vcmask 64512
  %v29 = vsel %vm27, %v20, 0
  %v32 = vsel %vm27, %v21, 0
  %34 = vmatpush.msra.mxu0 0.0
  %35 = vmatpush.msra.mxu0 0.0
  %36 = vmatpush.msra.mxu0 0.0
  %37 = vmatpush.msra.mxu0 0.0
  %38 = vmatpush.msra.mxu0 0.0
  %39 = vmatpush.msra.mxu0 0.0
  %40 = vmatpush.msra.mxu0 0.0
  %41 = vmatpush.msra.mxu0 0.0
  %42 = vmatpush.msra.mxu0 0.0
  %43 = vmatpush.msra.mxu0 0.0
  %44 = vmatpush.msra.mxu0 0.0
  %45 = vmatpush.msra.mxu0 0.0
  %46 = vmatpush.msra.mxu0 0.0
  %47 = vmatpush.msra.mxu0 0.0
  %48 = vmatpush.msra.mxu0 0.0
  %49 = vmatpush.msra.mxu0 %v22
  %50 = vmatmul.f32.gmra.mxu0 %v29
  %v51 = vpop.f32.mrf.mxu0
  %v52 = vadd.f32 %v25, %v51
  %53 = vmatmul.f32.gmra.mxu0 %v32
  %v54 = vpop.f32.mrf.mxu0
  %v55 = vadd.f32 %v25, %v54
  %56 = vdwg.mxu0
  %v57 = vmax.f32 %v52, 0.0
  %v58 = vmax.f32 %v55, 0.0
  %v59 = vld [vmem:[%s3] sm:$0xff]
  %v60 = vld [vmem:[%s3 + $0x8] sm:$0xff]
  %v61 = vld [vmem:[%s3 + $0x10] sm:$0xff]
  %v62 = vld [vmem:[%s3 + $0x18] sm:$0xff]
  %v63 = vld [vmem:[%s3 + $0x20] sm:$0xff]
  %v64 = vld [vmem:[%s3 + $0x28] sm:$0xff]
  %v65 = vld [vmem:[%s3 + $0x30] sm:$0xff]
  %v66 = vld [vmem:[%s3 + $0x38] sm:$0xff]
  %v67 = vld [vmem:[%s3 + $0x40] sm:$0xff]
  %v68 = vld [vmem:[%s3 + $0x48] sm:$0xff]
  %v69 = vld [vmem:[%s3 + $0x50] sm:$0xff]
  %v70 = vld [vmem:[%s3 + $0x58] sm:$0xff]
  %v71 = vld [vmem:[%s3 + $0x60] sm:$0xff]
  %v72 = vld [vmem:[%s3 + $0x68] sm:$0xff]
  %v73 = vld [vmem:[%s3 + $0x70] sm:$0xff]
  %v74 = vld [vmem:[%s3 + $0x78] sm:$0xff]
  %v75 = vld [vmem:[%s3 + $0x80] sm:$0xff]
  %v76 = vld [vmem:[%s3 + $0x88] sm:$0xff]
  %v77 = vld [vmem:[%s3 + $0x90] sm:$0xff]
  %v78 = vld [vmem:[%s3 + $0x98] sm:$0xff]
  %v79 = vld [vmem:[%s3 + $0xa0] sm:$0xff]
  %v80 = vld [vmem:[%s3 + $0xa8] sm:$0xff]
  %v81 = vld [vmem:[%s3 + $0xb0] sm:$0xff]
  %v82 = vld [vmem:[%s3 + $0xb8] sm:$0xff]
  %v83 = vld [vmem:[%s3 + $0xc0] sm:$0xff]
  %v84 = vld [vmem:[%s3 + $0xc8] sm:$0xff]
  %v85 = vld [vmem:[%s3 + $0xd0] sm:$0xff]
  %v86 = vld [vmem:[%s3 + $0xd8] sm:$0xff]
  %v87 = vld [vmem:[%s3 + $0xe0] sm:$0xff]
  %v88 = vld [vmem:[%s3 + $0xe8] sm:$0xff]
  %v89 = vld [vmem:[%s3 + $0xf0] sm:$0xff]
  %v90 = vld [vmem:[%s3 + $0xf8] sm:$0xff]
  %v91 = vld [vmem:[%s4] sm:$0xff]
  %v93 = vperm.slane %v91, 0
  %v94 = vperm.slane %v91, 1
  %v95 = vperm.slane %v91, 2
  %v96 = vperm.slane %v91, 3
  %v97 = vperm.slane %v91, 4
  %v98 = vperm.slane %v91, 5
  %v99 = vperm.slane %v91, 6
  %v100 = vperm.slane %v91, 7
  %vm109 = vcmask 261120
  %v111 = vsel %vm109, %v57, 0
  %v114 = vsel %vm109, %v58, 0
  %116 = vmatpush.msra.mxu0 0.0
  %117 = vmatpush.msra.mxu0 0.0
  %118 = vmatpush.msra.mxu0 0.0
  %119 = vmatpush.msra.mxu0 0.0
  %120 = vmatpush.msra.mxu0 0.0
  %121 = vmatpush.msra.mxu0 0.0
  %122 = vmatpush.msra.mxu0 0.0
  %123 = vmatpush.msra.mxu0 0.0
  %124 = vmatpush.msra.mxu0 0.0
  %125 = vmatpush.msra.mxu0 0.0
  %126 = vmatpush.msra.mxu0 0.0
  %127 = vmatpush.msra.mxu0 0.0
  %128 = vmatpush.msra.mxu0 %v83
  %129 = vmatpush.msra.mxu0 %v75
  %130 = vmatpush.msra.mxu0 %v67
  %131 = vmatpush.msra.mxu0 %v59
  %132 = vmatmul.f32.gmra.mxu0 %v111
  %v133 = vpop.f32.mrf.mxu0
  %v134 = vadd.f32 %v93, %v133
  %135 = vmatmul.f32.gmra.mxu0 %v114
  %v136 = vpop.f32.mrf.mxu0
  %v137 = vadd.f32 %v93, %v136
  %138 = vdwg.mxu0
  %139 = vmatpush.msra.mxu0 0.0
  %140 = vmatpush.msra.mxu0 0.0
  %141 = vmatpush.msra.mxu0 0.0
  %142 = vmatpush.msra.mxu0 0.0
  %143 = vmatpush.msra.mxu0 0.0
  %144 = vmatpush.msra.mxu0 0.0
  %145 = vmatpush.msra.mxu0 0.0
  %146 = vmatpush.msra.mxu0 0.0
  %147 = vmatpush.msra.mxu0 0.0
  %148 = vmatpush.msra.mxu0 0.0
  %149 = vmatpush.msra.mxu0 0.0
  %150 = vmatpush.msra.mxu0 0.0
  %151 = vmatpush.msra.mxu0 %v84
  %152 = vmatpush.msra.mxu0 %v76
  %153 = vmatpush.msra.mxu0 %v68
  %154 = vmatpush.msra.mxu0 %v60
  %155 = vmatmul.f32.gmra.mxu0 %v111
  %v156 = vpop.f32.mrf.mxu0
  %v157 = vadd.f32 %v94, %v156
  %158 = vmatmul.f32.gmra.mxu0 %v114
  %v159 = vpop.f32.mrf.mxu0
  %v160 = vadd.f32 %v94, %v159
  %161 = vdwg.mxu0
  %162 = vmatpush.msra.mxu0 0.0
  %163 = vmatpush.msra.mxu0 0.0
  %164 = vmatpush.msra.mxu0 0.0
  %165 = vmatpush.msra.mxu0 0.0
  %166 = vmatpush.msra.mxu0 0.0
  %167 = vmatpush.msra.mxu0 0.0
  %168 = vmatpush.msra.mxu0 0.0
  %169 = vmatpush.msra.mxu0 0.0
  %170 = vmatpush.msra.mxu0 0.0
  %171 = vmatpush.msra.mxu0 0.0
  %172 = vmatpush.msra.mxu0 0.0
  %173 = vmatpush.msra.mxu0 0.0
  %174 = vmatpush.msra.mxu0 %v85
  %175 = vmatpush.msra.mxu0 %v77
  %176 = vmatpush.msra.mxu0 %v69
  %177 = vmatpush.msra.mxu0 %v61
  %178 = vmatmul.f32.gmra.mxu0 %v111
  %v179 = vpop.f32.mrf.mxu0
  %v180 = vadd.f32 %v95, %v179
  %181 = vmatmul.f32.gmra.mxu0 %v114
  %v182 = vpop.f32.mrf.mxu0
  %v183 = vadd.f32 %v95, %v182
  %184 = vdwg.mxu0
  %185 = vmatpush.msra.mxu0 0.0
  %186 = vmatpush.msra.mxu0 0.0
  %187 = vmatpush.msra.mxu0 0.0
  %188 = vmatpush.msra.mxu0 0.0
  %189 = vmatpush.msra.mxu0 0.0
  %190 = vmatpush.msra.mxu0 0.0
  %191 = vmatpush.msra.mxu0 0.0
  %192 = vmatpush.msra.mxu0 0.0
  %193 = vmatpush.msra.mxu0 0.0
  %194 = vmatpush.msra.mxu0 0.0
  %195 = vmatpush.msra.mxu0 0.0
  %196 = vmatpush.msra.mxu0 0.0
  %197 = vmatpush.msra.mxu0 %v86
  %198 = vmatpush.msra.mxu0 %v78
  %199 = vmatpush.msra.mxu0 %v70
  %200 = vmatpush.msra.mxu0 %v62
  %201 = vmatmul.f32.gmra.mxu0 %v111
  %v202 = vpop.f32.mrf.mxu0
  %v203 = vadd.f32 %v96, %v202
  %204 = vmatmul.f32.gmra.mxu0 %v114
  %v205 = vpop.f32.mrf.mxu0
  %v206 = vadd.f32 %v96, %v205
  %207 = vdwg.mxu0
  %208 = vmatpush.msra.mxu0 0.0
  %209 = vmatpush.msra.mxu0 0.0
  %210 = vmatpush.msra.mxu0 0.0
  %211 = vmatpush.msra.mxu0 0.0
  %212 = vmatpush.msra.mxu0 0.0
  %213 = vmatpush.msra.mxu0 0.0
  %214 = vmatpush.msra.mxu0 0.0
  %215 = vmatpush.msra.mxu0 0.0
  %216 = vmatpush.msra.mxu0 0.0
  %217 = vmatpush.msra.mxu0 0.0
  %218 = vmatpush.msra.mxu0 0.0
  %219 = vmatpush.msra.mxu0 0.0
  %220 = vmatpush.msra.mxu0 %v87
  %221 = vmatpush.msra.mxu0 %v79
  %222 = vmatpush.msra.mxu0 %v71
  %223 = vmatpush.msra.mxu0 %v63
  %224 = vmatmul.f32.gmra.mxu0 %v111
  %v225 = vpop.f32.mrf.mxu0
  %v226 = vadd.f32 %v97, %v225
  %227 = vmatmul.f32.gmra.mxu0 %v114
  %v228 = vpop.f32.mrf.mxu0
  %v229 = vadd.f32 %v97, %v228
  %230 = vdwg.mxu0
  %231 = vmatpush.msra.mxu0 0.0
  %232 = vmatpush.msra.mxu0 0.0
  %233 = vmatpush.msra.mxu0 0.0
  %234 = vmatpush.msra.mxu0 0.0
  %235 = vmatpush.msra.mxu0 0.0
  %236 = vmatpush.msra.mxu0 0.0
  %237 = vmatpush.msra.mxu0 0.0
  %238 = vmatpush.msra.mxu0 0.0
  %239 = vmatpush.msra.mxu0 0.0
  %240 = vmatpush.msra.mxu0 0.0
  %241 = vmatpush.msra.mxu0 0.0
  %242 = vmatpush.msra.mxu0 0.0
  %243 = vmatpush.msra.mxu0 %v88
  %244 = vmatpush.msra.mxu0 %v80
  %245 = vmatpush.msra.mxu0 %v72
  %246 = vmatpush.msra.mxu0 %v64
  %247 = vmatmul.f32.gmra.mxu0 %v111
  %v248 = vpop.f32.mrf.mxu0
  %v249 = vadd.f32 %v98, %v248
  %250 = vmatmul.f32.gmra.mxu0 %v114
  %v251 = vpop.f32.mrf.mxu0
  %v252 = vadd.f32 %v98, %v251
  %253 = vdwg.mxu0
  %254 = vmatpush.msra.mxu0 0.0
  %255 = vmatpush.msra.mxu0 0.0
  %256 = vmatpush.msra.mxu0 0.0
  %257 = vmatpush.msra.mxu0 0.0
  %258 = vmatpush.msra.mxu0 0.0
  %259 = vmatpush.msra.mxu0 0.0
  %260 = vmatpush.msra.mxu0 0.0
  %261 = vmatpush.msra.mxu0 0.0
  %262 = vmatpush.msra.mxu0 0.0
  %263 = vmatpush.msra.mxu0 0.0
  %264 = vmatpush.msra.mxu0 0.0
  %265 = vmatpush.msra.mxu0 0.0
  %266 = vmatpush.msra.mxu0 %v89
  %267 = vmatpush.msra.mxu0 %v81
  %268 = vmatpush.msra.mxu0 %v73
  %269 = vmatpush.msra.mxu0 %v65
  %270 = vmatmul.f32.gmra.mxu0 %v111
  %v271 = vpop.f32.mrf.mxu0
  %v272 = vadd.f32 %v99, %v271
  %273 = vmatmul.f32.gmra.mxu0 %v114
  %v274 = vpop.f32.mrf.mxu0
  %v275 = vadd.f32 %v99, %v274
  %276 = vdwg.mxu0
  %277 = vmatpush.msra.mxu0 0.0
  %278 = vmatpush.msra.mxu0 0.0
  %279 = vmatpush.msra.mxu0 0.0
  %280 = vmatpush.msra.mxu0 0.0
  %281 = vmatpush.msra.mxu0 0.0
  %282 = vmatpush.msra.mxu0 0.0
  %283 = vmatpush.msra.mxu0 0.0
  %284 = vmatpush.msra.mxu0 0.0
  %285 = vmatpush.msra.mxu0 0.0
  %286 = vmatpush.msra.mxu0 0.0
  %287 = vmatpush.msra.mxu0 0.0
  %288 = vmatpush.msra.mxu0 0.0
  %289 = vmatpush.msra.mxu0 %v90
  %290 = vmatpush.msra.mxu0 %v82
  %291 = vmatpush.msra.mxu0 %v74
  %292 = vmatpush.msra.mxu0 %v66
  %293 = vmatmul.f32.gmra.mxu0 %v111
  %v294 = vpop.f32.mrf.mxu0
  %v295 = vadd.f32 %v100, %v294
  %296 = vmatmul.f32.gmra.mxu0 %v114
  %v297 = vpop.f32.mrf.mxu0
  %v298 = vadd.f32 %v100, %v297
  %299 = vdwg.mxu0
  %300 = vst [vmem:[%s5] sm:$0xff] %v134
  %301 = vst [vmem:[%s5 + $0x8] sm:$0xff] %v157
  %302 = vst [vmem:[%s5 + $0x10] sm:$0xff] %v180
  %303 = vst [vmem:[%s5 + $0x18] sm:$0xff] %v203
  %304 = vst [vmem:[%s5 + $0x20] sm:$0xff] %v226
  %305 = vst [vmem:[%s5 + $0x28] sm:$0xff] %v249
  %306 = vst [vmem:[%s5 + $0x30] sm:$0xff] %v272
  %307 = vst [vmem:[%s5 + $0x38] sm:$0xff] %v295
  %308 = vst [vmem:[%s5 + $0x40] sm:$0xff] %v137
  %309 = vst [vmem:[%s5 + $0x48] sm:$0xff] %v160
  %310 = vst [vmem:[%s5 + $0x50] sm:$0xff] %v183
  %311 = vst [vmem:[%s5 + $0x58] sm:$0xff] %v206
  %312 = vst [vmem:[%s5 + $0x60] sm:$0xff] %v229
  %313 = vst [vmem:[%s5 + $0x68] sm:$0xff] %v252
  %314 = vst [vmem:[%s5 + $0x70] sm:$0xff] %v275
  %315 = vst [vmem:[%s5 + $0x78] sm:$0xff] %v298
  // Predicated region
  $region22: #{graph_prediction_forward.3} parent=0 // pred_check
    _
  $region23: #{graph_prediction_forward.3} parent=0 // pred_check_branch
    %317 = sbr.rel (0) target = $region25
  $region24: #{graph_prediction_forward.3} parent=0 // pred_region
    _
  $region25: #{graph_prediction_forward.3} parent=0 // pred_fallthru
    _
  // Predicated region
  $region26: #{graph_prediction_forward.3} parent=0 // pred_check
    _
  $region27: #{graph_prediction_forward.3} parent=0 // pred_check_branch
    %319 = sbr.rel (0) target = $region29
  $region28: #{graph_prediction_forward.3} parent=0 // pred_region
    _
  $region29: #{graph_prediction_forward.3} parent=0 // pred_fallthru
    _

// kernel: graph_prediction_forward.4
$region0: #{graph_prediction_forward.4}
  #allocation0 [shape = 'u32[]', space=smem, size = 0x4, offset = 0x4, fixed_abs, tag = 'smem constant byte address 0x4 - core index']
  #allocation1 [shape = 'u32[72,128]{1,0:T(1,128)}', space=vmem, size = 0x9000, scoped, tag = 'internal scratch']
  #allocation2 [shape = 'f32[8,32]{1,0:T(8,128)}', space=vmem, size = 0x1000, scoped, tag = 'scratch operand']
  #allocation3 [shape = 'f32[8,32]{1,0:T(8,128)}', space=vmem, size = 0x1000, scoped, tag = 'scratch operand']
  %s0 = inlined_call_operand.vmem [shape: f32[8,16], index: 0, kind: input, shape index: {}]
  %s1 = inlined_call_operand.vmem [shape: f32[16,32], index: 1, kind: input, shape index: {}]
  %s2 = inlined_call_operand.vmem [shape: f32[1,32], index: 2, kind: input, shape index: {}]
  %s3 = inlined_call_operand.vmem [shape: s32[16,1], index: 3, kind: input, shape index: {}]
  %s4 = inlined_call_operand.vmem [shape: s32[1,16], index: 4, kind: input, shape index: {}]
  %s5 = inlined_call_operand.vmem [shape: f32[16,1024], index: 5, kind: input, shape index: {}]
  %s6 = inlined_call_operand.vmem [shape: f32[8,1], index: 6, kind: input, shape index: {}]
  %s7 = inlined_call_operand.vmem [shape: f32[32,1024], index: 7, kind: input, shape index: {}]
  %s8 = inlined_call_operand.vmem [shape: f32[1024,32], index: 8, kind: input, shape index: {}]
  %s9 = inlined_call_operand.vmem [shape: f32[32,32], index: 9, kind: input, shape index: {}]
  %s10 = inlined_call_operand.vmem [shape: f32[1,32], index: 10, kind: input, shape index: {}]
  %s11 = inlined_call_operand.vmem [shape: f32[64,192], index: 11, kind: input, shape index: {}]
  %s12 = inlined_call_operand.vmem [shape: f32[1,192], index: 12, kind: input, shape index: {}]
  %s13 = inlined_call_operand.vmem [shape: f32[8,32], index: 13, kind: output, shape index: {}]
  %s14 = sld [smem:[#allocation0]]
  $region97: #{graph_prediction_forward.4} parent=0
    _
  %s16 = ssub.s32 1, %s14
  %s17 = scalar_select 0, %s16, %s14
  loop: start=0, step=1, limit=4
  $region2: #{graph_prediction_forward.4} parent=0 // loop_pre_header
    _
  $region3: #{graph_prediction_forward.4} parent=0 // loop_header
    %s19 = sphi 0, %s23
    %p20 = scmp.ge.s32.totalorder %s19, 4
    %s26 = sphi 0, %s38
    %s27 = sphi 0, %s34
    %s28 = sphi 0, %s26
    %s29 = sphi 0, %s27
    %s30 = sphi 0, %s28
    %s31 = sphi 0, %s29
    %s39 = sphi 0, %s39
    %s41 = sphi 0, %s39
    %s42 = sphi 0, %s41
    %s56 = sphi 0, %s42
    %s60 = sphi 0, %s60
    %s62 = sphi 0, %s60
    %s63 = sphi 0, %s62
    %s77 = sphi 0, %s63
    %s81 = sphi 0, %s81
    %s83 = sphi 0, %s81
    %s84 = sphi 0, %s83
    %s98 = sphi 0, %s84
    %s104 = sphi 0, %s106
    %s107 = sphi 0, %s104
    %s108 = sphi 0, %s107
    %s124 = sphi 0, %s108
    %s130 = sphi 0, %s132
    %s133 = sphi 0, %s130
    %s134 = sphi 0, %s133
    %s150 = sphi 0, %s134
    %s156 = sphi 0, %s158
    %s159 = sphi 0, %s156
    %s160 = sphi 0, %s159
    %s176 = sphi 0, %s160
    %s180 = sphi 0, %s180
    %s182 = sphi 0, %s180
    %s183 = sphi 0, %s182
    %s197 = sphi 0, %s183
    %s201 = sphi 0, %s201
    %s203 = sphi 0, %s201
    %s204 = sphi 0, %s203
    %s218 = sphi 0, %s204
    %s222 = sphi 0, %s222
    %s224 = sphi 0, %s222
    %s225 = sphi 0, %s224
    %s239 = sphi 0, %s225
    %s243 = sphi 0, %s243
    %s245 = sphi 0, %s243
    %s246 = sphi 0, %s245
    %s260 = sphi 0, %s246
    %s264 = sphi 0, %s264
    %s266 = sphi 0, %s264
    %s267 = sphi 0, %s266
    %s281 = sphi 0, %s267
    %s285 = sphi 0, %s285
    %s287 = sphi 0, %s285
    %s288 = sphi 0, %s287
    %s302 = sphi 0, %s288
    %s306 = sphi 0, %s306
    %s308 = sphi 0, %s306
    %s309 = sphi 0, %s308
    %s323 = sphi 0, %s309
    %s327 = sphi 0, %s327
    %s329 = sphi 0, %s327
    %s330 = sphi 0, %s329
    %s344 = sphi 0, %s330
  $region4: #{graph_prediction_forward.4} parent=0 // loop_header_branch
    %22 = sbr.rel (%p20) target = $region8
  $region5: #{graph_prediction_forward.4} parent=0 // loop_body
    %s24 = ssub.s32 %s19, 1
    %s25 = ssub.s32 %s19, 2
    %s32 = sadd.s32 1, %s27
    %p33 = scmp.ge.s32.totalorder %s32, 1
    %s34 = scalar_select %p33, 0, %s32
    %s35 = sadd.s32 1, %s26
    %s36 = scalar_select %p33, %s35, %s26
    %p37 = scmp.ge.s32.totalorder %s36, 2
    %s38 = scalar_select %p37, 0, %s36
    %s40 = sadd.s32 %s39, 1
    %p43 = scmp.eq.s32.totalorder %s19, 1
    %p44 = scmp.ne.s32.totalorder %s39, %s41
    %p45 = scmp.eq.s32.totalorder %s19, 0
    %p46 = por %p44, %p45
    %p47 = scmp.ne.s32.totalorder %s39, %s41
    %p48 = scmp.eq.s32.totalorder %s24, 1
    %p49 = por %p47, %p48
    %p50 = scmp.ne.s32.totalorder %s41, %s42
    %p51 = scmp.eq.s32.totalorder %s24, 0
    %p52 = por %p50, %p51
    %p53 = scmp.ne.s32.totalorder %s41, %s42
    %p54 = scmp.eq.s32.totalorder %s25, 1
    %p55 = por %p53, %p54
    %p57 = scmp.ne.s32.totalorder %s42, %s56
    %p58 = scmp.eq.s32.totalorder %s25, 0
    %p59 = por %p57, %p58
    %s61 = sadd.s32 %s60, 1
    %p64 = scmp.eq.s32.totalorder %s19, 1
    %p65 = scmp.ne.s32.totalorder %s60, %s62
    %p66 = scmp.eq.s32.totalorder %s19, 0
    %p67 = por %p65, %p66
    %p68 = scmp.ne.s32.totalorder %s60, %s62
    %p69 = scmp.eq.s32.totalorder %s24, 1
    %p70 = por %p68, %p69
    %p71 = scmp.ne.s32.totalorder %s62, %s63
    %p72 = scmp.eq.s32.totalorder %s24, 0
    %p73 = por %p71, %p72
    %p74 = scmp.ne.s32.totalorder %s62, %s63
    %p75 = scmp.eq.s32.totalorder %s25, 1
    %p76 = por %p74, %p75
    %p78 = scmp.ne.s32.totalorder %s63, %s77
    %p79 = scmp.eq.s32.totalorder %s25, 0
    %p80 = por %p78, %p79
    %s82 = sadd.s32 %s81, 1
    %p85 = scmp.eq.s32.totalorder %s19, 1
    %p86 = scmp.ne.s32.totalorder %s81, %s83
    %p87 = scmp.eq.s32.totalorder %s19, 0
    %p88 = por %p86, %p87
    %p89 = scmp.ne.s32.totalorder %s81, %s83
    %p90 = scmp.eq.s32.totalorder %s24, 1
    %p91 = por %p89, %p90
    %p92 = scmp.ne.s32.totalorder %s83, %s84
    %p93 = scmp.eq.s32.totalorder %s24, 0
    %p94 = por %p92, %p93
    %p95 = scmp.ne.s32.totalorder %s83, %s84
    %p96 = scmp.eq.s32.totalorder %s25, 1
    %p97 = por %p95, %p96
    %p99 = scmp.ne.s32.totalorder %s84, %s98
    %p100 = scmp.eq.s32.totalorder %s25, 0
    %p101 = por %p99, %p100
    %s102 = ssub.s32 %s27, %s34
    %p103 = scmp.eq.s32.totalorder %s102, 0
    %s105 = sadd.s32 %s104, 1
    %s106 = scalar_select %p103, %s104, %s105
    %p109 = pneg %p103
    %p110 = scmp.eq.s32.totalorder %s19, 1
    %p111 = por %p109, %p110
    %p112 = scmp.ne.s32.totalorder %s104, %s107
    %p113 = scmp.eq.s32.totalorder %s19, 0
    %p114 = por %p112, %p113
    %p115 = scmp.ne.s32.totalorder %s104, %s107
    %p116 = scmp.eq.s32.totalorder %s24, 1
    %p117 = por %p115, %p116
    %p118 = scmp.ne.s32.totalorder %s107, %s108
    %p119 = scmp.eq.s32.totalorder %s24, 0
    %p120 = por %p118, %p119
    %p121 = scmp.ne.s32.totalorder %s107, %s108
    %p122 = scmp.eq.s32.totalorder %s25, 1
    %p123 = por %p121, %p122
    %p125 = scmp.ne.s32.totalorder %s108, %s124
    %p126 = scmp.eq.s32.totalorder %s25, 0
    %p127 = por %p125, %p126
    %s128 = ssub.s32 %s27, %s34
    %p129 = scmp.eq.s32.totalorder %s128, 0
    %s131 = sadd.s32 %s130, 1
    %s132 = scalar_select %p129, %s130, %s131
    %p135 = pneg %p129
    %p136 = scmp.eq.s32.totalorder %s19, 1
    %p137 = por %p135, %p136
    %p138 = scmp.ne.s32.totalorder %s130, %s133
    %p139 = scmp.eq.s32.totalorder %s19, 0
    %p140 = por %p138, %p139
    %p141 = scmp.ne.s32.totalorder %s130, %s133
    %p142 = scmp.eq.s32.totalorder %s24, 1
    %p143 = por %p141, %p142
    %p144 = scmp.ne.s32.totalorder %s133, %s134
    %p145 = scmp.eq.s32.totalorder %s24, 0
    %p146 = por %p144, %p145
    %p147 = scmp.ne.s32.totalorder %s133, %s134
    %p148 = scmp.eq.s32.totalorder %s25, 1
    %p149 = por %p147, %p148
    %p151 = scmp.ne.s32.totalorder %s134, %s150
    %p152 = scmp.eq.s32.totalorder %s25, 0
    %p153 = por %p151, %p152
    %s154 = ssub.s32 %s27, %s34
    %p155 = scmp.eq.s32.totalorder %s154, 0
    %s157 = sadd.s32 %s156, 1
    %s158 = scalar_select %p155, %s156, %s157
    %p161 = pneg %p155
    %p162 = scmp.eq.s32.totalorder %s19, 1
    %p163 = por %p161, %p162
    %p164 = scmp.ne.s32.totalorder %s156, %s159
    %p165 = scmp.eq.s32.totalorder %s19, 0
    %p166 = por %p164, %p165
    %p167 = scmp.ne.s32.totalorder %s156, %s159
    %p168 = scmp.eq.s32.totalorder %s24, 1
    %p169 = por %p167, %p168
    %p170 = scmp.ne.s32.totalorder %s159, %s160
    %p171 = scmp.eq.s32.totalorder %s24, 0
    %p172 = por %p170, %p171
    %p173 = scmp.ne.s32.totalorder %s159, %s160
    %p174 = scmp.eq.s32.totalorder %s25, 1
    %p175 = por %p173, %p174
    %p177 = scmp.ne.s32.totalorder %s160, %s176
    %p178 = scmp.eq.s32.totalorder %s25, 0
    %p179 = por %p177, %p178
    %s181 = sadd.s32 %s180, 1
    %p184 = scmp.eq.s32.totalorder %s19, 1
    %p185 = scmp.ne.s32.totalorder %s180, %s182
    %p186 = scmp.eq.s32.totalorder %s19, 0
    %p187 = por %p185, %p186
    %p188 = scmp.ne.s32.totalorder %s180, %s182
    %p189 = scmp.eq.s32.totalorder %s24, 1
    %p190 = por %p188, %p189
    %p191 = scmp.ne.s32.totalorder %s182, %s183
    %p192 = scmp.eq.s32.totalorder %s24, 0
    %p193 = por %p191, %p192
    %p194 = scmp.ne.s32.totalorder %s182, %s183
    %p195 = scmp.eq.s32.totalorder %s25, 1
    %p196 = por %p194, %p195
    %p198 = scmp.ne.s32.totalorder %s183, %s197
    %p199 = scmp.eq.s32.totalorder %s25, 0
    %p200 = por %p198, %p199
    %s202 = sadd.s32 %s201, 1
    %p205 = scmp.eq.s32.totalorder %s19, 1
    %p206 = scmp.ne.s32.totalorder %s201, %s203
    %p207 = scmp.eq.s32.totalorder %s19, 0
    %p208 = por %p206, %p207
    %p209 = scmp.ne.s32.totalorder %s201, %s203
    %p210 = scmp.eq.s32.totalorder %s24, 1
    %p211 = por %p209, %p210
    %p212 = scmp.ne.s32.totalorder %s203, %s204
    %p213 = scmp.eq.s32.totalorder %s24, 0
    %p214 = por %p212, %p213
    %p215 = scmp.ne.s32.totalorder %s203, %s204
    %p216 = scmp.eq.s32.totalorder %s25, 1
    %p217 = por %p215, %p216
    %p219 = scmp.ne.s32.totalorder %s204, %s218
    %p220 = scmp.eq.s32.totalorder %s25, 0
    %p221 = por %p219, %p220
    %s223 = sadd.s32 %s222, 1
    %p226 = scmp.eq.s32.totalorder %s19, 1
    %p227 = scmp.ne.s32.totalorder %s222, %s224
    %p228 = scmp.eq.s32.totalorder %s19, 0
    %p229 = por %p227, %p228
    %p230 = scmp.ne.s32.totalorder %s222, %s224
    %p231 = scmp.eq.s32.totalorder %s24, 1
    %p232 = por %p230, %p231
    %p233 = scmp.ne.s32.totalorder %s224, %s225
    %p234 = scmp.eq.s32.totalorder %s24, 0
    %p235 = por %p233, %p234
    %p236 = scmp.ne.s32.totalorder %s224, %s225
    %p237 = scmp.eq.s32.totalorder %s25, 1
    %p238 = por %p236, %p237
    %p240 = scmp.ne.s32.totalorder %s225, %s239
    %p241 = scmp.eq.s32.totalorder %s25, 0
    %p242 = por %p240, %p241
    %s244 = sadd.s32 %s243, 1
    %p247 = scmp.eq.s32.totalorder %s19, 1
    %p248 = scmp.ne.s32.totalorder %s243, %s245
    %p249 = scmp.eq.s32.totalorder %s19, 0
    %p250 = por %p248, %p249
    %p251 = scmp.ne.s32.totalorder %s243, %s245
    %p252 = scmp.eq.s32.totalorder %s24, 1
    %p253 = por %p251, %p252
    %p254 = scmp.ne.s32.totalorder %s245, %s246
    %p255 = scmp.eq.s32.totalorder %s24, 0
    %p256 = por %p254, %p255
    %p257 = scmp.ne.s32.totalorder %s245, %s246
    %p258 = scmp.eq.s32.totalorder %s25, 1
    %p259 = por %p257, %p258
    %p261 = scmp.ne.s32.totalorder %s246, %s260
    %p262 = scmp.eq.s32.totalorder %s25, 0
    %p263 = por %p261, %p262
    %s265 = sadd.s32 %s264, 1
    %p268 = scmp.eq.s32.totalorder %s19, 1
    %p269 = scmp.ne.s32.totalorder %s264, %s266
    %p270 = scmp.eq.s32.totalorder %s19, 0
    %p271 = por %p269, %p270
    %p272 = scmp.ne.s32.totalorder %s264, %s266
    %p273 = scmp.eq.s32.totalorder %s24, 1
    %p274 = por %p272, %p273
    %p275 = scmp.ne.s32.totalorder %s266, %s267
    %p276 = scmp.eq.s32.totalorder %s24, 0
    %p277 = por %p275, %p276
    %p278 = scmp.ne.s32.totalorder %s266, %s267
    %p279 = scmp.eq.s32.totalorder %s25, 1
    %p280 = por %p278, %p279
    %p282 = scmp.ne.s32.totalorder %s267, %s281
    %p283 = scmp.eq.s32.totalorder %s25, 0
    %p284 = por %p282, %p283
    %s286 = sadd.s32 %s285, 1
    %p289 = scmp.eq.s32.totalorder %s19, 1
    %p290 = scmp.ne.s32.totalorder %s285, %s287
    %p291 = scmp.eq.s32.totalorder %s19, 0
    %p292 = por %p290, %p291
    %p293 = scmp.ne.s32.totalorder %s285, %s287
    %p294 = scmp.eq.s32.totalorder %s24, 1
    %p295 = por %p293, %p294
    %p296 = scmp.ne.s32.totalorder %s287, %s288
    %p297 = scmp.eq.s32.totalorder %s24, 0
    %p298 = por %p296, %p297
    %p299 = scmp.ne.s32.totalorder %s287, %s288
    %p300 = scmp.eq.s32.totalorder %s25, 1
    %p301 = por %p299, %p300
    %p303 = scmp.ne.s32.totalorder %s288, %s302
    %p304 = scmp.eq.s32.totalorder %s25, 0
    %p305 = por %p303, %p304
    %s307 = sadd.s32 %s306, 1
    %p310 = scmp.eq.s32.totalorder %s19, 1
    %p311 = scmp.ne.s32.totalorder %s306, %s308
    %p312 = scmp.eq.s32.totalorder %s19, 0
    %p313 = por %p311, %p312
    %p314 = scmp.ne.s32.totalorder %s306, %s308
    %p315 = scmp.eq.s32.totalorder %s24, 1
    %p316 = por %p314, %p315
    %p317 = scmp.ne.s32.totalorder %s308, %s309
    %p318 = scmp.eq.s32.totalorder %s24, 0
    %p319 = por %p317, %p318
    %p320 = scmp.ne.s32.totalorder %s308, %s309
    %p321 = scmp.eq.s32.totalorder %s25, 1
    %p322 = por %p320, %p321
    %p324 = scmp.ne.s32.totalorder %s309, %s323
    %p325 = scmp.eq.s32.totalorder %s25, 0
    %p326 = por %p324, %p325
    %s328 = sadd.s32 %s327, 1
    %p331 = scmp.eq.s32.totalorder %s19, 1
    %p332 = scmp.ne.s32.totalorder %s327, %s329
    %p333 = scmp.eq.s32.totalorder %s19, 0
    %p334 = por %p332, %p333
    %p335 = scmp.ne.s32.totalorder %s327, %s329
    %p336 = scmp.eq.s32.totalorder %s24, 1
    %p337 = por %p335, %p336
    %p338 = scmp.ne.s32.totalorder %s329, %s330
    %p339 = scmp.eq.s32.totalorder %s24, 0
    %p340 = por %p338, %p339
    %p341 = scmp.ne.s32.totalorder %s329, %s330
    %p342 = scmp.eq.s32.totalorder %s25, 1
    %p343 = por %p341, %p342
    %p345 = scmp.ne.s32.totalorder %s330, %s344
    %p346 = scmp.eq.s32.totalorder %s25, 0
    %p347 = por %p345, %p346
    %p348 = scmp.le.s32.totalorder 1, %s19
    %p349 = scmp.lt.s32.totalorder %s19, 3
    %p350 = pnand %p348, %p349
    %p351 = pneg %p350
    // Predicated region
    $region9: #{graph_prediction_forward.4} parent=5 // pred_check
      _
    $region10: #{graph_prediction_forward.4} parent=5 // pred_check_branch
      %353 = sbr.rel (%p350) target = $region12
    $region11: #{graph_prediction_forward.4} parent=5 // pred_region
      %s354 = ssub.s32 %s19, 1
      // Predicated region
      $region13: #{graph_prediction_forward.4} parent=11 // pred_check
        %p355 = pneg %p52
      $region14: #{graph_prediction_forward.4} parent=11 // pred_check_branch
        %357 = sbr.rel (%p355) target = $region16
      $region15: #{graph_prediction_forward.4} parent=11 // pred_region
        _
      $region16: #{graph_prediction_forward.4} parent=11 // pred_fallthru
        _
      // Predicated region
      $region17: #{graph_prediction_forward.4} parent=11 // pred_check
        %p358 = pneg %p73
      $region18: #{graph_prediction_forward.4} parent=11 // pred_check_branch
        %360 = sbr.rel (%p358) target = $region20
      $region19: #{graph_prediction_forward.4} parent=11 // pred_region
        _
      $region20: #{graph_prediction_forward.4} parent=11 // pred_fallthru
        _
      // Predicated region
      $region21: #{graph_prediction_forward.4} parent=11 // pred_check
        %p361 = pneg %p94
      $region22: #{graph_prediction_forward.4} parent=11 // pred_check_branch
        %363 = sbr.rel (%p361) target = $region24
      $region23: #{graph_prediction_forward.4} parent=11 // pred_region
        _
      $region24: #{graph_prediction_forward.4} parent=11 // pred_fallthru
        _
      // Predicated region
      $region25: #{graph_prediction_forward.4} parent=11 // pred_check
        %p364 = pneg %p120
      $region26: #{graph_prediction_forward.4} parent=11 // pred_check_branch
        %366 = sbr.rel (%p364) target = $region28
      $region27: #{graph_prediction_forward.4} parent=11 // pred_region
        %s367 = smul.u32 2, %s29
        %p368 = scmp.lt.s32.totalorder %s367, 1
        %s369 = scalar_select %p368, %s367, 1
        %s370 = smul.addr %s369, 8
        %s371 = scalar_lea.vmem %s3, %s370
        %s372 = smul.u32 2, %s29
      $region28: #{graph_prediction_forward.4} parent=11 // pred_fallthru
        _
      // Predicated region
      $region29: #{graph_prediction_forward.4} parent=11 // pred_check
        %p373 = pneg %p146
      $region30: #{graph_prediction_forward.4} parent=11 // pred_check_branch
        %375 = sbr.rel (%p373) target = $region32
      $region31: #{graph_prediction_forward.4} parent=11 // pred_region
        %p376 = scmp.lt.s32.totalorder %s29, 0
        %s377 = scalar_select %p376, %s29, 0
        %s378 = scalar_lea.vmem %s4, %s377
      $region32: #{graph_prediction_forward.4} parent=11 // pred_fallthru
        _
      // Predicated region
      $region33: #{graph_prediction_forward.4} parent=11 // pred_check
        %p379 = pneg %p172
      $region34: #{graph_prediction_forward.4} parent=11 // pred_check_branch
        %381 = sbr.rel (%p379) target = $region36
      $region35: #{graph_prediction_forward.4} parent=11 // pred_region
        %s382 = smul.u32 2, %s29
        %p383 = scmp.lt.s32.totalorder %s382, 1
        %s384 = scalar_select %p383, %s382, 1
        %s385 = smul.addr %s384, 8
        %s386 = smul.addr %s385, 8
        %s387 = scalar_lea.vmem %s5, %s386
        %s388 = smul.u32 2, %s29
      $region36: #{graph_prediction_forward.4} parent=11 // pred_fallthru
        _
      // Predicated region
      $region37: #{graph_prediction_forward.4} parent=11 // pred_check
        %p389 = pneg %p193
      $region38: #{graph_prediction_forward.4} parent=11 // pred_check_branch
        %391 = sbr.rel (%p389) target = $region40
      $region39: #{graph_prediction_forward.4} parent=11 // pred_region
        _
      $region40: #{graph_prediction_forward.4} parent=11 // pred_fallthru
        _
      // Predicated region
      $region41: #{graph_prediction_forward.4} parent=11 // pred_check
        %p392 = pneg %p214
      $region42: #{graph_prediction_forward.4} parent=11 // pred_check_branch
        %394 = sbr.rel (%p392) target = $region44
      $region43: #{graph_prediction_forward.4} parent=11 // pred_region
        _
      $region44: #{graph_prediction_forward.4} parent=11 // pred_fallthru
        _
      // Predicated region
      $region45: #{graph_prediction_forward.4} parent=11 // pred_check
        %p395 = pneg %p235
      $region46: #{graph_prediction_forward.4} parent=11 // pred_check_branch
        %397 = sbr.rel (%p395) target = $region48
      $region47: #{graph_prediction_forward.4} parent=11 // pred_region
        _
      $region48: #{graph_prediction_forward.4} parent=11 // pred_fallthru
        _
      // Predicated region
      $region49: #{graph_prediction_forward.4} parent=11 // pred_check
        %p398 = pneg %p256
      $region50: #{graph_prediction_forward.4} parent=11 // pred_check_branch
        %400 = sbr.rel (%p398) target = $region52
      $region51: #{graph_prediction_forward.4} parent=11 // pred_region
        _
      $region52: #{graph_prediction_forward.4} parent=11 // pred_fallthru
        _
      // Predicated region
      $region53: #{graph_prediction_forward.4} parent=11 // pred_check
        %p401 = pneg %p277
      $region54: #{graph_prediction_forward.4} parent=11 // pred_check_branch
        %403 = sbr.rel (%p401) target = $region56
      $region55: #{graph_prediction_forward.4} parent=11 // pred_region
        _
      $region56: #{graph_prediction_forward.4} parent=11 // pred_fallthru
        _
      // Predicated region
      $region57: #{graph_prediction_forward.4} parent=11 // pred_check
        %p404 = pneg %p298
      $region58: #{graph_prediction_forward.4} parent=11 // pred_check_branch
        %406 = sbr.rel (%p404) target = $region60
      $region59: #{graph_prediction_forward.4} parent=11 // pred_region
        _
      $region60: #{graph_prediction_forward.4} parent=11 // pred_fallthru
        _
      // Predicated region
      $region61: #{graph_prediction_forward.4} parent=11 // pred_check
        %p407 = pneg %p319
      $region62: #{graph_prediction_forward.4} parent=11 // pred_check_branch
        %409 = sbr.rel (%p407) target = $region64
      $region63: #{graph_prediction_forward.4} parent=11 // pred_region
        _
      $region64: #{graph_prediction_forward.4} parent=11 // pred_fallthru
        _
    $region12: #{graph_prediction_forward.4} parent=5 // pred_fallthru
      _
    %p410 = scmp.lt.s32.totalorder %s19, 2
    // Predicated region
    $region65: #{graph_prediction_forward.4} parent=5 // pred_check
      %p411 = pneg %p410
    $region66: #{graph_prediction_forward.4} parent=5 // pred_check_branch
      %413 = sbr.rel (%p411) target = $region68
    $region67: #{graph_prediction_forward.4} parent=5 // pred_region
      _
    $region68: #{graph_prediction_forward.4} parent=5 // pred_fallthru
      _
    %p414 = scmp.le.s32.totalorder 1, %s19
    %p415 = scmp.lt.s32.totalorder %s19, 3
    %p416 = pnand %p414, %p415
    %p417 = pneg %p416
    // Predicated region
    $region69: #{graph_prediction_forward.4} parent=5 // pred_check
      _
    $region70: #{graph_prediction_forward.4} parent=5 // pred_check_branch
      %419 = sbr.rel (%p416) target = $region72
    $region71: #{graph_prediction_forward.4} parent=5 // pred_region
      %s420 = ssub.s32 %s19, 1
      %p421 = pneg %p52
      %p422 = pneg %p49
      %p423 = pneg %p73
      %p424 = pneg %p70
      %p425 = pneg %p94
      %p426 = pneg %p91
      %s427 = smul.u32 2, %s29
      %p428 = scmp.lt.s32.totalorder %s427, 1
      %s429 = scalar_select %p428, %s427, 1
      %s430 = smul.addr %s429, 8
      %s431 = scalar_lea.vmem %s3, %s430
      %p432 = pneg %p120
      %p433 = pneg %p117
      %p434 = scmp.lt.s32.totalorder %s29, 0
      %s435 = scalar_select %p434, %s29, 0
      %s436 = scalar_lea.vmem %s4, %s435
      %p437 = pneg %p146
      %p438 = pneg %p143
      %s439 = smul.u32 2, %s29
      %p440 = scmp.lt.s32.totalorder %s439, 1
      %s441 = scalar_select %p440, %s439, 1
      %s442 = smul.addr %s441, 8
      %s443 = smul.addr %s442, 8
      %s444 = scalar_lea.vmem %s5, %s443
      %p445 = pneg %p172
      %p446 = pneg %p169
      %p447 = pneg %p193
      %p448 = pneg %p190
      %p449 = pneg %p214
      %p450 = pneg %p211
      %p451 = pneg %p235
      %p452 = pneg %p232
      %p453 = pneg %p256
      %p454 = pneg %p253
      %p455 = pneg %p277
      %p456 = pneg %p274
      %p457 = pneg %p298
      %p458 = pneg %p295
      %p459 = pneg %p319
      %p460 = pneg %p316
      %p461 = pneg %p340
      %p462 = pneg %p337
      %s463 = smul.u32 2, %s29
      %p464 = scmp.lt.s32.totalorder %s463, 1
      %s465 = scalar_select %p464, %s463, 1
      %s466 = smul.addr %s465, 8
      %s467 = scalar_lea.vmem %s3, %s466
      %s468 = smul.u32 2, %s29
      %p469 = scmp.lt.s32.totalorder %s29, 0
      %s470 = scalar_select %p469, %s29, 0
      %s471 = scalar_lea.vmem %s4, %s470
      %s472 = smul.u32 2, %s29
      %p473 = scmp.lt.s32.totalorder %s472, 1
      %s474 = scalar_select %p473, %s472, 1
      %s475 = smul.addr %s474, 8
      %s476 = smul.addr %s475, 8
      %s477 = scalar_lea.vmem %s5, %s476
      %s478 = smul.u32 2, %s29
      %p479 = scmp.eq.s32.totalorder %s28, 0
      %p480 = scmp.eq.s32.totalorder %s29, 0
      %p481 = pnand %p479, %p480
      %p482 = pneg %p481
      // Predicated region
      $region73: #{graph_prediction_forward.4} parent=71 // pred_check
        _
      $region74: #{graph_prediction_forward.4} parent=71 // pred_check_branch
        %484 = sbr.rel (%p481) target = $region76
      $region75: #{graph_prediction_forward.4} parent=71 // pred_region
        %v485 = vld [vmem:[%s0] sm:$0xff]
        %v486 = vld [vmem:[%s1] sm:$0xff]
        %v487 = vld [vmem:[%s1 + $0x8] sm:$0xff]
        %v488 = vld [vmem:[%s2] sm:$0x1]
        %v490 = vperm.slane %v488, 0
        %vm492 = vcmask 130048
        %v494 = vsel %vm492, %v485, 0
        %496 = vmatpush.msra.mxu0 0.0
        %497 = vmatpush.msra.mxu0 0.0
        %498 = vmatpush.msra.mxu0 0.0
        %499 = vmatpush.msra.mxu0 0.0
        %500 = vmatpush.msra.mxu0 0.0
        %501 = vmatpush.msra.mxu0 0.0
        %502 = vmatpush.msra.mxu0 0.0
        %503 = vmatpush.msra.mxu0 0.0
        %504 = vmatpush.msra.mxu0 0.0
        %505 = vmatpush.msra.mxu0 0.0
        %506 = vmatpush.msra.mxu0 0.0
        %507 = vmatpush.msra.mxu0 0.0
        %508 = vmatpush.msra.mxu0 0.0
        %509 = vmatpush.msra.mxu0 0.0
        %510 = vmatpush.msra.mxu0 %v487
        %511 = vmatpush.msra.mxu0 %v486
        %512 = vmatmul.f32.gmra.mxu0 %v494
        %v513 = vpop.f32.mrf.mxu0
        %v514 = vadd.f32 %v490, %v513
        %515 = vdwg.mxu0
        %v516 = vmax.f32 %v514, 0.0
        %vm517 = vcmask 261120
        %518 = vst.msk [vmem:[#allocation2] sm:$0xff] %vm517, %v516
      $region76: #{graph_prediction_forward.4} parent=71 // pred_fallthru
        _
      // Predicated region
      $region77: #{graph_prediction_forward.4} parent=71 // pred_check
        %p519 = pneg %p480
      $region78: #{graph_prediction_forward.4} parent=71 // pred_check_branch
        %521 = sbr.rel (%p519) target = $region80
      $region79: #{graph_prediction_forward.4} parent=71 // pred_region
        %vm522 = vcmask 261120
        %523 = vst.msk [vmem:[#allocation3] sm:$0xff] %vm522, 0.0
      $region80: #{graph_prediction_forward.4} parent=71 // pred_fallthru
        _
      %v524 = vld [vmem:[#allocation2] sm:$0xff]
      %v525 = vld [vmem:[%s467] sm:$0xff]
      %v526 = vld [vmem:[%s467 + $0x8] sm:$0xff]
      %v527 = vlaneseq
      %v528 = vand.u32 %v527, 127
      %529 = vset.pattern.permute.xlu0 0
      %530 = vperm.xlu0 %529, %v525
      %v531 = vpop.permute.xlu0 %530
      %532 = vset.pattern.permute.xlu0 0
      %533 = vperm.xlu0 %532, %v526
      %v534 = vpop.permute.xlu0 %533
      %vm535 = vcmp.eq.s32.totalorder %v531, %v528
      %vm536 = vcmp.eq.s32.totalorder %v534, %v528
      %v537 = vsel %vm535, 1, 0
      %v538 = vsel %vm536, 1, 0
      %v539 = vcvt.s32.f32 %v537
      %v540 = vcvt.s32.f32 %v538
      %vm541 = vcmask 64512
      %v543 = vsel %vm541, %v539, 0
      %v546 = vsel %vm541, %v540, 0
      %548 = vmatpush.msra.mxu0 0.0
      %549 = vmatpush.msra.mxu0 0.0
      %550 = vmatpush.msra.mxu0 0.0
      %551 = vmatpush.msra.mxu0 0.0
      %552 = vmatpush.msra.mxu0 0.0
      %553 = vmatpush.msra.mxu0 0.0
      %554 = vmatpush.msra.mxu0 0.0
      %555 = vmatpush.msra.mxu0 0.0
      %556 = vmatpush.msra.mxu0 0.0
      %557 = vmatpush.msra.mxu0 0.0
      %558 = vmatpush.msra.mxu0 0.0
      %559 = vmatpush.msra.mxu0 0.0
      %560 = vmatpush.msra.mxu0 0.0
      %561 = vmatpush.msra.mxu0 0.0
      %562 = vmatpush.msra.mxu0 0.0
      %563 = vmatpush.msra.mxu0 %v524
      %564 = vmatmul.f32.gmra.mxu0 %v543
      %v565 = vpop.f32.mrf.mxu0
      %v566 = vadd.f32 0.0, %v565
      %567 = vmatmul.f32.gmra.mxu0 %v546
      %v568 = vpop.f32.mrf.mxu0
      %v569 = vadd.f32 0.0, %v568
      %570 = vdwg.mxu0
      %v571 = vld [vmem:[%s7] sm:$0xff]
      %v572 = vld [vmem:[%s7 + $0x8] sm:$0xff]
      %v573 = vld [vmem:[%s7 + $0x10] sm:$0xff]
      %v574 = vld [vmem:[%s7 + $0x18] sm:$0xff]
      %v575 = vld [vmem:[%s7 + $0x20] sm:$0xff]
      %v576 = vld [vmem:[%s7 + $0x28] sm:$0xff]
      %v577 = vld [vmem:[%s7 + $0x30] sm:$0xff]
      %v578 = vld [vmem:[%s7 + $0x38] sm:$0xff]
      %v579 = vld [vmem:[%s7 + $0x40] sm:$0xff]
      %v580 = vld [vmem:[%s7 + $0x48] sm:$0xff]
      %v581 = vld [vmem:[%s7 + $0x50] sm:$0xff]
      %v582 = vld [vmem:[%s7 + $0x58] sm:$0xff]
      %v583 = vld [vmem:[%s7 + $0x60] sm:$0xff]
      %v584 = vld [vmem:[%s7 + $0x68] sm:$0xff]
      %v585 = vld [vmem:[%s7 + $0x70] sm:$0xff]
      %v586 = vld [vmem:[%s7 + $0x78] sm:$0xff]
      %v587 = vld [vmem:[%s7 + $0x80] sm:$0xff]
      %v588 = vld [vmem:[%s7 + $0x88] sm:$0xff]
      %v589 = vld [vmem:[%s7 + $0x90] sm:$0xff]
      %v590 = vld [vmem:[%s7 + $0x98] sm:$0xff]
      %v591 = vld [vmem:[%s7 + $0xa0] sm:$0xff]
      %v592 = vld [vmem:[%s7 + $0xa8] sm:$0xff]
      %v593 = vld [vmem:[%s7 + $0xb0] sm:$0xff]
      %v594 = vld [vmem:[%s7 + $0xb8] sm:$0xff]
      %v595 = vld [vmem:[%s7 + $0xc0] sm:$0xff]
      %v596 = vld [vmem:[%s7 + $0xc8] sm:$0xff]
      %v597 = vld [vmem:[%s7 + $0xd0] sm:$0xff]
      %v598 = vld [vmem:[%s7 + $0xd8] sm:$0xff]
      %v599 = vld [vmem:[%s7 + $0xe0] sm:$0xff]
      %v600 = vld [vmem:[%s7 + $0xe8] sm:$0xff]
      %v601 = vld [vmem:[%s7 + $0xf0] sm:$0xff]
      %v602 = vld [vmem:[%s7 + $0xf8] sm:$0xff]
      %vm603 = vcmask 261120
      %v605 = vsel %vm603, %v566, 0
      %v608 = vsel %vm603, %v569, 0
      %610 = vmatpush.msra.mxu0 0.0
      %611 = vmatpush.msra.mxu0 0.0
      %612 = vmatpush.msra.mxu0 0.0
      %613 = vmatpush.msra.mxu0 0.0
      %614 = vmatpush.msra.mxu0 0.0
      %615 = vmatpush.msra.mxu0 0.0
      %616 = vmatpush.msra.mxu0 0.0
      %617 = vmatpush.msra.mxu0 0.0
      %618 = vmatpush.msra.mxu0 0.0
      %619 = vmatpush.msra.mxu0 0.0
      %620 = vmatpush.msra.mxu0 0.0
      %621 = vmatpush.msra.mxu0 0.0
      %622 = vmatpush.msra.mxu0 %v595
      %623 = vmatpush.msra.mxu0 %v587
      %624 = vmatpush.msra.mxu0 %v579
      %625 = vmatpush.msra.mxu0 %v571
      %626 = vmatmul.f32.gmra.mxu0 %v605
      %v627 = vpop.f32.mrf.mxu0
      %v628 = vadd.f32 0.0, %v627
      %629 = vmatmul.f32.gmra.mxu0 %v608
      %v630 = vpop.f32.mrf.mxu0
      %v631 = vadd.f32 0.0, %v630
      %632 = vdwg.mxu0
      %633 = vmatpush.msra.mxu0 0.0
      %634 = vmatpush.msra.mxu0 0.0
      %635 = vmatpush.msra.mxu0 0.0
      %636 = vmatpush.msra.mxu0 0.0
      %637 = vmatpush.msra.mxu0 0.0
      %638 = vmatpush.msra.mxu0 0.0
      %639 = vmatpush.msra.mxu0 0.0
      %640 = vmatpush.msra.mxu0 0.0
      %641 = vmatpush.msra.mxu0 0.0
      %642 = vmatpush.msra.mxu0 0.0
      %643 = vmatpush.msra.mxu0 0.0
      %644 = vmatpush.msra.mxu0 0.0
      %645 = vmatpush.msra.mxu0 %v596
      %646 = vmatpush.msra.mxu0 %v588
      %647 = vmatpush.msra.mxu0 %v580
      %648 = vmatpush.msra.mxu0 %v572
      %649 = vmatmul.f32.gmra.mxu0 %v605
      %v650 = vpop.f32.mrf.mxu0
      %v651 = vadd.f32 0.0, %v650
      %652 = vmatmul.f32.gmra.mxu0 %v608
      %v653 = vpop.f32.mrf.mxu0
      %v654 = vadd.f32 0.0, %v653
      %655 = vdwg.mxu0
      %656 = vmatpush.msra.mxu0 0.0
      %657 = vmatpush.msra.mxu0 0.0
      %658 = vmatpush.msra.mxu0 0.0
      %659 = vmatpush.msra.mxu0 0.0
      %660 = vmatpush.msra.mxu0 0.0
      %661 = vmatpush.msra.mxu0 0.0
      %662 = vmatpush.msra.mxu0 0.0
      %663 = vmatpush.msra.mxu0 0.0
      %664 = vmatpush.msra.mxu0 0.0
      %665 = vmatpush.msra.mxu0 0.0
      %666 = vmatpush.msra.mxu0 0.0
      %667 = vmatpush.msra.mxu0 0.0
      %668 = vmatpush.msra.mxu0 %v597
      %669 = vmatpush.msra.mxu0 %v589
      %670 = vmatpush.msra.mxu0 %v581
      %671 = vmatpush.msra.mxu0 %v573
      %672 = vmatmul.f32.gmra.mxu0 %v605
      %v673 = vpop.f32.mrf.mxu0
      %v674 = vadd.f32 0.0, %v673
      %675 = vmatmul.f32.gmra.mxu0 %v608
      %v676 = vpop.f32.mrf.mxu0
      %v677 = vadd.f32 0.0, %v676
      %678 = vdwg.mxu0
      %679 = vmatpush.msra.mxu0 0.0
      %680 = vmatpush.msra.mxu0 0.0
      %681 = vmatpush.msra.mxu0 0.0
      %682 = vmatpush.msra.mxu0 0.0
      %683 = vmatpush.msra.mxu0 0.0
      %684 = vmatpush.msra.mxu0 0.0
      %685 = vmatpush.msra.mxu0 0.0
      %686 = vmatpush.msra.mxu0 0.0
      %687 = vmatpush.msra.mxu0 0.0
      %688 = vmatpush.msra.mxu0 0.0
      %689 = vmatpush.msra.mxu0 0.0
      %690 = vmatpush.msra.mxu0 0.0
      %691 = vmatpush.msra.mxu0 %v598
      %692 = vmatpush.msra.mxu0 %v590
      %693 = vmatpush.msra.mxu0 %v582
      %694 = vmatpush.msra.mxu0 %v574
      %695 = vmatmul.f32.gmra.mxu0 %v605
      %v696 = vpop.f32.mrf.mxu0
      %v697 = vadd.f32 0.0, %v696
      %698 = vmatmul.f32.gmra.mxu0 %v608
      %v699 = vpop.f32.mrf.mxu0
      %v700 = vadd.f32 0.0, %v699
      %701 = vdwg.mxu0
      %702 = vmatpush.msra.mxu0 0.0
      %703 = vmatpush.msra.mxu0 0.0
      %704 = vmatpush.msra.mxu0 0.0
      %705 = vmatpush.msra.mxu0 0.0
      %706 = vmatpush.msra.mxu0 0.0
      %707 = vmatpush.msra.mxu0 0.0
      %708 = vmatpush.msra.mxu0 0.0
      %709 = vmatpush.msra.mxu0 0.0
      %710 = vmatpush.msra.mxu0 0.0
      %711 = vmatpush.msra.mxu0 0.0
      %712 = vmatpush.msra.mxu0 0.0
      %713 = vmatpush.msra.mxu0 0.0
      %714 = vmatpush.msra.mxu0 %v599
      %715 = vmatpush.msra.mxu0 %v591
      %716 = vmatpush.msra.mxu0 %v583
      %717 = vmatpush.msra.mxu0 %v575
      %718 = vmatmul.f32.gmra.mxu0 %v605
      %v719 = vpop.f32.mrf.mxu0
      %v720 = vadd.f32 0.0, %v719
      %721 = vmatmul.f32.gmra.mxu0 %v608
      %v722 = vpop.f32.mrf.mxu0
      %v723 = vadd.f32 0.0, %v722
      %724 = vdwg.mxu0
      %725 = vmatpush.msra.mxu0 0.0
      %726 = vmatpush.msra.mxu0 0.0
      %727 = vmatpush.msra.mxu0 0.0
      %728 = vmatpush.msra.mxu0 0.0
      %729 = vmatpush.msra.mxu0 0.0
      %730 = vmatpush.msra.mxu0 0.0
      %731 = vmatpush.msra.mxu0 0.0
      %732 = vmatpush.msra.mxu0 0.0
      %733 = vmatpush.msra.mxu0 0.0
      %734 = vmatpush.msra.mxu0 0.0
      %735 = vmatpush.msra.mxu0 0.0
      %736 = vmatpush.msra.mxu0 0.0
      %737 = vmatpush.msra.mxu0 %v600
      %738 = vmatpush.msra.mxu0 %v592
      %739 = vmatpush.msra.mxu0 %v584
      %740 = vmatpush.msra.mxu0 %v576
      %741 = vmatmul.f32.gmra.mxu0 %v605
      %v742 = vpop.f32.mrf.mxu0
      %v743 = vadd.f32 0.0, %v742
      %744 = vmatmul.f32.gmra.mxu0 %v608
      %v745 = vpop.f32.mrf.mxu0
      %v746 = vadd.f32 0.0, %v745
      %747 = vdwg.mxu0
      %748 = vmatpush.msra.mxu0 0.0
      %749 = vmatpush.msra.mxu0 0.0
      %750 = vmatpush.msra.mxu0 0.0
      %751 = vmatpush.msra.mxu0 0.0
      %752 = vmatpush.msra.mxu0 0.0
      %753 = vmatpush.msra.mxu0 0.0
      %754 = vmatpush.msra.mxu0 0.0
      %755 = vmatpush.msra.mxu0 0.0
      %756 = vmatpush.msra.mxu0 0.0
      %757 = vmatpush.msra.mxu0 0.0
      %758 = vmatpush.msra.mxu0 0.0
      %759 = vmatpush.msra.mxu0 0.0
      %760 = vmatpush.msra.mxu0 %v601
      %761 = vmatpush.msra.mxu0 %v593
      %762 = vmatpush.msra.mxu0 %v585
      %763 = vmatpush.msra.mxu0 %v577
      %764 = vmatmul.f32.gmra.mxu0 %v605
      %v765 = vpop.f32.mrf.mxu0
      %v766 = vadd.f32 0.0, %v765
      %767 = vmatmul.f32.gmra.mxu0 %v608
      %v768 = vpop.f32.mrf.mxu0
      %v769 = vadd.f32 0.0, %v768
      %770 = vdwg.mxu0
      %771 = vmatpush.msra.mxu0 0.0
      %772 = vmatpush.msra.mxu0 0.0
      %773 = vmatpush.msra.mxu0 0.0
      %774 = vmatpush.msra.mxu0 0.0
      %775 = vmatpush.msra.mxu0 0.0
      %776 = vmatpush.msra.mxu0 0.0
      %777 = vmatpush.msra.mxu0 0.0
      %778 = vmatpush.msra.mxu0 0.0
      %779 = vmatpush.msra.mxu0 0.0
      %780 = vmatpush.msra.mxu0 0.0
      %781 = vmatpush.msra.mxu0 0.0
      %782 = vmatpush.msra.mxu0 0.0
      %783 = vmatpush.msra.mxu0 %v602
      %784 = vmatpush.msra.mxu0 %v594
      %785 = vmatpush.msra.mxu0 %v586
      %786 = vmatpush.msra.mxu0 %v578
      %787 = vmatmul.f32.gmra.mxu0 %v605
      %v788 = vpop.f32.mrf.mxu0
      %v789 = vadd.f32 0.0, %v788
      %790 = vmatmul.f32.gmra.mxu0 %v608
      %v791 = vpop.f32.mrf.mxu0
      %v792 = vadd.f32 0.0, %v791
      %793 = vdwg.mxu0
      %v794 = vld [vmem:[%s477] sm:$0xff]
      %v795 = vld [vmem:[%s477 + $0x8] sm:$0xff]
      %v796 = vld [vmem:[%s477 + $0x10] sm:$0xff]
      %v797 = vld [vmem:[%s477 + $0x18] sm:$0xff]
      %v798 = vld [vmem:[%s477 + $0x20] sm:$0xff]
      %v799 = vld [vmem:[%s477 + $0x28] sm:$0xff]
      %v800 = vld [vmem:[%s477 + $0x30] sm:$0xff]
      %v801 = vld [vmem:[%s477 + $0x38] sm:$0xff]
      %v802 = vld [vmem:[%s477 + $0x40] sm:$0xff]
      %v803 = vld [vmem:[%s477 + $0x48] sm:$0xff]
      %v804 = vld [vmem:[%s477 + $0x50] sm:$0xff]
      %v805 = vld [vmem:[%s477 + $0x58] sm:$0xff]
      %v806 = vld [vmem:[%s477 + $0x60] sm:$0xff]
      %v807 = vld [vmem:[%s477 + $0x68] sm:$0xff]
      %v808 = vld [vmem:[%s477 + $0x70] sm:$0xff]
      %v809 = vld [vmem:[%s477 + $0x78] sm:$0xff]
      %v810 = vmul.f32 %v628, %v794
      %v811 = vmul.f32 %v651, %v795
      %v812 = vmul.f32 %v674, %v796
      %v813 = vmul.f32 %v697, %v797
      %v814 = vmul.f32 %v720, %v798
      %v815 = vmul.f32 %v743, %v799
      %v816 = vmul.f32 %v766, %v800
      %v817 = vmul.f32 %v789, %v801
      %v818 = vmul.f32 %v631, %v802
      %v819 = vmul.f32 %v654, %v803
      %v820 = vmul.f32 %v677, %v804
      %v821 = vmul.f32 %v700, %v805
      %v822 = vmul.f32 %v723, %v806
      %v823 = vmul.f32 %v746, %v807
      %v824 = vmul.f32 %v769, %v808
      %v825 = vmul.f32 %v792, %v809
      %v826 = vld [vmem:[%s8] sm:$0xff]
      %v827 = vld [vmem:[%s8 + $0x8] sm:$0xff]
      %v828 = vld [vmem:[%s8 + $0x10] sm:$0xff]
      %v829 = vld [vmem:[%s8 + $0x18] sm:$0xff]
      %v830 = vld [vmem:[%s8 + $0x20] sm:$0xff]
      %v831 = vld [vmem:[%s8 + $0x28] sm:$0xff]
      %v832 = vld [vmem:[%s8 + $0x30] sm:$0xff]
      %v833 = vld [vmem:[%s8 + $0x38] sm:$0xff]
      %v834 = vld [vmem:[%s8 + $0x40] sm:$0xff]
      %v835 = vld [vmem:[%s8 + $0x48] sm:$0xff]
      %v836 = vld [vmem:[%s8 + $0x50] sm:$0xff]
      %v837 = vld [vmem:[%s8 + $0x58] sm:$0xff]
      %v838 = vld [vmem:[%s8 + $0x60] sm:$0xff]
      %v839 = vld [vmem:[%s8 + $0x68] sm:$0xff]
      %v840 = vld [vmem:[%s8 + $0x70] sm:$0xff]
      %v841 = vld [vmem:[%s8 + $0x78] sm:$0xff]
      %v842 = vld [vmem:[%s8 + $0x80] sm:$0xff]
      %v843 = vld [vmem:[%s8 + $0x88] sm:$0xff]
      %v844 = vld [vmem:[%s8 + $0x90] sm:$0xff]
      %v845 = vld [vmem:[%s8 + $0x98] sm:$0xff]
      %v846 = vld [vmem:[%s8 + $0xa0] sm:$0xff]
      %v847 = vld [vmem:[%s8 + $0xa8] sm:$0xff]
      %v848 = vld [vmem:[%s8 + $0xb0] sm:$0xff]
      %v849 = vld [vmem:[%s8 + $0xb8] sm:$0xff]
      %v850 = vld [vmem:[%s8 + $0xc0] sm:$0xff]
      %v851 = vld [vmem:[%s8 + $0xc8] sm:$0xff]
      %v852 = vld [vmem:[%s8 + $0xd0] sm:$0xff]
      %v853 = vld [vmem:[%s8 + $0xd8] sm:$0xff]
      %v854 = vld [vmem:[%s8 + $0xe0] sm:$0xff]
      %v855 = vld [vmem:[%s8 + $0xe8] sm:$0xff]
      %v856 = vld [vmem:[%s8 + $0xf0] sm:$0xff]
      %v857 = vld [vmem:[%s8 + $0xf8] sm:$0xff]
      %v858 = vld [vmem:[%s8 + $0x100] sm:$0xff]
      %v859 = vld [vmem:[%s8 + $0x108] sm:$0xff]
      %v860 = vld [vmem:[%s8 + $0x110] sm:$0xff]
      %v861 = vld [vmem:[%s8 + $0x118] sm:$0xff]
      %v862 = vld [vmem:[%s8 + $0x120] sm:$0xff]
      %v863 = vld [vmem:[%s8 + $0x128] sm:$0xff]
      %v864 = vld [vmem:[%s8 + $0x130] sm:$0xff]
      %v865 = vld [vmem:[%s8 + $0x138] sm:$0xff]
      %v866 = vld [vmem:[%s8 + $0x140] sm:$0xff]
      %v867 = vld [vmem:[%s8 + $0x148] sm:$0xff]
      %v868 = vld [vmem:[%s8 + $0x150] sm:$0xff]
      %v869 = vld [vmem:[%s8 + $0x158] sm:$0xff]
      %v870 = vld [vmem:[%s8 + $0x160] sm:$0xff]
      %v871 = vld [vmem:[%s8 + $0x168] sm:$0xff]
      %v872 = vld [vmem:[%s8 + $0x170] sm:$0xff]
      %v873 = vld [vmem:[%s8 + $0x178] sm:$0xff]
      %v874 = vld [vmem:[%s8 + $0x180] sm:$0xff]
      %v875 = vld [vmem:[%s8 + $0x188] sm:$0xff]
      %v876 = vld [vmem:[%s8 + $0x190] sm:$0xff]
      %v877 = vld [vmem:[%s8 + $0x198] sm:$0xff]
      %v878 = vld [vmem:[%s8 + $0x1a0] sm:$0xff]
      %v879 = vld [vmem:[%s8 + $0x1a8] sm:$0xff]
      %v880 = vld [vmem:[%s8 + $0x1b0] sm:$0xff]
      %v881 = vld [vmem:[%s8 + $0x1b8] sm:$0xff]
      %v882 = vld [vmem:[%s8 + $0x1c0] sm:$0xff]
      %v883 = vld [vmem:[%s8 + $0x1c8] sm:$0xff]
      %v884 = vld [vmem:[%s8 + $0x1d0] sm:$0xff]
      %v885 = vld [vmem:[%s8 + $0x1d8] sm:$0xff]
      %v886 = vld [vmem:[%s8 + $0x1e0] sm:$0xff]
      %v887 = vld [vmem:[%s8 + $0x1e8] sm:$0xff]
      %v888 = vld [vmem:[%s8 + $0x1f0] sm:$0xff]
      %v889 = vld [vmem:[%s8 + $0x1f8] sm:$0xff]
      %v890 = vld [vmem:[%s8 + $0x200] sm:$0xff]
      %v891 = vld [vmem:[%s8 + $0x208] sm:$0xff]
      %v892 = vld [vmem:[%s8 + $0x210] sm:$0xff]
      %v893 = vld [vmem:[%s8 + $0x218] sm:$0xff]
      %v894 = vld [vmem:[%s8 + $0x220] sm:$0xff]
      %v895 = vld [vmem:[%s8 + $0x228] sm:$0xff]
      %v896 = vld [vmem:[%s8 + $0x230] sm:$0xff]
      %v897 = vld [vmem:[%s8 + $0x238] sm:$0xff]
      %v898 = vld [vmem:[%s8 + $0x240] sm:$0xff]
      %v899 = vld [vmem:[%s8 + $0x248] sm:$0xff]
      %v900 = vld [vmem:[%s8 + $0x250] sm:$0xff]
      %v901 = vld [vmem:[%s8 + $0x258] sm:$0xff]
      %v902 = vld [vmem:[%s8 + $0x260] sm:$0xff]
      %v903 = vld [vmem:[%s8 + $0x268] sm:$0xff]
      %v904 = vld [vmem:[%s8 + $0x270] sm:$0xff]
      %v905 = vld [vmem:[%s8 + $0x278] sm:$0xff]
      %v906 = vld [vmem:[%s8 + $0x280] sm:$0xff]
      %v907 = vld [vmem:[%s8 + $0x288] sm:$0xff]
      %v908 = vld [vmem:[%s8 + $0x290] sm:$0xff]
      %v909 = vld [vmem:[%s8 + $0x298] sm:$0xff]
      %v910 = vld [vmem:[%s8 + $0x2a0] sm:$0xff]
      %v911 = vld [vmem:[%s8 + $0x2a8] sm:$0xff]
      %v912 = vld [vmem:[%s8 + $0x2b0] sm:$0xff]
      %v913 = vld [vmem:[%s8 + $0x2b8] sm:$0xff]
      %v914 = vld [vmem:[%s8 + $0x2c0] sm:$0xff]
      %v915 = vld [vmem:[%s8 + $0x2c8] sm:$0xff]
      %v916 = vld [vmem:[%s8 + $0x2d0] sm:$0xff]
      %v917 = vld [vmem:[%s8 + $0x2d8] sm:$0xff]
      %v918 = vld [vmem:[%s8 + $0x2e0] sm:$0xff]
      %v919 = vld [vmem:[%s8 + $0x2e8] sm:$0xff]
      %v920 = vld [vmem:[%s8 + $0x2f0] sm:$0xff]
      %v921 = vld [vmem:[%s8 + $0x2f8] sm:$0xff]
      %v922 = vld [vmem:[%s8 + $0x300] sm:$0xff]
      %v923 = vld [vmem:[%s8 + $0x308] sm:$0xff]
      %v924 = vld [vmem:[%s8 + $0x310] sm:$0xff]
      %v925 = vld [vmem:[%s8 + $0x318] sm:$0xff]
      %v926 = vld [vmem:[%s8 + $0x320] sm:$0xff]
      %v927 = vld [vmem:[%s8 + $0x328] sm:$0xff]
      %v928 = vld [vmem:[%s8 + $0x330] sm:$0xff]
      %v929 = vld [vmem:[%s8 + $0x338] sm:$0xff]
      %v930 = vld [vmem:[%s8 + $0x340] sm:$0xff]
      %v931 = vld [vmem:[%s8 + $0x348] sm:$0xff]
      %v932 = vld [vmem:[%s8 + $0x350] sm:$0xff]
      %v933 = vld [vmem:[%s8 + $0x358] sm:$0xff]
      %v934 = vld [vmem:[%s8 + $0x360] sm:$0xff]
      %v935 = vld [vmem:[%s8 + $0x368] sm:$0xff]
      %v936 = vld [vmem:[%s8 + $0x370] sm:$0xff]
      %v937 = vld [vmem:[%s8 + $0x378] sm:$0xff]
      %v938 = vld [vmem:[%s8 + $0x380] sm:$0xff]
      %v939 = vld [vmem:[%s8 + $0x388] sm:$0xff]
      %v940 = vld [vmem:[%s8 + $0x390] sm:$0xff]
      %v941 = vld [vmem:[%s8 + $0x398] sm:$0xff]
      %v942 = vld [vmem:[%s8 + $0x3a0] sm:$0xff]
      %v943 = vld [vmem:[%s8 + $0x3a8] sm:$0xff]
      %v944 = vld [vmem:[%s8 + $0x3b0] sm:$0xff]
      %v945 = vld [vmem:[%s8 + $0x3b8] sm:$0xff]
      %v946 = vld [vmem:[%s8 + $0x3c0] sm:$0xff]
      %v947 = vld [vmem:[%s8 + $0x3c8] sm:$0xff]
      %v948 = vld [vmem:[%s8 + $0x3d0] sm:$0xff]
      %v949 = vld [vmem:[%s8 + $0x3d8] sm:$0xff]
      %v950 = vld [vmem:[%s8 + $0x3e0] sm:$0xff]
      %v951 = vld [vmem:[%s8 + $0x3e8] sm:$0xff]
      %v952 = vld [vmem:[%s8 + $0x3f0] sm:$0xff]
      %v953 = vld [vmem:[%s8 + $0x3f8] sm:$0xff]
      %954 = vmatpush.msra.mxu0 %v841
      %955 = vmatpush.msra.mxu0 %v840
      %956 = vmatpush.msra.mxu0 %v839
      %957 = vmatpush.msra.mxu0 %v838
      %958 = vmatpush.msra.mxu0 %v837
      %959 = vmatpush.msra.mxu0 %v836
      %960 = vmatpush.msra.mxu0 %v835
      %961 = vmatpush.msra.mxu0 %v834
      %962 = vmatpush.msra.mxu0 %v833
      %963 = vmatpush.msra.mxu0 %v832
      %964 = vmatpush.msra.mxu0 %v831
      %965 = vmatpush.msra.mxu0 %v830
      %966 = vmatpush.msra.mxu0 %v829
      %967 = vmatpush.msra.mxu0 %v828
      %968 = vmatpush.msra.mxu0 %v827
      %969 = vmatpush.msra.mxu0 %v826
      %970 = vmatmul.f32.gmra.mxu0 %v810
      %v971 = vpop.f32.mrf.mxu0
      %v972 = vadd.f32 0.0, %v971
      %973 = vmatmul.f32.gmra.mxu0 %v818
      %v974 = vpop.f32.mrf.mxu0
      %v975 = vadd.f32 0.0, %v974
      %976 = vdwg.mxu0
      %977 = vmatpush.msra.mxu0 %v857
      %978 = vmatpush.msra.mxu0 %v856
      %979 = vmatpush.msra.mxu0 %v855
      %980 = vmatpush.msra.mxu0 %v854
      %981 = vmatpush.msra.mxu0 %v853
      %982 = vmatpush.msra.mxu0 %v852
      %983 = vmatpush.msra.mxu0 %v851
      %984 = vmatpush.msra.mxu0 %v850
      %985 = vmatpush.msra.mxu0 %v849
      %986 = vmatpush.msra.mxu0 %v848
      %987 = vmatpush.msra.mxu0 %v847
      %988 = vmatpush.msra.mxu0 %v846
      %989 = vmatpush.msra.mxu0 %v845
      %990 = vmatpush.msra.mxu0 %v844
      %991 = vmatpush.msra.mxu0 %v843
      %992 = vmatpush.msra.mxu0 %v842
      %993 = vmatmul.f32.gmra.mxu0 %v811
      %v994 = vpop.f32.mrf.mxu0
      %v995 = vadd.f32 %v972, %v994
      %996 = vmatmul.f32.gmra.mxu0 %v819
      %v997 = vpop.f32.mrf.mxu0
      %v998 = vadd.f32 %v975, %v997
      %999 = vdwg.mxu0
      %1000 = vmatpush.msra.mxu0 %v873
      %1001 = vmatpush.msra.mxu0 %v872
      %1002 = vmatpush.msra.mxu0 %v871
      %1003 = vmatpush.msra.mxu0 %v870
      %1004 = vmatpush.msra.mxu0 %v869
      %1005 = vmatpush.msra.mxu0 %v868
      %1006 = vmatpush.msra.mxu0 %v867
      %1007 = vmatpush.msra.mxu0 %v866
      %1008 = vmatpush.msra.mxu0 %v865
      %1009 = vmatpush.msra.mxu0 %v864
      %1010 = vmatpush.msra.mxu0 %v863
      %1011 = vmatpush.msra.mxu0 %v862
      %1012 = vmatpush.msra.mxu0 %v861
      %1013 = vmatpush.msra.mxu0 %v860
      %1014 = vmatpush.msra.mxu0 %v859
      %1015 = vmatpush.msra.mxu0 %v858
      %1016 = vmatmul.f32.gmra.mxu0 %v812
      %v1017 = vpop.f32.mrf.mxu0
      %v1018 = vadd.f32 %v995, %v1017
      %1019 = vmatmul.f32.gmra.mxu0 %v820
      %v1020 = vpop.f32.mrf.mxu0
      %v1021 = vadd.f32 %v998, %v1020
      %1022 = vdwg.mxu0
      %1023 = vmatpush.msra.mxu0 %v889
      %1024 = vmatpush.msra.mxu0 %v888
      %1025 = vmatpush.msra.mxu0 %v887
      %1026 = vmatpush.msra.mxu0 %v886
      %1027 = vmatpush.msra.mxu0 %v885
      %1028 = vmatpush.msra.mxu0 %v884
      %1029 = vmatpush.msra.mxu0 %v883
      %1030 = vmatpush.msra.mxu0 %v882
      %1031 = vmatpush.msra.mxu0 %v881
      %1032 = vmatpush.msra.mxu0 %v880
      %1033 = vmatpush.msra.mxu0 %v879
      %1034 = vmatpush.msra.mxu0 %v878
      %1035 = vmatpush.msra.mxu0 %v877
      %1036 = vmatpush.msra.mxu0 %v876
      %1037 = vmatpush.msra.mxu0 %v875
      %1038 = vmatpush.msra.mxu0 %v874
      %1039 = vmatmul.f32.gmra.mxu0 %v813
      %v1040 = vpop.f32.mrf.mxu0
      %v1041 = vadd.f32 %v1018, %v1040
      %1042 = vmatmul.f32.gmra.mxu0 %v821
      %v1043 = vpop.f32.mrf.mxu0
      %v1044 = vadd.f32 %v1021, %v1043
      %1045 = vdwg.mxu0
      %1046 = vmatpush.msra.mxu0 %v905
      %1047 = vmatpush.msra.mxu0 %v904
      %1048 = vmatpush.msra.mxu0 %v903
      %1049 = vmatpush.msra.mxu0 %v902
      %1050 = vmatpush.msra.mxu0 %v901
      %1051 = vmatpush.msra.mxu0 %v900
      %1052 = vmatpush.msra.mxu0 %v899
      %1053 = vmatpush.msra.mxu0 %v898
      %1054 = vmatpush.msra.mxu0 %v897
      %1055 = vmatpush.msra.mxu0 %v896
      %1056 = vmatpush.msra.mxu0 %v895
      %1057 = vmatpush.msra.mxu0 %v894
      %1058 = vmatpush.msra.mxu0 %v893
      %1059 = vmatpush.msra.mxu0 %v892
      %1060 = vmatpush.msra.mxu0 %v891
      %1061 = vmatpush.msra.mxu0 %v890
      %1062 = vmatmul.f32.gmra.mxu0 %v814
      %v1063 = vpop.f32.mrf.mxu0
      %v1064 = vadd.f32 %v1041, %v1063
      %1065 = vmatmul.f32.gmra.mxu0 %v822
      %v1066 = vpop.f32.mrf.mxu0
      %v1067 = vadd.f32 %v1044, %v1066
      %1068 = vdwg.mxu0
      %1069 = vmatpush.msra.mxu0 %v921
      %1070 = vmatpush.msra.mxu0 %v920
      %1071 = vmatpush.msra.mxu0 %v919
      %1072 = vmatpush.msra.mxu0 %v918
      %1073 = vmatpush.msra.mxu0 %v917
      %1074 = vmatpush.msra.mxu0 %v916
      %1075 = vmatpush.msra.mxu0 %v915
      %1076 = vmatpush.msra.mxu0 %v914
      %1077 = vmatpush.msra.mxu0 %v913
      %1078 = vmatpush.msra.mxu0 %v912
      %1079 = vmatpush.msra.mxu0 %v911
      %1080 = vmatpush.msra.mxu0 %v910
      %1081 = vmatpush.msra.mxu0 %v909
      %1082 = vmatpush.msra.mxu0 %v908
      %1083 = vmatpush.msra.mxu0 %v907
      %1084 = vmatpush.msra.mxu0 %v906
      %1085 = vmatmul.f32.gmra.mxu0 %v815
      %v1086 = vpop.f32.mrf.mxu0
      %v1087 = vadd.f32 %v1064, %v1086
      %1088 = vmatmul.f32.gmra.mxu0 %v823
      %v1089 = vpop.f32.mrf.mxu0
      %v1090 = vadd.f32 %v1067, %v1089
      %1091 = vdwg.mxu0
      %1092 = vmatpush.msra.mxu0 %v937
      %1093 = vmatpush.msra.mxu0 %v936
      %1094 = vmatpush.msra.mxu0 %v935
      %1095 = vmatpush.msra.mxu0 %v934
      %1096 = vmatpush.msra.mxu0 %v933
      %1097 = vmatpush.msra.mxu0 %v932
      %1098 = vmatpush.msra.mxu0 %v931
      %1099 = vmatpush.msra.mxu0 %v930
      %1100 = vmatpush.msra.mxu0 %v929
      %1101 = vmatpush.msra.mxu0 %v928
      %1102 = vmatpush.msra.mxu0 %v927
      %1103 = vmatpush.msra.mxu0 %v926
      %1104 = vmatpush.msra.mxu0 %v925
      %1105 = vmatpush.msra.mxu0 %v924
      %1106 = vmatpush.msra.mxu0 %v923
      %1107 = vmatpush.msra.mxu0 %v922
      %1108 = vmatmul.f32.gmra.mxu0 %v816
      %v1109 = vpop.f32.mrf.mxu0
      %v1110 = vadd.f32 %v1087, %v1109
      %1111 = vmatmul.f32.gmra.mxu0 %v824
      %v1112 = vpop.f32.mrf.mxu0
      %v1113 = vadd.f32 %v1090, %v1112
      %1114 = vdwg.mxu0
      %1115 = vmatpush.msra.mxu0 %v953
      %1116 = vmatpush.msra.mxu0 %v952
      %1117 = vmatpush.msra.mxu0 %v951
      %1118 = vmatpush.msra.mxu0 %v950
      %1119 = vmatpush.msra.mxu0 %v949
      %1120 = vmatpush.msra.mxu0 %v948
      %1121 = vmatpush.msra.mxu0 %v947
      %1122 = vmatpush.msra.mxu0 %v946
      %1123 = vmatpush.msra.mxu0 %v945
      %1124 = vmatpush.msra.mxu0 %v944
      %1125 = vmatpush.msra.mxu0 %v943
      %1126 = vmatpush.msra.mxu0 %v942
      %1127 = vmatpush.msra.mxu0 %v941
      %1128 = vmatpush.msra.mxu0 %v940
      %1129 = vmatpush.msra.mxu0 %v939
      %1130 = vmatpush.msra.mxu0 %v938
      %1131 = vmatmul.f32.gmra.mxu0 %v817
      %v1132 = vpop.f32.mrf.mxu0
      %v1133 = vadd.f32 %v1110, %v1132
      %1134 = vmatmul.f32.gmra.mxu0 %v825
      %v1135 = vpop.f32.mrf.mxu0
      %v1136 = vadd.f32 %v1113, %v1135
      %1137 = vdwg.mxu0
      %v1138 = vlaneseq
      %v1139 = vshrl.u32 %v1138, 7
      %v1140 = vld [vmem:[%s471] sm:$0x1]
      %v1141 = vperm.slane %v1140, 0
      %vm1142 = vcmp.eq.s32.totalorder %v1139, %v1141
      %v1143 = vsel %vm1142, 1, 0
      %v1144 = vcvt.s32.f32 %v1143
      %v1145 = vld [vmem:[#allocation3] sm:$0xff]
      %vm1146 = vcmask 130048
      %v1148 = vsel %vm1146, %v1144, 0
      %1150 = vmatpush.msra.mxu0 0.0
      %1151 = vmatpush.msra.mxu0 0.0
      %1152 = vmatpush.msra.mxu0 0.0
      %1153 = vmatpush.msra.mxu0 0.0
      %1154 = vmatpush.msra.mxu0 0.0
      %1155 = vmatpush.msra.mxu0 0.0
      %1156 = vmatpush.msra.mxu0 0.0
      %1157 = vmatpush.msra.mxu0 0.0
      %1158 = vmatpush.msra.mxu0 0.0
      %1159 = vmatpush.msra.mxu0 0.0
      %1160 = vmatpush.msra.mxu0 0.0
      %1161 = vmatpush.msra.mxu0 0.0
      %1162 = vmatpush.msra.mxu0 0.0
      %1163 = vmatpush.msra.mxu0 0.0
      %1164 = vmatpush.msra.mxu0 %v1136
      %1165 = vmatpush.msra.mxu0 %v1133
      %1166 = vmatmul.f32.gmra.mxu0 %v1148
      %v1167 = vpop.f32.mrf.mxu0
      %v1168 = vadd.f32 0.0, %v1167
      %1169 = vdwg.mxu0
      %v1170 = vadd.f32 %v1145, %v1168
      %1171 = vst.msk [vmem:[#allocation3] sm:$0xff] %vm603, %v1170
      // Predicated region
      $region81: #{graph_prediction_forward.4} parent=71 // pred_check
        %p1172 = pneg %p480
      $region82: #{graph_prediction_forward.4} parent=71 // pred_check_branch
        %1174 = sbr.rel (%p1172) target = $region84
      $region83: #{graph_prediction_forward.4} parent=71 // pred_region
        %v1175 = vld [vmem:[#allocation3] sm:$0xff]
        %v1176 = vld [vmem:[%s6] sm:$0xff]
        %1178 = vset.pattern.permute.xlu0 0
        %1179 = vperm.xlu0 %1178, %v1176
        %v1180 = vpop.permute.xlu0 %1179
        %v1182 = vmul.f32 %v1175, %v1180
        %v1183 = vld [vmem:[%s9] sm:$0xff]
        %v1184 = vld [vmem:[%s9 + $0x8] sm:$0xff]
        %v1185 = vld [vmem:[%s9 + $0x10] sm:$0xff]
        %v1186 = vld [vmem:[%s9 + $0x18] sm:$0xff]
        %v1188 = vsel %vm603, %v524, 0
        %1190 = vmatpush.msra.mxu0 0.0
        %1191 = vmatpush.msra.mxu0 0.0
        %1192 = vmatpush.msra.mxu0 0.0
        %1193 = vmatpush.msra.mxu0 0.0
        %1194 = vmatpush.msra.mxu0 0.0
        %1195 = vmatpush.msra.mxu0 0.0
        %1196 = vmatpush.msra.mxu0 0.0
        %1197 = vmatpush.msra.mxu0 0.0
        %1198 = vmatpush.msra.mxu0 0.0
        %1199 = vmatpush.msra.mxu0 0.0
        %1200 = vmatpush.msra.mxu0 0.0
        %1201 = vmatpush.msra.mxu0 0.0
        %1202 = vmatpush.msra.mxu0 %v1186
        %1203 = vmatpush.msra.mxu0 %v1185
        %1204 = vmatpush.msra.mxu0 %v1184
        %1205 = vmatpush.msra.mxu0 %v1183
        %1206 = vmatmul.f32.gmra.mxu0 %v1188
        %v1207 = vpop.f32.mrf.mxu0
        %v1208 = vadd.f32 0.0, %v1207
        %1209 = vdwg.mxu0
        %v1210 = vadd.f32 %v1182, %v1208
        %v1211 = vld [vmem:[%s10] sm:$0x1]
        %v1213 = vperm.slane %v1211, 0
        %v1215 = vadd.f32 %v1210, %v1213
        %v1216 = vmax.f32 %v1215, 0.0
        %1217 = vrot.lane.b32.xlu0 %v524, 32
        %v1218 = vpop.permute.xlu0 %1217
        %v1220 = vsel %vm603, %v1216, %v1218
        %v1221 = vld [vmem:[%s11] sm:$0xff]
        %v1222 = vld [vmem:[%s11 + $0x8] sm:$0xff]
        %v1223 = vld [vmem:[%s11 + $0x10] sm:$0xff]
        %v1224 = vld [vmem:[%s11 + $0x18] sm:$0xff]
        %v1225 = vld [vmem:[%s11 + $0x20] sm:$0xff]
        %v1226 = vld [vmem:[%s11 + $0x28] sm:$0xff]
        %v1227 = vld [vmem:[%s11 + $0x30] sm:$0xff]
        %v1228 = vld [vmem:[%s11 + $0x38] sm:$0xff]
        %v1229 = vld [vmem:[%s11 + $0x40] sm:$0xff]
        %v1230 = vld [vmem:[%s11 + $0x48] sm:$0xff]
        %v1231 = vld [vmem:[%s11 + $0x50] sm:$0xff]
        %v1232 = vld [vmem:[%s11 + $0x58] sm:$0xff]
        %v1233 = vld [vmem:[%s11 + $0x60] sm:$0xff]
        %v1234 = vld [vmem:[%s11 + $0x68] sm:$0xff]
        %v1235 = vld [vmem:[%s11 + $0x70] sm:$0xff]
        %v1236 = vld [vmem:[%s11 + $0x78] sm:$0xff]
        %v1237 = vld [vmem:[%s12] sm:$0x3]
        %v1239 = vperm.slane %v1237, 0
        %v1240 = vperm.slane %v1237, 1
        %vm1243 = vcmask 523264
        %v1245 = vsel %vm1243, %v1220, 0
        %1247 = vmatpush.msra.mxu0 0.0
        %1248 = vmatpush.msra.mxu0 0.0
        %1249 = vmatpush.msra.mxu0 0.0
        %1250 = vmatpush.msra.mxu0 0.0
        %1251 = vmatpush.msra.mxu0 0.0
        %1252 = vmatpush.msra.mxu0 0.0
        %1253 = vmatpush.msra.mxu0 0.0
        %1254 = vmatpush.msra.mxu0 0.0
        %1255 = vmatpush.msra.mxu0 %v1235
        %1256 = vmatpush.msra.mxu0 %v1233
        %1257 = vmatpush.msra.mxu0 %v1231
        %1258 = vmatpush.msra.mxu0 %v1229
        %1259 = vmatpush.msra.mxu0 %v1227
        %1260 = vmatpush.msra.mxu0 %v1225
        %1261 = vmatpush.msra.mxu0 %v1223
        %1262 = vmatpush.msra.mxu0 %v1221
        %1263 = vmatmul.f32.gmra.mxu0 %v1245
        %v1264 = vpop.f32.mrf.mxu0
        %v1265 = vadd.f32 %v1239, %v1264
        %1266 = vdwg.mxu0
        %1267 = vmatpush.msra.mxu0 0.0
        %1268 = vmatpush.msra.mxu0 0.0
        %1269 = vmatpush.msra.mxu0 0.0
        %1270 = vmatpush.msra.mxu0 0.0
        %1271 = vmatpush.msra.mxu0 0.0
        %1272 = vmatpush.msra.mxu0 0.0
        %1273 = vmatpush.msra.mxu0 0.0
        %1274 = vmatpush.msra.mxu0 0.0
        %1275 = vmatpush.msra.mxu0 %v1236
        %1276 = vmatpush.msra.mxu0 %v1234
        %1277 = vmatpush.msra.mxu0 %v1232
        %1278 = vmatpush.msra.mxu0 %v1230
        %1279 = vmatpush.msra.mxu0 %v1228
        %1280 = vmatpush.msra.mxu0 %v1226
        %1281 = vmatpush.msra.mxu0 %v1224
        %1282 = vmatpush.msra.mxu0 %v1222
        %1283 = vmatmul.f32.gmra.mxu0 %v1245
        %v1284 = vpop.f32.mrf.mxu0
        %v1285 = vadd.f32 %v1240, %v1284
        %1286 = vdwg.mxu0
        %1288 = vrot.lane.b32.xlu0 %v1265, 32
        %v1289 = vpop.permute.xlu0 %1288
        %v1291 = vadd.f32 %v1265, %v1289
        %v1292 = vxor.u32 %v1291, 2147483648
        %v1293 = vmul.f32 %v1292, 1.442695
        %v1294 = vpow.pop %v1293
        %v1295 = vadd.f32 %v1294, 1.0
        %v1296 = vrcp.pop %v1295
        %v1297 = vmul.f32 %v1295, %v1296
        %v1298 = vsub.f32 1.0, %v1297
        %v1299 = vmul.f32 %v1296, %v1298
        %v1300 = vadd.f32 %v1296, %v1299
        %vm1301 = vweird.f32 %v1295
        %vm1302 = vweird.f32 %v1296
        %vm1303 = vmor %vm1301, %vm1302
        %v1304 = vsel %vm1303, %v1296, %v1300
        %v1305 = vand.u32 2147483647, %v1295
        %vm1306 = vcmp.eq.f32.partialorder %v1305, 8.507059e+37
        %v1307 = vand.u32 %v1295, 2147483648
        %v1308 = vor.u32 1.1754944e-38, %v1307
        %v1309 = vsel %vm1306, %v1308, %v1304
        %v1310 = vmul.f32 1.0, %v1309
        %1312 = vrot.lane.b32.xlu0 %v1285, 32
        %v1313 = vpop.permute.xlu0 %1312
        %v1315 = vadd.f32 %v1265, %v1313
        %v1316 = vxor.u32 %v1315, 2147483648
        %v1317 = vmul.f32 %v1316, 1.442695
        %v1318 = vpow.pop %v1317
        %v1319 = vadd.f32 %v1318, 1.0
        %v1320 = vrcp.pop %v1319
        %v1321 = vmul.f32 %v1319, %v1320
        %v1322 = vsub.f32 1.0, %v1321
        %v1323 = vmul.f32 %v1320, %v1322
        %v1324 = vadd.f32 %v1320, %v1323
        %vm1325 = vweird.f32 %v1319
        %vm1326 = vweird.f32 %v1320
        %vm1327 = vmor %vm1325, %vm1326
        %v1328 = vsel %vm1327, %v1320, %v1324
        %v1329 = vand.u32 2147483647, %v1319
        %vm1330 = vcmp.eq.f32.partialorder %v1329, 8.507059e+37
        %v1331 = vand.u32 %v1319, 2147483648
        %v1332 = vor.u32 1.1754944e-38, %v1331
        %v1333 = vsel %vm1330, %v1332, %v1328
        %v1334 = vmul.f32 1.0, %v1333
        %1335 = vrot.lane.b32.xlu0 %v1285, 96
        %v1336 = vpop.permute.xlu0 %1335
        %v1338 = vmul.f32 %v1310, %v1336
        %1340 = vrot.lane.b32.xlu0 %v1338, 64
        %v1341 = vpop.permute.xlu0 %1340
        %v1343 = vadd.f32 %v1265, %v1341
        %v1344 = vtanh.pop %v1343
        %v1345 = vsub.f32 1.0, %v1334
        %1347 = vrot.lane.b32.xlu0 %v1344, 96
        %v1348 = vpop.permute.xlu0 %1347
        %v1350 = vmul.f32 %v1345, %v1348
        %v1351 = vmul.f32 %v1334, %v1218
        %v1352 = vadd.f32 %v1350, %v1351
        %1354 = vrot.lane.b32.xlu0 %v1352, 96
        %v1355 = vpop.permute.xlu0 %1354
        %1357 = vst.msk [vmem:[#allocation2] sm:$0xff] %vm603, %v1355
        %1358 = vst.msk [vmem:[%s13] sm:$0xff] %vm603, %v1355
      $region84: #{graph_prediction_forward.4} parent=71 // pred_fallthru
        _
      // Predicated region
      $region85: #{graph_prediction_forward.4} parent=71 // pred_check
        %p1359 = pneg %p337
      $region86: #{graph_prediction_forward.4} parent=71 // pred_check_branch
        %1361 = sbr.rel (%p1359) target = $region88
      $region87: #{graph_prediction_forward.4} parent=71 // pred_region
        _
      $region88: #{graph_prediction_forward.4} parent=71 // pred_fallthru
        _
      // Predicated region
      $region89: #{graph_prediction_forward.4} parent=71 // pred_check
        %p1362 = pneg %p337
      $region90: #{graph_prediction_forward.4} parent=71 // pred_check_branch
        %1364 = sbr.rel (%p1362) target = $region92
      $region91: #{graph_prediction_forward.4} parent=71 // pred_region
        _
      $region92: #{graph_prediction_forward.4} parent=71 // pred_fallthru
        _
    $region72: #{graph_prediction_forward.4} parent=5 // pred_fallthru
      _
    %p1365 = scmp.le.s32.totalorder 2, %s19
    // Predicated region
    $region93: #{graph_prediction_forward.4} parent=5 // pred_check
      %p1366 = pneg %p1365
    $region94: #{graph_prediction_forward.4} parent=5 // pred_check_branch
      %1368 = sbr.rel (%p1366) target = $region96
    $region95: #{graph_prediction_forward.4} parent=5 // pred_region
      %s1369 = ssub.s32 %s19, 2
    $region96: #{graph_prediction_forward.4} parent=5 // pred_fallthru
      _
  $region6: #{graph_prediction_forward.4} parent=0 // loop_footer
    %s23 = sadd.s32 1, %s19
  $region7: #{graph_prediction_forward.4} parent=0 // loop_footer_branch
    %18 = sbr.rel target = $region3
  $region8: #{graph_prediction_forward.4} parent=0 // loop_exit
    _

// kernel: graph_prediction_forward.5
$region0: #{graph_prediction_forward.5}
  #allocation0 [shape = 'u32[]', space=smem, size = 0x4, offset = 0x4, fixed_abs, tag = 'smem constant byte address 0x4 - core index']
  #allocation1 [shape = 'u32[72,128]{1,0:T(1,128)}', space=vmem, size = 0x9000, scoped, tag = 'internal scratch']
  %s0 = inlined_call_operand.vmem [shape: f32[8,32], index: 0, kind: input, shape index: {}]
  %s1 = inlined_call_operand.vmem [shape: f32[32,8], index: 1, kind: input, shape index: {}]
  %s2 = inlined_call_operand.vmem [shape: f32[2,8], index: 2, kind: input, shape index: {}]
  %s3 = inlined_call_operand.vmem [shape: f32[2,4], index: 3, kind: input, shape index: {}]
  %s4 = inlined_call_operand.vmem [shape: f32[32,128], index: 4, kind: input, shape index: {}]
  %s5 = inlined_call_operand.vmem [shape: f32[32,128], index: 5, kind: input, shape index: {}]
  %s6 = inlined_call_operand.vmem [shape: f32[1,128], index: 6, kind: input, shape index: {}]
  %s7 = inlined_call_operand.vmem [shape: f32[32,32], index: 7, kind: input, shape index: {}]
  %s8 = inlined_call_operand.vmem [shape: f32[32,32], index: 8, kind: input, shape index: {}]
  %s9 = inlined_call_operand.vmem [shape: f32[4,32], index: 9, kind: input, shape index: {}]
  %s10 = inlined_call_operand.vmem [shape: f32[1,32], index: 10, kind: input, shape index: {}]
  %s11 = inlined_call_operand.vmem [shape: f32[32,6], index: 11, kind: input, shape index: {}]
  %s12 = inlined_call_operand.vmem [shape: f32[1,6], index: 12, kind: input, shape index: {}]
  %s13 = inlined_call_operand.vmem [shape: f32[2,6], index: 13, kind: output, shape index: {}]
  %s14 = sld [smem:[#allocation0]]
  $region62: #{graph_prediction_forward.5} parent=0
    _
  %s16 = ssub.s32 1, %s14
  %s17 = scalar_select 0, %s16, %s14
  // Predicated region
  $region2: #{graph_prediction_forward.5} parent=0 // pred_check
    _
  $region3: #{graph_prediction_forward.5} parent=0 // pred_check_branch
    %19 = sbr.rel (0) target = $region5
  $region4: #{graph_prediction_forward.5} parent=0 // pred_region
    _
  $region5: #{graph_prediction_forward.5} parent=0 // pred_fallthru
    _
  // Predicated region
  $region6: #{graph_prediction_forward.5} parent=0 // pred_check
    _
  $region7: #{graph_prediction_forward.5} parent=0 // pred_check_branch
    %21 = sbr.rel (0) target = $region9
  $region8: #{graph_prediction_forward.5} parent=0 // pred_region
    _
  $region9: #{graph_prediction_forward.5} parent=0 // pred_fallthru
    _
  // Predicated region
  $region10: #{graph_prediction_forward.5} parent=0 // pred_check
    _
  $region11: #{graph_prediction_forward.5} parent=0 // pred_check_branch
    %23 = sbr.rel (0) target = $region13
  $region12: #{graph_prediction_forward.5} parent=0 // pred_region
    _
  $region13: #{graph_prediction_forward.5} parent=0 // pred_fallthru
    _
  // Predicated region
  $region14: #{graph_prediction_forward.5} parent=0 // pred_check
    _
  $region15: #{graph_prediction_forward.5} parent=0 // pred_check_branch
    %25 = sbr.rel (0) target = $region17
  $region16: #{graph_prediction_forward.5} parent=0 // pred_region
    _
  $region17: #{graph_prediction_forward.5} parent=0 // pred_fallthru
    _
  // Predicated region
  $region18: #{graph_prediction_forward.5} parent=0 // pred_check
    _
  $region19: #{graph_prediction_forward.5} parent=0 // pred_check_branch
    %27 = sbr.rel (0) target = $region21
  $region20: #{graph_prediction_forward.5} parent=0 // pred_region
    _
  $region21: #{graph_prediction_forward.5} parent=0 // pred_fallthru
    _
  // Predicated region
  $region22: #{graph_prediction_forward.5} parent=0 // pred_check
    _
  $region23: #{graph_prediction_forward.5} parent=0 // pred_check_branch
    %29 = sbr.rel (0) target = $region25
  $region24: #{graph_prediction_forward.5} parent=0 // pred_region
    _
  $region25: #{graph_prediction_forward.5} parent=0 // pred_fallthru
    _
  // Predicated region
  $region26: #{graph_prediction_forward.5} parent=0 // pred_check
    _
  $region27: #{graph_prediction_forward.5} parent=0 // pred_check_branch
    %31 = sbr.rel (0) target = $region29
  $region28: #{graph_prediction_forward.5} parent=0 // pred_region
    _
  $region29: #{graph_prediction_forward.5} parent=0 // pred_fallthru
    _
  // Predicated region
  $region30: #{graph_prediction_forward.5} parent=0 // pred_check
    _
  $region31: #{graph_prediction_forward.5} parent=0 // pred_check_branch
    %33 = sbr.rel (0) target = $region33
  $region32: #{graph_prediction_forward.5} parent=0 // pred_region
    _
  $region33: #{graph_prediction_forward.5} parent=0 // pred_fallthru
    _
  // Predicated region
  $region34: #{graph_prediction_forward.5} parent=0 // pred_check
    _
  $region35: #{graph_prediction_forward.5} parent=0 // pred_check_branch
    %35 = sbr.rel (0) target = $region37
  $region36: #{graph_prediction_forward.5} parent=0 // pred_region
    _
  $region37: #{graph_prediction_forward.5} parent=0 // pred_fallthru
    _
  // Predicated region
  $region38: #{graph_prediction_forward.5} parent=0 // pred_check
    _
  $region39: #{graph_prediction_forward.5} parent=0 // pred_check_branch
    %37 = sbr.rel (0) target = $region41
  $region40: #{graph_prediction_forward.5} parent=0 // pred_region
    _
  $region41: #{graph_prediction_forward.5} parent=0 // pred_fallthru
    _
  // Predicated region
  $region42: #{graph_prediction_forward.5} parent=0 // pred_check
    _
  $region43: #{graph_prediction_forward.5} parent=0 // pred_check_branch
    %39 = sbr.rel (0) target = $region45
  $region44: #{graph_prediction_forward.5} parent=0 // pred_region
    _
  $region45: #{graph_prediction_forward.5} parent=0 // pred_fallthru
    _
  // Predicated region
  $region46: #{graph_prediction_forward.5} parent=0 // pred_check
    _
  $region47: #{graph_prediction_forward.5} parent=0 // pred_check_branch
    %41 = sbr.rel (0) target = $region49
  $region48: #{graph_prediction_forward.5} parent=0 // pred_region
    _
  $region49: #{graph_prediction_forward.5} parent=0 // pred_fallthru
    _
  // Predicated region
  $region50: #{graph_prediction_forward.5} parent=0 // pred_check
    _
  $region51: #{graph_prediction_forward.5} parent=0 // pred_check_branch
    %43 = sbr.rel (0) target = $region53
  $region52: #{graph_prediction_forward.5} parent=0 // pred_region
    _
  $region53: #{graph_prediction_forward.5} parent=0 // pred_fallthru
    _
  %v44 = vld [vmem:[%s0] sm:$0xff]
  %v45 = vld [vmem:[%s1] sm:$0xff]
  %v46 = vld [vmem:[%s1 + $0x8] sm:$0xff]
  %v47 = vld [vmem:[%s1 + $0x10] sm:$0xff]
  %v48 = vld [vmem:[%s1 + $0x18] sm:$0xff]
  %v49 = vld [vmem:[%s2] sm:$0x3]
  %v50 = vld [vmem:[%s4] sm:$0xff]
  %v51 = vld [vmem:[%s4 + $0x8] sm:$0xff]
  %v52 = vld [vmem:[%s4 + $0x10] sm:$0xff]
  %v53 = vld [vmem:[%s4 + $0x18] sm:$0xff]
  %v54 = vld [vmem:[%s5] sm:$0xff]
  %v55 = vld [vmem:[%s5 + $0x8] sm:$0xff]
  %v56 = vld [vmem:[%s5 + $0x10] sm:$0xff]
  %v57 = vld [vmem:[%s5 + $0x18] sm:$0xff]
  %v58 = vld [vmem:[%s6] sm:$0x1]
  %vm59 = vcmp.gt.f32.partialorder %v49, 0.0
  %v60 = vsel %vm59, 0.0, -1e+30
  %vm61 = vcmask 261120
  %v63 = vsel %vm61, 0.0, 0
  %65 = vmatpush.msra.mxu0 0.0
  %66 = vmatpush.msra.mxu0 0.0
  %67 = vmatpush.msra.mxu0 0.0
  %68 = vmatpush.msra.mxu0 0.0
  %69 = vmatpush.msra.mxu0 0.0
  %70 = vmatpush.msra.mxu0 0.0
  %71 = vmatpush.msra.mxu0 0.0
  %72 = vmatpush.msra.mxu0 0.0
  %73 = vmatpush.msra.mxu0 0.0
  %74 = vmatpush.msra.mxu0 0.0
  %75 = vmatpush.msra.mxu0 0.0
  %76 = vmatpush.msra.mxu0 0.0
  %77 = vmatpush.msra.mxu0 %v57
  %78 = vmatpush.msra.mxu0 %v56
  %79 = vmatpush.msra.mxu0 %v55
  %80 = vmatpush.msra.mxu0 %v54
  %81 = vmatmul.f32.gmra.mxu0 %v63
  %v82 = vpop.f32.mrf.mxu0
  %v83 = vadd.f32 0.0, %v82
  %84 = vdwg.mxu0
  %85 = vmatpush.msra.mxu0 0.0
  %86 = vmatpush.msra.mxu0 0.0
  %87 = vmatpush.msra.mxu0 0.0
  %88 = vmatpush.msra.mxu0 0.0
  %89 = vmatpush.msra.mxu0 0.0
  %90 = vmatpush.msra.mxu0 0.0
  %91 = vmatpush.msra.mxu0 0.0
  %92 = vmatpush.msra.mxu0 0.0
  %93 = vmatpush.msra.mxu0 0.0
  %94 = vmatpush.msra.mxu0 0.0
  %95 = vmatpush.msra.mxu0 0.0
  %96 = vmatpush.msra.mxu0 0.0
  %97 = vmatpush.msra.mxu0 %v53
  %98 = vmatpush.msra.mxu0 %v52
  %99 = vmatpush.msra.mxu0 %v51
  %100 = vmatpush.msra.mxu0 %v50
  %101 = vmatmul.f32.gmra.mxu0 %v63
  %v102 = vpop.f32.mrf.mxu0
  %v103 = vadd.f32 %v83, %v102
  %104 = vdwg.mxu0
  %v106 = vperm.slane %v58, 0
  %v108 = vadd.f32 %v103, %v106
  %v109 = vxor.u32 %v108, 2147483648
  %v110 = vmul.f32 %v109, 1.442695
  %v111 = vpow.pop %v110
  %v112 = vadd.f32 %v111, 1.0
  %v113 = vrcp.pop %v112
  %v114 = vmul.f32 %v112, %v113
  %v115 = vsub.f32 1.0, %v114
  %v116 = vmul.f32 %v113, %v115
  %v117 = vadd.f32 %v113, %v116
  %vm118 = vweird.f32 %v112
  %vm119 = vweird.f32 %v113
  %vm120 = vmor %vm118, %vm119
  %v121 = vsel %vm120, %v113, %v117
  %v122 = vand.u32 2147483647, %v112
  %vm123 = vcmp.eq.f32.partialorder %v122, 8.507059e+37
  %v124 = vand.u32 %v112, 2147483648
  %v125 = vor.u32 1.1754944e-38, %v124
  %v126 = vsel %vm123, %v125, %v121
  %v127 = vmul.f32 1.0, %v126
  %v128 = vtanh.pop %v108
  %v129 = vmul.f32 %v127, 0.0
  %131 = vrot.lane.b32.xlu0 %v128, 64
  %v132 = vpop.permute.xlu0 %131
  %v134 = vmul.f32 %v127, %v132
  %136 = vrot.lane.b32.xlu0 %v134, 32
  %v137 = vpop.permute.xlu0 %136
  %v139 = vadd.f32 %v129, %v137
  %v140 = vtanh.pop %v139
  %142 = vrot.lane.b32.xlu0 %v140, 64
  %v143 = vpop.permute.xlu0 %142
  %v145 = vmul.f32 %v127, %v143
  %147 = vrot.lane.b32.xlu0 %v145, 32
  %v148 = vpop.permute.xlu0 %147
  %v149 = vsel %vm61, %v148, 0
  %151 = vmatpush.msra.mxu0 0.0
  %152 = vmatpush.msra.mxu0 0.0
  %153 = vmatpush.msra.mxu0 0.0
  %154 = vmatpush.msra.mxu0 0.0
  %155 = vmatpush.msra.mxu0 0.0
  %156 = vmatpush.msra.mxu0 0.0
  %157 = vmatpush.msra.mxu0 0.0
  %158 = vmatpush.msra.mxu0 0.0
  %159 = vmatpush.msra.mxu0 0.0
  %160 = vmatpush.msra.mxu0 0.0
  %161 = vmatpush.msra.mxu0 0.0
  %162 = vmatpush.msra.mxu0 0.0
  %163 = vmatpush.msra.mxu0 %v48
  %164 = vmatpush.msra.mxu0 %v47
  %165 = vmatpush.msra.mxu0 %v46
  %166 = vmatpush.msra.mxu0 %v45
  %167 = vmatmul.f32.gmra.mxu0 %v149
  %v168 = vpop.f32.mrf.mxu0
  %v169 = vadd.f32 %v60, %v168
  %170 = vdwg.mxu0
  %vm171 = vcmask 58368
  %v172 = vsel %vm171, %v169, -inf
  %173 = vmax.xlane.f32.xlu0 %v172
  %v174 = vpop.xlane.xlu0 %173
  %v175 = vsub.f32 %v169, %v174
  %v176 = vmul.f32 %v175, 1.442695
  %v177 = vpow.pop %v176
  %v178 = vmul.f32 %v49, %v177
  %v179 = vsel %vm171, %v178, 0.0
  %180 = vadd.xlane.f32.xlu0 %v179
  %v181 = vpop.xlane.xlu0 %180
  %v182 = vmax.f32 %v181, 1e-12
  %v183 = vrcp.pop %v182
  %v184 = vmul.f32 %v178, %v183
  %vm185 = vcmask 64512
  %v187 = vsel %vm185, %v184, 0
  %189 = vmatpush.msra.mxu0 0.0
  %190 = vmatpush.msra.mxu0 0.0
  %191 = vmatpush.msra.mxu0 0.0
  %192 = vmatpush.msra.mxu0 0.0
  %193 = vmatpush.msra.mxu0 0.0
  %194 = vmatpush.msra.mxu0 0.0
  %195 = vmatpush.msra.mxu0 0.0
  %196 = vmatpush.msra.mxu0 0.0
  %197 = vmatpush.msra.mxu0 0.0
  %198 = vmatpush.msra.mxu0 0.0
  %199 = vmatpush.msra.mxu0 0.0
  %200 = vmatpush.msra.mxu0 0.0
  %201 = vmatpush.msra.mxu0 0.0
  %202 = vmatpush.msra.mxu0 0.0
  %203 = vmatpush.msra.mxu0 0.0
  %204 = vmatpush.msra.mxu0 %v44
  %205 = vmatmul.f32.gmra.mxu0 %v187
  %v206 = vpop.f32.mrf.mxu0
  %v207 = vadd.f32 0.0, %v206
  %208 = vdwg.mxu0
  %v210 = vsel %vm61, %v207, 0
  %212 = vmatpush.msra.mxu0 0.0
  %213 = vmatpush.msra.mxu0 0.0
  %214 = vmatpush.msra.mxu0 0.0
  %215 = vmatpush.msra.mxu0 0.0
  %216 = vmatpush.msra.mxu0 0.0
  %217 = vmatpush.msra.mxu0 0.0
  %218 = vmatpush.msra.mxu0 0.0
  %219 = vmatpush.msra.mxu0 0.0
  %220 = vmatpush.msra.mxu0 0.0
  %221 = vmatpush.msra.mxu0 0.0
  %222 = vmatpush.msra.mxu0 0.0
  %223 = vmatpush.msra.mxu0 0.0
  %224 = vmatpush.msra.mxu0 %v57
  %225 = vmatpush.msra.mxu0 %v56
  %226 = vmatpush.msra.mxu0 %v55
  %227 = vmatpush.msra.mxu0 %v54
  %228 = vmatmul.f32.gmra.mxu0 %v210
  %v229 = vpop.f32.mrf.mxu0
  %v230 = vadd.f32 0.0, %v229
  %231 = vdwg.mxu0
  %232 = vmatpush.msra.mxu0 0.0
  %233 = vmatpush.msra.mxu0 0.0
  %234 = vmatpush.msra.mxu0 0.0
  %235 = vmatpush.msra.mxu0 0.0
  %236 = vmatpush.msra.mxu0 0.0
  %237 = vmatpush.msra.mxu0 0.0
  %238 = vmatpush.msra.mxu0 0.0
  %239 = vmatpush.msra.mxu0 0.0
  %240 = vmatpush.msra.mxu0 0.0
  %241 = vmatpush.msra.mxu0 0.0
  %242 = vmatpush.msra.mxu0 0.0
  %243 = vmatpush.msra.mxu0 0.0
  %244 = vmatpush.msra.mxu0 %v53
  %245 = vmatpush.msra.mxu0 %v52
  %246 = vmatpush.msra.mxu0 %v51
  %247 = vmatpush.msra.mxu0 %v50
  %248 = vmatmul.f32.gmra.mxu0 %v149
  %v249 = vpop.f32.mrf.mxu0
  %v250 = vadd.f32 %v230, %v249
  %251 = vdwg.mxu0
  %v252 = vadd.f32 %v250, %v106
  %v253 = vxor.u32 %v252, 2147483648
  %v254 = vmul.f32 %v253, 1.442695
  %v255 = vpow.pop %v254
  %v256 = vadd.f32 %v255, 1.0
  %v257 = vrcp.pop %v256
  %v258 = vmul.f32 %v256, %v257
  %v259 = vsub.f32 1.0, %v258
  %v260 = vmul.f32 %v257, %v259
  %v261 = vadd.f32 %v257, %v260
  %vm262 = vweird.f32 %v256
  %vm263 = vweird.f32 %v257
  %vm264 = vmor %vm262, %vm263
  %v265 = vsel %vm264, %v257, %v261
  %v266 = vand.u32 2147483647, %v256
  %vm267 = vcmp.eq.f32.partialorder %v266, 8.507059e+37
  %v268 = vand.u32 %v256, 2147483648
  %v269 = vor.u32 1.1754944e-38, %v268
  %v270 = vsel %vm267, %v269, %v265
  %v271 = vmul.f32 1.0, %v270
  %v272 = vtanh.pop %v252
  %v273 = vmul.f32 %v271, %v139
  %275 = vrot.lane.b32.xlu0 %v272, 64
  %v276 = vpop.permute.xlu0 %275
  %v278 = vmul.f32 %v271, %v276
  %280 = vrot.lane.b32.xlu0 %v278, 32
  %v281 = vpop.permute.xlu0 %280
  %v283 = vadd.f32 %v273, %v281
  %v284 = vtanh.pop %v283
  %286 = vrot.lane.b32.xlu0 %v284, 64
  %v287 = vpop.permute.xlu0 %286
  %v289 = vmul.f32 %v271, %v287
  %291 = vrot.lane.b32.xlu0 %v289, 32
  %v292 = vpop.permute.xlu0 %291
  %v293 = vsel %vm61, %v292, 0
  %295 = vmatpush.msra.mxu0 0.0
  %296 = vmatpush.msra.mxu0 0.0
  %297 = vmatpush.msra.mxu0 0.0
  %298 = vmatpush.msra.mxu0 0.0
  %299 = vmatpush.msra.mxu0 0.0
  %300 = vmatpush.msra.mxu0 0.0
  %301 = vmatpush.msra.mxu0 0.0
  %302 = vmatpush.msra.mxu0 0.0
  %303 = vmatpush.msra.mxu0 0.0
  %304 = vmatpush.msra.mxu0 0.0
  %305 = vmatpush.msra.mxu0 0.0
  %306 = vmatpush.msra.mxu0 0.0
  %307 = vmatpush.msra.mxu0 %v48
  %308 = vmatpush.msra.mxu0 %v47
  %309 = vmatpush.msra.mxu0 %v46
  %310 = vmatpush.msra.mxu0 %v45
  %311 = vmatmul.f32.gmra.mxu0 %v293
  %v312 = vpop.f32.mrf.mxu0
  %v313 = vadd.f32 %v60, %v312
  %314 = vdwg.mxu0
  %v315 = vsel %vm171, %v313, -inf
  %316 = vmax.xlane.f32.xlu0 %v315
  %v317 = vpop.xlane.xlu0 %316
  %v318 = vsub.f32 %v313, %v317
  %v319 = vmul.f32 %v318, 1.442695
  %v320 = vpow.pop %v319
  %v321 = vmul.f32 %v49, %v320
  %v322 = vsel %vm171, %v321, 0.0
  %323 = vadd.xlane.f32.xlu0 %v322
  %v324 = vpop.xlane.xlu0 %323
  %v325 = vmax.f32 %v324, 1e-12
  %v326 = vrcp.pop %v325
  %v327 = vmul.f32 %v321, %v326
  %v329 = vsel %vm185, %v327, 0
  %331 = vmatpush.msra.mxu0 0.0
  %332 = vmatpush.msra.mxu0 0.0
  %333 = vmatpush.msra.mxu0 0.0
  %334 = vmatpush.msra.mxu0 0.0
  %335 = vmatpush.msra.mxu0 0.0
  %336 = vmatpush.msra.mxu0 0.0
  %337 = vmatpush.msra.mxu0 0.0
  %338 = vmatpush.msra.mxu0 0.0
  %339 = vmatpush.msra.mxu0 0.0
  %340 = vmatpush.msra.mxu0 0.0
  %341 = vmatpush.msra.mxu0 0.0
  %342 = vmatpush.msra.mxu0 0.0
  %343 = vmatpush.msra.mxu0 0.0
  %344 = vmatpush.msra.mxu0 0.0
  %345 = vmatpush.msra.mxu0 0.0
  %346 = vmatpush.msra.mxu0 %v44
  %347 = vmatmul.f32.gmra.mxu0 %v329
  %v348 = vpop.f32.mrf.mxu0
  %v349 = vadd.f32 0.0, %v348
  %350 = vdwg.mxu0
  %v352 = vsel %vm61, %v349, 0
  %354 = vmatpush.msra.mxu0 0.0
  %355 = vmatpush.msra.mxu0 0.0
  %356 = vmatpush.msra.mxu0 0.0
  %357 = vmatpush.msra.mxu0 0.0
  %358 = vmatpush.msra.mxu0 0.0
  %359 = vmatpush.msra.mxu0 0.0
  %360 = vmatpush.msra.mxu0 0.0
  %361 = vmatpush.msra.mxu0 0.0
  %362 = vmatpush.msra.mxu0 0.0
  %363 = vmatpush.msra.mxu0 0.0
  %364 = vmatpush.msra.mxu0 0.0
  %365 = vmatpush.msra.mxu0 0.0
  %366 = vmatpush.msra.mxu0 %v57
  %367 = vmatpush.msra.mxu0 %v56
  %368 = vmatpush.msra.mxu0 %v55
  %369 = vmatpush.msra.mxu0 %v54
  %370 = vmatmul.f32.gmra.mxu0 %v352
  %v371 = vpop.f32.mrf.mxu0
  %v372 = vadd.f32 0.0, %v371
  %373 = vdwg.mxu0
  %374 = vmatpush.msra.mxu0 0.0
  %375 = vmatpush.msra.mxu0 0.0
  %376 = vmatpush.msra.mxu0 0.0
  %377 = vmatpush.msra.mxu0 0.0
  %378 = vmatpush.msra.mxu0 0.0
  %379 = vmatpush.msra.mxu0 0.0
  %380 = vmatpush.msra.mxu0 0.0
  %381 = vmatpush.msra.mxu0 0.0
  %382 = vmatpush.msra.mxu0 0.0
  %383 = vmatpush.msra.mxu0 0.0
  %384 = vmatpush.msra.mxu0 0.0
  %385 = vmatpush.msra.mxu0 0.0
  %386 = vmatpush.msra.mxu0 %v53
  %387 = vmatpush.msra.mxu0 %v52
  %388 = vmatpush.msra.mxu0 %v51
  %389 = vmatpush.msra.mxu0 %v50
  %390 = vmatmul.f32.gmra.mxu0 %v293
  %v391 = vpop.f32.mrf.mxu0
  %v392 = vadd.f32 %v372, %v391
  %393 = vdwg.mxu0
  %v394 = vadd.f32 %v392, %v106
  %v395 = vxor.u32 %v394, 2147483648
  %v396 = vmul.f32 %v395, 1.442695
  %v397 = vpow.pop %v396
  %v398 = vadd.f32 %v397, 1.0
  %v399 = vrcp.pop %v398
  %v400 = vmul.f32 %v398, %v399
  %v401 = vsub.f32 1.0, %v400
  %v402 = vmul.f32 %v399, %v401
  %v403 = vadd.f32 %v399, %v402
  %vm404 = vweird.f32 %v398
  %vm405 = vweird.f32 %v399
  %vm406 = vmor %vm404, %vm405
  %v407 = vsel %vm406, %v399, %v403
  %v408 = vand.u32 2147483647, %v398
  %vm409 = vcmp.eq.f32.partialorder %v408, 8.507059e+37
  %v410 = vand.u32 %v398, 2147483648
  %v411 = vor.u32 1.1754944e-38, %v410
  %v412 = vsel %vm409, %v411, %v407
  %v413 = vmul.f32 1.0, %v412
  %v414 = vtanh.pop %v394
  %v415 = vmul.f32 %v413, %v283
  %417 = vrot.lane.b32.xlu0 %v414, 64
  %v418 = vpop.permute.xlu0 %417
  %v420 = vmul.f32 %v413, %v418
  %422 = vrot.lane.b32.xlu0 %v420, 32
  %v423 = vpop.permute.xlu0 %422
  %v425 = vadd.f32 %v415, %v423
  %v426 = vtanh.pop %v425
  %428 = vrot.lane.b32.xlu0 %v426, 64
  %v429 = vpop.permute.xlu0 %428
  %v431 = vmul.f32 %v413, %v429
  %433 = vrot.lane.b32.xlu0 %v431, 32
  %v434 = vpop.permute.xlu0 %433
  %v435 = vsel %vm61, %v434, 0
  %437 = vmatpush.msra.mxu0 0.0
  %438 = vmatpush.msra.mxu0 0.0
  %439 = vmatpush.msra.mxu0 0.0
  %440 = vmatpush.msra.mxu0 0.0
  %441 = vmatpush.msra.mxu0 0.0
  %442 = vmatpush.msra.mxu0 0.0
  %443 = vmatpush.msra.mxu0 0.0
  %444 = vmatpush.msra.mxu0 0.0
  %445 = vmatpush.msra.mxu0 0.0
  %446 = vmatpush.msra.mxu0 0.0
  %447 = vmatpush.msra.mxu0 0.0
  %448 = vmatpush.msra.mxu0 0.0
  %449 = vmatpush.msra.mxu0 %v48
  %450 = vmatpush.msra.mxu0 %v47
  %451 = vmatpush.msra.mxu0 %v46
  %452 = vmatpush.msra.mxu0 %v45
  %453 = vmatmul.f32.gmra.mxu0 %v435
  %v454 = vpop.f32.mrf.mxu0
  %v455 = vadd.f32 %v60, %v454
  %456 = vdwg.mxu0
  %v457 = vsel %vm171, %v455, -inf
  %458 = vmax.xlane.f32.xlu0 %v457
  %v459 = vpop.xlane.xlu0 %458
  %v460 = vsub.f32 %v455, %v459
  %v461 = vmul.f32 %v460, 1.442695
  %v462 = vpow.pop %v461
  %v463 = vmul.f32 %v49, %v462
  %v464 = vsel %vm171, %v463, 0.0
  %465 = vadd.xlane.f32.xlu0 %v464
  %v466 = vpop.xlane.xlu0 %465
  %v467 = vmax.f32 %v466, 1e-12
  %v468 = vrcp.pop %v467
  %v469 = vmul.f32 %v463, %v468
  %v471 = vsel %vm185, %v469, 0
  %473 = vmatpush.msra.mxu0 0.0
  %474 = vmatpush.msra.mxu0 0.0
  %475 = vmatpush.msra.mxu0 0.0
  %476 = vmatpush.msra.mxu0 0.0
  %477 = vmatpush.msra.mxu0 0.0
  %478 = vmatpush.msra.mxu0 0.0
  %479 = vmatpush.msra.mxu0 0.0
  %480 = vmatpush.msra.mxu0 0.0
  %481 = vmatpush.msra.mxu0 0.0
  %482 = vmatpush.msra.mxu0 0.0
  %483 = vmatpush.msra.mxu0 0.0
  %484 = vmatpush.msra.mxu0 0.0
  %485 = vmatpush.msra.mxu0 0.0
  %486 = vmatpush.msra.mxu0 0.0
  %487 = vmatpush.msra.mxu0 0.0
  %488 = vmatpush.msra.mxu0 %v44
  %489 = vmatmul.f32.gmra.mxu0 %v471
  %v490 = vpop.f32.mrf.mxu0
  %v491 = vadd.f32 0.0, %v490
  %492 = vdwg.mxu0
  %v493 = vld [vmem:[%s7] sm:$0xff]
  %v494 = vld [vmem:[%s7 + $0x8] sm:$0xff]
  %v495 = vld [vmem:[%s7 + $0x10] sm:$0xff]
  %v496 = vld [vmem:[%s7 + $0x18] sm:$0xff]
  %v497 = vld [vmem:[%s8] sm:$0xff]
  %v498 = vld [vmem:[%s8 + $0x8] sm:$0xff]
  %v499 = vld [vmem:[%s8 + $0x10] sm:$0xff]
  %v500 = vld [vmem:[%s8 + $0x18] sm:$0xff]
  %v502 = vsel %vm61, %v491, 0
  %504 = vmatpush.msra.mxu0 0.0
  %505 = vmatpush.msra.mxu0 0.0
  %506 = vmatpush.msra.mxu0 0.0
  %507 = vmatpush.msra.mxu0 0.0
  %508 = vmatpush.msra.mxu0 0.0
  %509 = vmatpush.msra.mxu0 0.0
  %510 = vmatpush.msra.mxu0 0.0
  %511 = vmatpush.msra.mxu0 0.0
  %512 = vmatpush.msra.mxu0 0.0
  %513 = vmatpush.msra.mxu0 0.0
  %514 = vmatpush.msra.mxu0 0.0
  %515 = vmatpush.msra.mxu0 0.0
  %516 = vmatpush.msra.mxu0 %v500
  %517 = vmatpush.msra.mxu0 %v499
  %518 = vmatpush.msra.mxu0 %v498
  %519 = vmatpush.msra.mxu0 %v497
  %520 = vmatmul.f32.gmra.mxu0 %v502
  %v521 = vpop.f32.mrf.mxu0
  %v522 = vadd.f32 0.0, %v521
  %523 = vdwg.mxu0
  %524 = vmatpush.msra.mxu0 0.0
  %525 = vmatpush.msra.mxu0 0.0
  %526 = vmatpush.msra.mxu0 0.0
  %527 = vmatpush.msra.mxu0 0.0
  %528 = vmatpush.msra.mxu0 0.0
  %529 = vmatpush.msra.mxu0 0.0
  %530 = vmatpush.msra.mxu0 0.0
  %531 = vmatpush.msra.mxu0 0.0
  %532 = vmatpush.msra.mxu0 0.0
  %533 = vmatpush.msra.mxu0 0.0
  %534 = vmatpush.msra.mxu0 0.0
  %535 = vmatpush.msra.mxu0 0.0
  %536 = vmatpush.msra.mxu0 %v496
  %537 = vmatpush.msra.mxu0 %v495
  %538 = vmatpush.msra.mxu0 %v494
  %539 = vmatpush.msra.mxu0 %v493
  %540 = vmatmul.f32.gmra.mxu0 %v435
  %v541 = vpop.f32.mrf.mxu0
  %v542 = vadd.f32 %v522, %v541
  %543 = vdwg.mxu0
  %v544 = vld [vmem:[%s3] sm:$0x3]
  %v545 = vld [vmem:[%s9] sm:$0xf]
  %vm546 = vcmask 31744
  %v548 = vsel %vm546, %v544, 0
  %vm550 = vcmask 1043456
  %v552 = vsel %vm550, %v545, 0
  %554 = vmatpush.msra.mxu0 0.0
  %555 = vmatpush.msra.mxu0 0.0
  %556 = vmatpush.msra.mxu0 0.0
  %557 = vmatpush.msra.mxu0 0.0
  %558 = vmatpush.msra.mxu0 0.0
  %559 = vmatpush.msra.mxu0 0.0
  %560 = vmatpush.msra.mxu0 0.0
  %561 = vmatpush.msra.mxu0 0.0
  %562 = vmatpush.msra.mxu0 0.0
  %563 = vmatpush.msra.mxu0 0.0
  %564 = vmatpush.msra.mxu0 0.0
  %565 = vmatpush.msra.mxu0 0.0
  %566 = vmatpush.msra.mxu0 0.0
  %567 = vmatpush.msra.mxu0 0.0
  %568 = vmatpush.msra.mxu0 0.0
  %569 = vmatpush.msra.mxu0 %v552
  %570 = vmatmul.f32.gmra.mxu0 %v548
  %v571 = vpop.f32.mrf.mxu0
  %v572 = vadd.f32 0.0, %v571
  %573 = vdwg.mxu0
  %v574 = vadd.f32 %v542, %v572
  %v575 = vld [vmem:[%s10] sm:$0x1]
  %v577 = vperm.slane %v575, 0
  %v579 = vadd.f32 %v574, %v577
  %v580 = vmax.f32 %v579, 0.0
  %v581 = vld [vmem:[%s11] sm:$0xff]
  %v582 = vld [vmem:[%s11 + $0x8] sm:$0xff]
  %v583 = vld [vmem:[%s11 + $0x10] sm:$0xff]
  %v584 = vld [vmem:[%s11 + $0x18] sm:$0xff]
  %v585 = vld [vmem:[%s12] sm:$0x1]
  %v587 = vperm.slane %v585, 0
  %v590 = vsel %vm61, %v580, 0
  %592 = vmatpush.msra.mxu0 0.0
  %593 = vmatpush.msra.mxu0 0.0
  %594 = vmatpush.msra.mxu0 0.0
  %595 = vmatpush.msra.mxu0 0.0
  %596 = vmatpush.msra.mxu0 0.0
  %597 = vmatpush.msra.mxu0 0.0
  %598 = vmatpush.msra.mxu0 0.0
  %599 = vmatpush.msra.mxu0 0.0
  %600 = vmatpush.msra.mxu0 0.0
  %601 = vmatpush.msra.mxu0 0.0
  %602 = vmatpush.msra.mxu0 0.0
  %603 = vmatpush.msra.mxu0 0.0
  %604 = vmatpush.msra.mxu0 %v584
  %605 = vmatpush.msra.mxu0 %v583
  %606 = vmatpush.msra.mxu0 %v582
  %607 = vmatpush.msra.mxu0 %v581
  %608 = vmatmul.f32.gmra.mxu0 %v590
  %v609 = vpop.f32.mrf.mxu0
  %v610 = vadd.f32 %v587, %v609
  %611 = vdwg.mxu0
  %vm612 = vcmask 41984
  %613 = vst.msk [vmem:[%s13] sm:$0x3] %vm612, %v610
  // Predicated region
  $region54: #{graph_prediction_forward.5} parent=0 // pred_check
    _
  $region55: #{graph_prediction_forward.5} parent=0 // pred_check_branch
    %615 = sbr.rel (0) target = $region57
  $region56: #{graph_prediction_forward.5} parent=0 // pred_region
    _
  $region57: #{graph_prediction_forward.5} parent=0 // pred_fallthru
    _
  // Predicated region
  $region58: #{graph_prediction_forward.5} parent=0 // pred_check
    _
  $region59: #{graph_prediction_forward.5} parent=0 // pred_check_branch
    %617 = sbr.rel (0) target = $region61
  $region60: #{graph_prediction_forward.5} parent=0 // pred_region
    _
  $region61: #{graph_prediction_forward.5} parent=0 // pred_fallthru
    _

</llo_original>
